<compile_context>
chip_gen: v7x
topology: tpu7x:2x2x1
jax: 0.10.0
libtpu: 0.0.40
codegen_flags: <defaults>
</compile_context>

<pallas_src>
import functools

import jax
import jax.numpy as jnp
from jax.experimental import pallas as pl
from jax.experimental.pallas import tpu as pltpu


@functools.lru_cache(maxsize=None)
def _vmem_limit_bytes():
    # v5e/v6e: 128 MiB physical -> 64 MiB scoped; v7x: 64 MiB -> 32 MiB.
    try:
        cap = pltpu.get_tpu_info().vmem_capacity_bytes
    except Exception:
        cap = 64 * 1024 * 1024
    return int(max(32 * 1024 * 1024, min(96 * 1024 * 1024, cap // 2)))


def _cparams(sem):
    return pltpu.CompilerParams(dimension_semantics=sem,
                                vmem_limit_bytes=_vmem_limit_bytes())


def _pick_tm(m, cap=256):
    """Largest row tile <= cap dividing m, multiple of 16 (bf16-safe sublane
    packing) and giving >= 2 grid steps when possible (v7x dual-TC)."""
    for t in range(min(cap, m // 2), 15, -1):
        if m % t == 0 and t % 16 == 0:
            return t
    return m


# ------------------------------ layernorm -------------------------------------

def _layernorm_kernel(x_ref, g_ref, b_ref, o_ref, *, eps):
    x = x_ref[...].astype(jnp.float32)
    mu = jnp.mean(x, axis=-1, keepdims=True)
    var = jnp.mean((x - mu) ** 2, axis=-1, keepdims=True)
    o_ref[...] = ((x - mu) * jax.lax.rsqrt(var + eps)
                  * g_ref[...] + b_ref[...]).astype(o_ref.dtype)


def layernorm(x, g, b, out_dtype, eps=1e-12):
    M, H = x.shape
    tm = _pick_tm(M)
    return pl.pallas_call(
        functools.partial(_layernorm_kernel, eps=eps),
        out_shape=jax.ShapeDtypeStruct((M, H), out_dtype),
        grid_spec=pltpu.PrefetchScalarGridSpec(
            num_scalar_prefetch=0,
            grid=(M // tm,),
            in_specs=[
                pl.BlockSpec((tm, H), lambda i: (i, 0)),
                pl.BlockSpec((1, H), lambda i: (0, 0)),
                pl.BlockSpec((1, H), lambda i: (0, 0)),
            ],
            out_specs=pl.BlockSpec((tm, H), lambda i: (i, 0)),
        ),
        compiler_params=_cparams(("parallel",)),
    )(x, g.reshape(1, H), b.reshape(1, H))


# ------------- fused attention block: QKV + attention + proj + res + LN -------

def _attn_block_kernel(h_ref, wqkv_ref, bqkv_ref, wo_ref, bo_ref, g_ref,
                       beta_ref, o_ref, *, nh, dh, scale, causal, eps):
    H = nh * dh
    S = h_ref.shape[0]
    h_in = h_ref[...]                                           # (S, H) bf16
    qkv = (jnp.dot(h_in, wqkv_ref[...], preferred_element_type=jnp.float32)
           + bqkv_ref[...]).astype(jnp.bfloat16)                # (S, 3H)

    if causal:
        # HF additive-mask semantics for the tril attention_mask; built ONCE
        # per block (hoisted out of the head loop).
        row = jax.lax.broadcasted_iota(jnp.int32, (S, S), 0)
        col = jax.lax.broadcasted_iota(jnp.int32, (S, S), 1)
        mask = jnp.where(col <= row, 0.0, -10000.0)

    ctx_parts = []
    for hh in range(nh):
        q = qkv[:, hh * dh:(hh + 1) * dh]
        k = qkv[:, H + hh * dh:H + (hh + 1) * dh]
        v = qkv[:, 2 * H + hh * dh:2 * H + (hh + 1) * dh]
        # q @ k^T without an explicit transpose (MXU contracts last dims).
        s = jax.lax.dot_general(q, k, (((1,), (1,)), ((), ())),
                                preferred_element_type=jnp.float32) * scale
        if causal:
            s = s + mask
        m = jnp.max(s, axis=-1, keepdims=True)
        e = jnp.exp(s - m)
        p = e * pl.reciprocal(jnp.sum(e, axis=-1, keepdims=True), approx=True)
        ctx_parts.append(jnp.dot(p.astype(jnp.bfloat16), v,
                                 preferred_element_type=jnp.float32))
    # Concatenate heads in-register -> one lane-dense operand for the output
    # projection (no per-head 64-lane stores).
    ctx = jnp.concatenate(ctx_parts, axis=-1).astype(jnp.bfloat16)  # (S, H)

    y = (jnp.dot(ctx, wo_ref[...], preferred_element_type=jnp.float32)
         + bo_ref[...] + h_in.astype(jnp.float32))
    mu = jnp.mean(y, axis=-1, keepdims=True)
    var = jnp.mean((y - mu) ** 2, axis=-1, keepdims=True)
    o_ref[...] = ((y - mu) * jax.lax.rsqrt(var + eps)
                  * g_ref[...] + beta_ref[...]).astype(o_ref.dtype)


def attention_block(h, wqkv, bqkv, wo, bo, g, beta, B, S, nh, dh, causal,
                    eps=1e-12):
    """LayerNorm(Attn(h) @ Wo + bo + h); grid over batch (parallel)."""
    H = nh * dh
    scale = 1.0 / (dh ** 0.5)
    return pl.pallas_call(
        functools.partial(_attn_block_kernel, nh=nh, dh=dh, scale=scale,
                          causal=causal, eps=eps),
        out_shape=jax.ShapeDtypeStruct((B * S, H), h.dtype),
        grid_spec=pltpu.PrefetchScalarGridSpec(
            num_scalar_prefetch=0,
            grid=(B,),
            in_specs=[
                pl.BlockSpec((S, H), lambda b: (b, 0)),
                pl.BlockSpec((H, 3 * H), lambda b: (0, 0)),
                pl.BlockSpec((1, 3 * H), lambda b: (0, 0)),
                pl.BlockSpec((H, H), lambda b: (0, 0)),
                pl.BlockSpec((1, H), lambda b: (0, 0)),
                pl.BlockSpec((1, H), lambda b: (0, 0)),
                pl.BlockSpec((1, H), lambda b: (0, 0)),
            ],
            out_specs=pl.BlockSpec((S, H), lambda b: (b, 0)),
        ),
        compiler_params=_cparams(("parallel",)),
    )(h, wqkv, bqkv.reshape(1, 3 * H), wo, bo.reshape(1, H),
      g.reshape(1, H), beta.reshape(1, H))


# --------------- fused FFN block: matmul + GELU + matmul + res + LN -----------

def _ffn_block_kernel(h_ref, wi_ref, bi_ref, wo_ref, bo_ref, g_ref, beta_ref,
                      o_ref, *, eps):
    h_in = h_ref[...]                                           # (tm, H) bf16
    y1 = (jnp.dot(h_in, wi_ref[...], preferred_element_type=jnp.float32)
          + bi_ref[...])
    # TODO(synk): HF BERT uses erf-GELU; tanh approximation used here.
    y1 = jax.nn.gelu(y1, approximate=True).astype(jnp.bfloat16)
    y = (jnp.dot(y1, wo_ref[...], preferred_element_type=jnp.float32)
         + bo_ref[...] + h_in.astype(jnp.float32))
    mu = jnp.mean(y, axis=-1, keepdims=True)
    var = jnp.mean((y - mu) ** 2, axis=-1, keepdims=True)
    o_ref[...] = ((y - mu) * jax.lax.rsqrt(var + eps)
                  * g_ref[...] + beta_ref[...]).astype(o_ref.dtype)


def ffn_block(h, wi, bi, wo, bo, g, beta, eps=1e-12):
    """LayerNorm(GELU(h @ Wi + bi) @ Wo + bo + h); rows tiled (parallel)."""
    M, H = h.shape
    F = wi.shape[1]
    tm = _pick_tm(M)
    return pl.pallas_call(
        functools.partial(_ffn_block_kernel, eps=eps),
        out_shape=jax.ShapeDtypeStruct((M, H), h.dtype),
        grid_spec=pltpu.PrefetchScalarGridSpec(
            num_scalar_prefetch=0,
            grid=(M // tm,),
            in_specs=[
                pl.BlockSpec((tm, H), lambda i: (i, 0)),
                pl.BlockSpec((H, F), lambda i: (0, 0)),
                pl.BlockSpec((1, F), lambda i: (0, 0)),
                pl.BlockSpec((F, H), lambda i: (0, 0)),
                pl.BlockSpec((1, H), lambda i: (0, 0)),
                pl.BlockSpec((1, H), lambda i: (0, 0)),
                pl.BlockSpec((1, H), lambda i: (0, 0)),
            ],
            out_specs=pl.BlockSpec((tm, H), lambda i: (i, 0)),
        ),
        compiler_params=_cparams(("parallel",)),
    )(h, wi, bi.reshape(1, F), wo, bo.reshape(1, H),
      g.reshape(1, H), beta.reshape(1, H))


# ---------------- classifier fused with CE / LSE (online logsumexp) -----------

def _cls_stats_kernel(x_ref, w_ref, b_ref, *rest, tn, V, with_label):
    if with_label:
        lab_ref, out_ref, stats_ref = rest
    else:
        out_ref, stats_ref = rest
    j = pl.program_id(1)

    @pl.when(j == 0)
    def _():
        init = stats_ref.shape[1:]
        stats_ref[0] = jnp.full(init, -jnp.inf, stats_ref.dtype)   # running max
        stats_ref[1] = jnp.zeros(init, stats_ref.dtype)            # running sum
        if with_label:
            stats_ref[2] = jnp.zeros(init, stats_ref.dtype)        # target logit

    z = (jnp.dot(x_ref[...], w_ref[...], preferred_element_type=jnp.float32)
         + b_ref[...])
    col = j * tn + jax.lax.broadcasted_iota(jnp.int32, z.shape, 1)
    z = jnp.where(col < V, z, -1e30)                 # mask vocab tail if any
    m_old = stats_ref[0]
    m_new = jnp.maximum(m_old, jnp.max(z, axis=-1, keepdims=True))
    stats_ref[1] = (stats_ref[1] * jnp.exp(m_old - m_new)
                    + jnp.sum(jnp.exp(z - m_new), axis=-1, keepdims=True))
    stats_ref[0] = m_new
    if with_label:
        stats_ref[2] = stats_ref[2] + jnp.sum(
            jnp.where(col == lab_ref[...], z, 0.0), axis=-1, keepdims=True)

    @pl.when(j == pl.num_programs(1) - 1)
    def _():
        lse = stats_ref[0] + jnp.log(stats_ref[1])
        if with_label:
            out_ref[...] = lse - stats_ref[2]        # per-row CE loss
        else:
            out_ref[...] = lse                       # per-row logsumexp


def classifier_stats(x, w, b, labels=None, tn=512):
    """Online-LSE over vocab tiles. labels given -> per-row CE; else LSE."""
    M, K = x.shape
    _, V = w.shape
    tn = min(tn, V)
    nj = pl.cdiv(V, tn)
    tm = _pick_tm(M)
    with_label = labels is not None
    in_specs = [
        pl.BlockSpec((tm, K), lambda i, j: (i, 0)),
        pl.BlockSpec((K, tn), lambda i, j: (0, j)),
        pl.BlockSpec((1, tn), lambda i, j: (0, j)),
    ]
    args = [x, w, b.reshape(1, V)]
    if with_label:
        in_specs.append(pl.BlockSpec((tm, 1), lambda i, j: (i, 0)))
        args.append(labels.reshape(M, 1).astype(jnp.int32))
    n_stats = 3 if with_label else 2
    return pl.pallas_call(
        functools.partial(_cls_stats_kernel, tn=tn, V=V, with_label=with_label),
        out_shape=jax.ShapeDtypeStruct((M, 1), jnp.float32),
        grid_spec=pltpu.PrefetchScalarGridSpec(
            num_scalar_prefetch=0,
            grid=(M // tm, nj),
            in_specs=in_specs,
            out_specs=pl.BlockSpec((tm, 1), lambda i, j: (i, 0)),
            scratch_shapes=[pltpu.VMEM((n_stats, tm, 1), jnp.float32)],
        ),
        compiler_params=_cparams(("parallel", "arbitrary")),
    )(*args)


def _cls_probs_kernel(x_ref, w_ref, b_ref, lse_ref, o_ref, *, tn, V):
    j = pl.program_id(1)
    z = (jnp.dot(x_ref[...], w_ref[...], preferred_element_type=jnp.float32)
         + b_ref[...])
    col = j * tn + jax.lax.broadcasted_iota(jnp.int32, z.shape, 1)
    z = jnp.where(col < V, z, -1e30)
    o_ref[...] = jnp.exp(z - lse_ref[...])


def classifier_probs(x, w, b, lse, tn=512):
    """softmax(x @ w + b) given precomputed per-row logsumexp; vocab tiled."""
    M, K = x.shape
    _, V = w.shape
    tn = min(tn, V)
    nj = pl.cdiv(V, tn)
    tm = _pick_tm(M)
    return pl.pallas_call(
        functools.partial(_cls_probs_kernel, tn=tn, V=V),
        out_shape=jax.ShapeDtypeStruct((M, V), jnp.float32),
        grid_spec=pltpu.PrefetchScalarGridSpec(
            num_scalar_prefetch=0,
            grid=(M // tm, nj),
            in_specs=[
                pl.BlockSpec((tm, K), lambda i, j: (i, 0)),
                pl.BlockSpec((K, tn), lambda i, j: (0, j)),
                pl.BlockSpec((1, tn), lambda i, j: (0, j)),
                pl.BlockSpec((tm, 1), lambda i, j: (i, 0)),
            ],
            out_specs=pl.BlockSpec((tm, tn), lambda i, j: (i, j)),
        ),
        compiler_params=_cparams(("parallel", "parallel")),
    )(x, w, b.reshape(1, V), lse)


# ------------------------------ model (glue) ----------------------------------

CONFIG = dict(
    vocab_size=512,      # scaled-down stand-in for 21128
    hidden=128,          # scaled-down stand-in for 768
    num_layers=2,
    num_heads=2,
    head_dim=64,
    ff_dim=256,
    max_pos=32,
    seq_len=16,
    batch=2,
)


def init_params(key, cfg):
    H, V, F = cfg["hidden"], cfg["vocab_size"], cfg["ff_dim"]
    keys = iter(jax.random.split(key, 32))
    std = 0.02

    def dense(k, fan_in, fan_out):
        w = jax.random.normal(k, (fan_in, fan_out), jnp.float32) * std
        return w.astype(jnp.bfloat16), jnp.zeros((fan_out,), jnp.float32)

    params = {
        "word_emb": jax.random.normal(next(keys), (V, H), jnp.float32) * std,
        "pos_emb": jax.random.normal(next(keys), (cfg["max_pos"], H),
                                     jnp.float32) * std,
        "type_emb": jax.random.normal(next(keys), (2, H), jnp.float32) * std,
        "emb_ln_g": jnp.ones((H,), jnp.float32),
        "emb_ln_b": jnp.zeros((H,), jnp.float32),
        "layers": [],
    }
    for _ in range(cfg["num_layers"]):
        qkv_w, qkv_b = dense(next(keys), H, 3 * H)   # fused Q/K/V projection
        ao_w, ao_b = dense(next(keys), H, H)
        i_w, i_b = dense(next(keys), H, F)
        o_w, o_b = dense(next(keys), F, H)
        params["layers"].append({
            "qkv_w": qkv_w, "qkv_b": qkv_b,
            "ao_w": ao_w, "ao_b": ao_b,
            "ln1_g": jnp.ones((H,), jnp.float32),
            "ln1_b": jnp.zeros((H,), jnp.float32),
            "i_w": i_w, "i_b": i_b, "o_w": o_w, "o_b": o_b,
            "ln2_g": jnp.ones((H,), jnp.float32),
            "ln2_b": jnp.zeros((H,), jnp.float32),
        })
    params["cls_w"], params["cls_b"] = dense(next(keys), H, V)
    return params


def bert_encoder(params, x_ids, cfg, causal):
    B, S = x_ids.shape
    H, nh, dh = cfg["hidden"], cfg["num_heads"], cfg["head_dim"]

    # Embedding gather + adds stay in XLA (token gather has no clean Pallas
    # equivalent worth a kernel at these sizes); LN kernel emits bf16.
    emb = (jnp.take(params["word_emb"], x_ids, axis=0)
           + params["pos_emb"][None, :S, :]
           + params["type_emb"][0][None, None, :])
    h = layernorm(emb.reshape(B * S, H), params["emb_ln_g"],
                  params["emb_ln_b"], out_dtype=jnp.bfloat16)
    # TODO(synk): dropout omitted (eval-mode identity).

    for lp in params["layers"]:
        h = attention_block(h, lp["qkv_w"], lp["qkv_b"], lp["ao_w"], lp["ao_b"],
                            lp["ln1_g"], lp["ln1_b"], B, S, nh, dh, causal)
        h = ffn_block(h, lp["i_w"], lp["i_b"], lp["o_w"], lp["o_b"],
                      lp["ln2_g"], lp["ln2_b"])
    return h  # (B*S, H); BertModel's pooled output is unused by TorchModel


def forward(params, x_ids, y=None, cfg=CONFIG):
    B, S = x_ids.shape
    V = cfg["vocab_size"]
    # Training path uses the tril attention mask, inference path no mask
    # (matches the PyTorch forward).
    seq = bert_encoder(params, x_ids, cfg, causal=(y is not None))
    if y is not None:
        per_row = classifier_stats(seq, params["cls_w"], params["cls_b"],
                                   labels=y.reshape(-1))
        return jnp.mean(per_row)                               # scalar CE
    lse = classifier_stats(seq, params["cls_w"], params["cls_b"])
    probs = classifier_probs(seq, params["cls_w"], params["cls_b"], lse)
    return probs.reshape(B, S, V)


# --------------------------------- main ----------------------------------------

if __name__ == "__main__":
    key = jax.random.PRNGKey(0)
    k_param, k_x, k_y = jax.random.split(key, 3)

    params = init_params(k_param, CONFIG)
    B, S, V = CONFIG["batch"], CONFIG["seq_len"], CONFIG["vocab_size"]

    x = jax.random.randint(k_x, (B, S), 0, V, dtype=jnp.int32)
    y = jax.random.randint(k_y, (B, S), 0, V, dtype=jnp.int32)

    loss_fn = jax.jit(lambda p, a, b_: forward(p, a, b_))
    probs_fn = jax.jit(lambda p, a: forward(p, a))

    loss = loss_fn(params, x, y)          # training path: scalar CE loss
    probs = probs_fn(params, x)           # inference path: softmax probs
    jax.block_until_ready((loss, probs))

    assert loss.shape == ()
    assert probs.shape == (B, S, V)
    assert bool(jnp.isfinite(loss))
    print("KERNEL_OK")
</pallas_src>

<mosaic_0001>
module attributes {stable_mosaic.version = 11 : i64} {
  func.func @_layernorm_kernel(%arg0: i32, %arg1: memref<16x128xf32, #tpu.memory_space<vmem>>, %arg2: memref<1x128xf32, #tpu.memory_space<vmem>>, %arg3: memref<1x128xf32, #tpu.memory_space<vmem>>, %arg4: memref<16x128xbf16, #tpu.memory_space<vmem>>) attributes {dimension_semantics = [#tpu.dimension_semantics<parallel>], iteration_bounds = array<i64: 2>, scalar_prefetch = 0 : i64, scratch_operands = 0 : i64, tpu.core_type = #tpu.core_type<tc>, window_params = [{transform_indices = @transform_0, window_bounds = array<i64: 16, 128>}, {pipeline_mode = #tpu.pipeline_mode<synchronous>, transform_indices = @transform_1, window_bounds = array<i64: 1, 128>}, {pipeline_mode = #tpu.pipeline_mode<synchronous>, transform_indices = @transform_2, window_bounds = array<i64: 1, 128>}, {transform_indices = @transform_3, window_bounds = array<i64: 16, 128>}]} {
    %c0 = arith.constant 0 : index
    %c0_0 = arith.constant 0 : index
    %0 = vector.load %arg1[%c0, %c0_0] : memref<16x128xf32, #tpu.memory_space<vmem>>, vector<16x128xf32>
    %cst = arith.constant dense<0.000000e+00> : vector<16xf32>
    %1 = vector.multi_reduction <add>, %0, %cst [1] : vector<16x128xf32> to vector<16xf32>
    %2 = vector.shape_cast %1 : vector<16xf32> to vector<16x1xf32>
    %cst_1 = arith.constant 1.280000e+02 : f32
    %3 = vector.broadcast %cst_1 : f32 to vector<16x1xf32>
    %4 = arith.divf %2, %3 : vector<16x1xf32>
    %5 = vector.broadcast %4 : vector<16x1xf32> to vector<16x128xf32>
    %6 = arith.subf %0, %5 : vector<16x128xf32>
    %7 = arith.mulf %6, %6 : vector<16x128xf32>
    %cst_2 = arith.constant dense<0.000000e+00> : vector<16xf32>
    %8 = vector.multi_reduction <add>, %7, %cst_2 [1] : vector<16x128xf32> to vector<16xf32>
    %9 = vector.shape_cast %8 : vector<16xf32> to vector<16x1xf32>
    %cst_3 = arith.constant 1.280000e+02 : f32
    %10 = vector.broadcast %cst_3 : f32 to vector<16x1xf32>
    %11 = arith.divf %9, %10 : vector<16x1xf32>
    %12 = vector.broadcast %4 : vector<16x1xf32> to vector<16x128xf32>
    %13 = arith.subf %0, %12 : vector<16x128xf32>
    %cst_4 = arith.constant 9.99999996E-13 : f32
    %14 = vector.broadcast %cst_4 : f32 to vector<16x1xf32>
    %15 = arith.addf %11, %14 : vector<16x1xf32>
    %16 = math.rsqrt %15 : vector<16x1xf32>
    %17 = vector.broadcast %16 : vector<16x1xf32> to vector<16x128xf32>
    %18 = arith.mulf %13, %17 : vector<16x128xf32>
    %c0_5 = arith.constant 0 : index
    %c0_6 = arith.constant 0 : index
    %19 = vector.load %arg2[%c0_5, %c0_6] : memref<1x128xf32, #tpu.memory_space<vmem>>, vector<1x128xf32>
    %20 = vector.broadcast %19 : vector<1x128xf32> to vector<16x128xf32>
    %21 = arith.mulf %18, %20 : vector<16x128xf32>
    %c0_7 = arith.constant 0 : index
    %c0_8 = arith.constant 0 : index
    %22 = vector.load %arg3[%c0_7, %c0_8] : memref<1x128xf32, #tpu.memory_space<vmem>>, vector<1x128xf32>
    %23 = vector.broadcast %22 : vector<1x128xf32> to vector<16x128xf32>
    %24 = arith.addf %21, %23 : vector<16x128xf32>
    %25 = arith.truncf %24 : vector<16x128xf32> to vector<16x128xbf16>
    %c0_9 = arith.constant 0 : index
    %c0_10 = arith.constant 0 : index
    %26 = vector.load %arg4[%c0_9, %c0_10] : memref<16x128xbf16, #tpu.memory_space<vmem>>, vector<16x128xbf16>
    tpu.vector_store %arg4[%c0_9, %c0_10], %25 {strides = array<i32>} : memref<16x128xbf16, #tpu.memory_space<vmem>>, vector<16x128xbf16>,
    return
  }
  func.func @transform_0(%arg0: i32) -> (i32, i32) {
    %c0_i32 = arith.constant 0 : i32
    %c0_i32_0 = arith.constant 0 : i32
    return %arg0, %c0_i32 : i32, i32
  }
  func.func @transform_1(%arg0: i32) -> (i32, i32) {
    %c0_i32 = arith.constant 0 : i32
    %c0_i32_0 = arith.constant 0 : i32
    %c0_i32_1 = arith.constant 0 : i32
    return %c0_i32, %c0_i32_0 : i32, i32
  }
  func.func @transform_2(%arg0: i32) -> (i32, i32) {
    %c0_i32 = arith.constant 0 : i32
    %c0_i32_0 = arith.constant 0 : i32
    %c0_i32_1 = arith.constant 0 : i32
    return %c0_i32, %c0_i32_0 : i32, i32
  }
  func.func @transform_3(%arg0: i32) -> (i32, i32) {
    %c0_i32 = arith.constant 0 : i32
    %c0_i32_0 = arith.constant 0 : i32
    return %arg0, %c0_i32 : i32, i32
  }
}

module attributes {stable_mosaic.version = 11 : i64} {
  func.func @_ffn_block_kernel(%arg0: i32, %arg1: memref<16x128xbf16, #tpu.memory_space<vmem>>, %arg2: memref<128x256xbf16, #tpu.memory_space<vmem>>, %arg3: memref<1x256xf32, #tpu.memory_space<vmem>>, %arg4: memref<256x128xbf16, #tpu.memory_space<vmem>>, %arg5: memref<1x128xf32, #tpu.memory_space<vmem>>, %arg6: memref<1x128xf32, #tpu.memory_space<vmem>>, %arg7: memref<1x128xf32, #tpu.memory_space<vmem>>, %arg8: memref<16x128xbf16, #tpu.memory_space<vmem>>) attributes {dimension_semantics = [#tpu.dimension_semantics<parallel>], iteration_bounds = array<i64: 2>, scalar_prefetch = 0 : i64, scratch_operands = 0 : i64, tpu.core_type = #tpu.core_type<tc>, window_params = [{transform_indices = @transform_0, window_bounds = array<i64: 16, 128>}, {pipeline_mode = #tpu.pipeline_mode<synchronous>, transform_indices = @transform_1, window_bounds = array<i64: 128, 256>}, {pipeline_mode = #tpu.pipeline_mode<synchronous>, transform_indices = @transform_2, window_bounds = array<i64: 1, 256>}, {pipeline_mode = #tpu.pipeline_mode<synchronous>, transform_indices = @transform_3, window_bounds = array<i64: 256, 128>}, {pipeline_mode = #tpu.pipeline_mode<synchronous>, transform_indices = @transform_4, window_bounds = array<i64: 1, 128>}, {pipeline_mode = #tpu.pipeline_mode<synchronous>, transform_indices = @transform_5, window_bounds = array<i64: 1, 128>}, {pipeline_mode = #tpu.pipeline_mode<synchronous>, transform_indices = @transform_6, window_bounds = array<i64: 1, 128>}, {transform_indices = @transform_7, window_bounds = array<i64: 16, 128>}]} {
    %c0 = arith.constant 0 : index
    %c0_0 = arith.constant 0 : index
    %0 = vector.load %arg1[%c0, %c0_0] : memref<16x128xbf16, #tpu.memory_space<vmem>>, vector<16x128xbf16>
    %c0_1 = arith.constant 0 : index
    %c0_2 = arith.constant 0 : index
    %1 = vector.load %arg2[%c0_1, %c0_2] : memref<128x256xbf16, #tpu.memory_space<vmem>>, vector<128x256xbf16>
    %cst = arith.constant dense<0.000000e+00> : vector<16x256xf32>
    %2 = tpu.matmul %0, %1, %cst {dimension_numbers = #tpu.dot_dimension_numbers<[1], [0], [0], [1], [0, 0, 1, 1], [], []>} : vector<16x128xbf16>, vector<128x256xbf16>, vector<16x256xf32> -> vector<16x256xf32>
    %c0_3 = arith.constant 0 : index
    %c0_4 = arith.constant 0 : index
    %3 = vector.load %arg3[%c0_3, %c0_4] : memref<1x256xf32, #tpu.memory_space<vmem>>, vector<1x256xf32>
    %4 = vector.broadcast %3 : vector<1x256xf32> to vector<16x256xf32>
    %5 = arith.addf %2, %4 : vector<16x256xf32>
    %6 = arith.mulf %5, %5 : vector<16x256xf32>
    %7 = arith.mulf %5, %6 : vector<16x256xf32>
    %cst_5 = arith.constant 4.471500e-02 : f32
    %8 = vector.broadcast %cst_5 : f32 to vector<16x256xf32>
    %9 = arith.mulf %8, %7 : vector<16x256xf32>
    %10 = arith.addf %5, %9 : vector<16x256xf32>
    %cst_6 = arith.constant 0.797884583 : f32
    %11 = vector.broadcast %cst_6 : f32 to vector<16x256xf32>
    %12 = arith.mulf %11, %10 : vector<16x256xf32>
    %13 = math.tanh %12 : vector<16x256xf32>
    %cst_7 = arith.constant 1.000000e+00 : f32
    %14 = vector.broadcast %cst_7 : f32 to vector<16x256xf32>
    %15 = arith.addf %14, %13 : vector<16x256xf32>
    %cst_8 = arith.constant 5.000000e-01 : f32
    %16 = vector.broadcast %cst_8 : f32 to vector<16x256xf32>
    %17 = arith.mulf %16, %15 : vector<16x256xf32>
    %18 = arith.mulf %5, %17 : vector<16x256xf32>
    %19 = arith.truncf %18 : vector<16x256xf32> to vector<16x256xbf16>
    %c0_9 = arith.constant 0 : index
    %c0_10 = arith.constant 0 : index
    %20 = vector.load %arg4[%c0_9, %c0_10] : memref<256x128xbf16, #tpu.memory_space<vmem>>, vector<256x128xbf16>
    %cst_11 = arith.constant dense<0.000000e+00> : vector<16x128xf32>
    %21 = tpu.matmul %19, %20, %cst_11 {dimension_numbers = #tpu.dot_dimension_numbers<[1], [0], [0], [1], [0, 0, 1, 1], [], []>} : vector<16x256xbf16>, vector<256x128xbf16>, vector<16x128xf32> -> vector<16x128xf32>
    %c0_12 = arith.constant 0 : index
    %c0_13 = arith.constant 0 : index
    %22 = vector.load %arg5[%c0_12, %c0_13] : memref<1x128xf32, #tpu.memory_space<vmem>>, vector<1x128xf32>
    %23 = vector.broadcast %22 : vector<1x128xf32> to vector<16x128xf32>
    %24 = arith.addf %21, %23 : vector<16x128xf32>
    %25 = arith.extf %0 : vector<16x128xbf16> to vector<16x128xf32>
    %26 = arith.addf %24, %25 : vector<16x128xf32>
    %cst_14 = arith.constant dense<0.000000e+00> : vector<16xf32>
    %27 = vector.multi_reduction <add>, %26, %cst_14 [1] : vector<16x128xf32> to vector<16xf32>
    %28 = vector.shape_cast %27 : vector<16xf32> to vector<16x1xf32>
    %cst_15 = arith.constant 1.280000e+02 : f32
    %29 = vector.broadcast %cst_15 : f32 to vector<16x1xf32>
    %30 = arith.divf %28, %29 : vector<16x1xf32>
    %31 = vector.broadcast %30 : vector<16x1xf32> to vector<16x128xf32>
    %32 = arith.subf %26, %31 : vector<16x128xf32>
    %33 = arith.mulf %32, %32 : vector<16x128xf32>
    %cst_16 = arith.constant dense<0.000000e+00> : vector<16xf32>
    %34 = vector.multi_reduction <add>, %33, %cst_16 [1] : vector<16x128xf32> to vector<16xf32>
    %35 = vector.shape_cast %34 : vector<16xf32> to vector<16x1xf32>
    %cst_17 = arith.constant 1.280000e+02 : f32
    %36 = vector.broadcast %cst_17 : f32 to vector<16x1xf32>
    %37 = arith.divf %35, %36 : vector<16x1xf32>
    %38 = vector.broadcast %30 : vector<16x1xf32> to vector<16x128xf32>
    %39 = arith.subf %26, %38 : vector<16x128xf32>
    %cst_18 = arith.constant 9.99999996E-13 : f32
    %40 = vector.broadcast %cst_18 : f32 to vector<16x1xf32>
    %41 = arith.addf %37, %40 : vector<16x1xf32>
    %42 = math.rsqrt %41 : vector<16x1xf32>
    %43 = vector.broadcast %42 : vector<16x1xf32> to vector<16x128xf32>
    %44 = arith.mulf %39, %43 : vector<16x128xf32>
    %c0_19 = arith.constant 0 : index
    %c0_20 = arith.constant 0 : index
    %45 = vector.load %arg6[%c0_19, %c0_20] : memref<1x128xf32, #tpu.memory_space<vmem>>, vector<1x128xf32>
    %46 = vector.broadcast %45 : vector<1x128xf32> to vector<16x128xf32>
    %47 = arith.mulf %44, %46 : vector<16x128xf32>
    %c0_21 = arith.constant 0 : index
    %c0_22 = arith.constant 0 : index
    %48 = vector.load %arg7[%c0_21, %c0_22] : memref<1x128xf32, #tpu.memory_space<vmem>>, vector<1x128xf32>
    %49 = vector.broadcast %48 : vector<1x128xf32> to vector<16x128xf32>
    %50 = arith.addf %47, %49 : vector<16x128xf32>
    %51 = arith.truncf %50 : vector<16x128xf32> to vector<16x128xbf16>
    %c0_23 = arith.constant 0 : index
    %c0_24 = arith.constant 0 : index
    %52 = vector.load %arg8[%c0_23, %c0_24] : memref<16x128xbf16, #tpu.memory_space<vmem>>, vector<16x128xbf16>
    tpu.vector_store %arg8[%c0_23, %c0_24], %51 {strides = array<i32>} : memref<16x128xbf16, #tpu.memory_space<vmem>>, vector<16x128xbf16>,
    return
  }
  func.func @transform_0(%arg0: i32) -> (i32, i32) {
    %c0_i32 = arith.constant 0 : i32
    %c0_i32_0 = arith.constant 0 : i32
    return %arg0, %c0_i32 : i32, i32
  }
  func.func @transform_1(%arg0: i32) -> (i32, i32) {
    %c0_i32 = arith.constant 0 : i32
    %c0_i32_0 = arith.constant 0 : i32
    %c0_i32_1 = arith.constant 0 : i32
    return %c0_i32, %c0_i32_0 : i32, i32
  }
  func.func @transform_2(%arg0: i32) -> (i32, i32) {
    %c0_i32 = arith.constant 0 : i32
    %c0_i32_0 = arith.constant 0 : i32
    %c0_i32_1 = arith.constant 0 : i32
    return %c0_i32, %c0_i32_0 : i32, i32
  }
  func.func @transform_3(%arg0: i32) -> (i32, i32) {
    %c0_i32 = arith.constant 0 : i32
    %c0_i32_0 = arith.constant 0 : i32
    %c0_i32_1 = arith.constant 0 : i32
    return %c0_i32, %c0_i32_0 : i32, i32
  }
  func.func @transform_4(%arg0: i32) -> (i32, i32) {
    %c0_i32 = arith.constant 0 : i32
    %c0_i32_0 = arith.constant 0 : i32
    %c0_i32_1 = arith.constant 0 : i32
    return %c0_i32, %c0_i32_0 : i32, i32
  }
  func.func @transform_5(%arg0: i32) -> (i32, i32) {
    %c0_i32 = arith.constant 0 : i32
    %c0_i32_0 = arith.constant 0 : i32
    %c0_i32_1 = arith.constant 0 : i32
    return %c0_i32, %c0_i32_0 : i32, i32
  }
  func.func @transform_6(%arg0: i32) -> (i32, i32) {
    %c0_i32 = arith.constant 0 : i32
    %c0_i32_0 = arith.constant 0 : i32
    %c0_i32_1 = arith.constant 0 : i32
    return %c0_i32, %c0_i32_0 : i32, i32
  }
  func.func @transform_7(%arg0: i32) -> (i32, i32) {
    %c0_i32 = arith.constant 0 : i32
    %c0_i32_0 = arith.constant 0 : i32
    return %arg0, %c0_i32 : i32, i32
  }
}

module attributes {stable_mosaic.version = 11 : i64} {
  func.func @_attn_block_kernel(%arg0: i32, %arg1: memref<16x128xbf16, #tpu.memory_space<vmem>>, %arg2: memref<128x384xbf16, #tpu.memory_space<vmem>>, %arg3: memref<1x384xf32, #tpu.memory_space<vmem>>, %arg4: memref<128x128xbf16, #tpu.memory_space<vmem>>, %arg5: memref<1x128xf32, #tpu.memory_space<vmem>>, %arg6: memref<1x128xf32, #tpu.memory_space<vmem>>, %arg7: memref<1x128xf32, #tpu.memory_space<vmem>>, %arg8: memref<16x128xbf16, #tpu.memory_space<vmem>>) attributes {dimension_semantics = [#tpu.dimension_semantics<parallel>], iteration_bounds = array<i64: 2>, scalar_prefetch = 0 : i64, scratch_operands = 0 : i64, tpu.core_type = #tpu.core_type<tc>, window_params = [{transform_indices = @transform_0, window_bounds = array<i64: 16, 128>}, {pipeline_mode = #tpu.pipeline_mode<synchronous>, transform_indices = @transform_1, window_bounds = array<i64: 128, 384>}, {pipeline_mode = #tpu.pipeline_mode<synchronous>, transform_indices = @transform_2, window_bounds = array<i64: 1, 384>}, {pipeline_mode = #tpu.pipeline_mode<synchronous>, transform_indices = @transform_3, window_bounds = array<i64: 128, 128>}, {pipeline_mode = #tpu.pipeline_mode<synchronous>, transform_indices = @transform_4, window_bounds = array<i64: 1, 128>}, {pipeline_mode = #tpu.pipeline_mode<synchronous>, transform_indices = @transform_5, window_bounds = array<i64: 1, 128>}, {pipeline_mode = #tpu.pipeline_mode<synchronous>, transform_indices = @transform_6, window_bounds = array<i64: 1, 128>}, {transform_indices = @transform_7, window_bounds = array<i64: 16, 128>}]} {
    %c0 = arith.constant 0 : index
    %c0_0 = arith.constant 0 : index
    %0 = vector.load %arg1[%c0, %c0_0] : memref<16x128xbf16, #tpu.memory_space<vmem>>, vector<16x128xbf16>
    %c0_1 = arith.constant 0 : index
    %c0_2 = arith.constant 0 : index
    %1 = vector.load %arg2[%c0_1, %c0_2] : memref<128x384xbf16, #tpu.memory_space<vmem>>, vector<128x384xbf16>
    %cst = arith.constant dense<0.000000e+00> : vector<16x384xf32>
    %2 = tpu.matmul %0, %1, %cst {dimension_numbers = #tpu.dot_dimension_numbers<[1], [0], [0], [1], [0, 0, 1, 1], [], []>} : vector<16x128xbf16>, vector<128x384xbf16>, vector<16x384xf32> -> vector<16x384xf32>
    %c0_3 = arith.constant 0 : index
    %c0_4 = arith.constant 0 : index
    %3 = vector.load %arg3[%c0_3, %c0_4] : memref<1x384xf32, #tpu.memory_space<vmem>>, vector<1x384xf32>
    %4 = vector.broadcast %3 : vector<1x384xf32> to vector<16x384xf32>
    %5 = arith.addf %2, %4 : vector<16x384xf32>
    %6 = arith.truncf %5 : vector<16x384xf32> to vector<16x384xbf16>
    %7 = tpu.iota {dimensions = array<i32: 0>} : vector<16x16xi32>
    %8 = tpu.iota {dimensions = array<i32: 1>} : vector<16x16xi32>
    %9 = arith.cmpi sle, %8, %7 : vector<16x16xi32>
    %cst_5 = arith.constant 0.000000e+00 : f32
    %cst_6 = arith.constant -1.000000e+04 : f32
    %10 = vector.broadcast %cst_5 : f32 to vector<16x16xf32>
    %11 = vector.broadcast %cst_6 : f32 to vector<16x16xf32>
    %12 = arith.select %9, %10, %11 : vector<16x16xi1>, vector<16x16xf32>
    %13 = vector.extract_strided_slice %6 {offsets = [0, 0], sizes = [16, 64], strides = [1, 1]} : vector<16x384xbf16> to vector<16x64xbf16>
    %14 = vector.extract_strided_slice %6 {offsets = [0, 128], sizes = [16, 64], strides = [1, 1]} : vector<16x384xbf16> to vector<16x64xbf16>
    %15 = vector.extract_strided_slice %6 {offsets = [0, 256], sizes = [16, 64], strides = [1, 1]} : vector<16x384xbf16> to vector<16x64xbf16>
    %cst_7 = arith.constant dense<0.000000e+00> : vector<16x16xf32>
    %16 = tpu.matmul %13, %14, %cst_7 {dimension_numbers = #tpu.dot_dimension_numbers<[1], [1], [0], [0], [0, 0, 1, 0], [], []>} : vector<16x64xbf16>, vector<16x64xbf16>, vector<16x16xf32> -> vector<16x16xf32>
    %cst_8 = arith.constant 1.250000e-01 : f32
    %17 = vector.broadcast %cst_8 : f32 to vector<16x16xf32>
    %18 = arith.mulf %16, %17 : vector<16x16xf32>
    %19 = arith.addf %18, %12 : vector<16x16xf32>
    %cst_9 = arith.constant dense<0xFF800000> : vector<16xf32>
    %20 = vector.multi_reduction <maximumf>, %19, %cst_9 [1] : vector<16x16xf32> to vector<16xf32>
    %21 = vector.shape_cast %20 : vector<16xf32> to vector<16x1xf32>
    %22 = vector.broadcast %21 : vector<16x1xf32> to vector<16x16xf32>
    %23 = arith.subf %19, %22 : vector<16x16xf32>
    %24 = math.exp %23 : vector<16x16xf32>
    %cst_10 = arith.constant dense<0.000000e+00> : vector<16xf32>
    %25 = vector.multi_reduction <add>, %24, %cst_10 [1] : vector<16x16xf32> to vector<16xf32>
    %26 = vector.shape_cast %25 : vector<16xf32> to vector<16x1xf32>
    %27 = tpu.reciprocal %26 {approx = true} : vector<16x1xf32> -> vector<16x1xf32>
    %28 = vector.broadcast %27 : vector<16x1xf32> to vector<16x16xf32>
    %29 = arith.mulf %24, %28 : vector<16x16xf32>
    %30 = arith.truncf %29 : vector<16x16xf32> to vector<16x16xbf16>
    %cst_11 = arith.constant dense<0.000000e+00> : vector<16x64xf32>
    %31 = tpu.matmul %30, %15, %cst_11 {dimension_numbers = #tpu.dot_dimension_numbers<[1], [0], [0], [1], [0, 0, 1, 1], [], []>} : vector<16x16xbf16>, vector<16x64xbf16>, vector<16x64xf32> -> vector<16x64xf32>
    %32 = vector.extract_strided_slice %6 {offsets = [0, 64], sizes = [16, 64], strides = [1, 1]} : vector<16x384xbf16> to vector<16x64xbf16>
    %33 = vector.extract_strided_slice %6 {offsets = [0, 192], sizes = [16, 64], strides = [1, 1]} : vector<16x384xbf16> to vector<16x64xbf16>
    %34 = vector.extract_strided_slice %6 {offsets = [0, 320], sizes = [16, 64], strides = [1, 1]} : vector<16x384xbf16> to vector<16x64xbf16>
    %cst_12 = arith.constant dense<0.000000e+00> : vector<16x16xf32>
    %35 = tpu.matmul %32, %33, %cst_12 {dimension_numbers = #tpu.dot_dimension_numbers<[1], [1], [0], [0], [0, 0, 1, 0], [], []>} : vector<16x64xbf16>, vector<16x64xbf16>, vector<16x16xf32> -> vector<16x16xf32>
    %cst_13 = arith.constant 1.250000e-01 : f32
    %36 = vector.broadcast %cst_13 : f32 to vector<16x16xf32>
    %37 = arith.mulf %35, %36 : vector<16x16xf32>
    %38 = arith.addf %37, %12 : vector<16x16xf32>
    %cst_14 = arith.constant dense<0xFF800000> : vector<16xf32>
    %39 = vector.multi_reduction <maximumf>, %38, %cst_14 [1] : vector<16x16xf32> to vector<16xf32>
    %40 = vector.shape_cast %39 : vector<16xf32> to vector<16x1xf32>
    %41 = vector.broadcast %40 : vector<16x1xf32> to vector<16x16xf32>
    %42 = arith.subf %38, %41 : vector<16x16xf32>
    %43 = math.exp %42 : vector<16x16xf32>
    %cst_15 = arith.constant dense<0.000000e+00> : vector<16xf32>
    %44 = vector.multi_reduction <add>, %43, %cst_15 [1] : vector<16x16xf32> to vector<16xf32>
    %45 = vector.shape_cast %44 : vector<16xf32> to vector<16x1xf32>
    %46 = tpu.reciprocal %45 {approx = true} : vector<16x1xf32> -> vector<16x1xf32>
    %47 = vector.broadcast %46 : vector<16x1xf32> to vector<16x16xf32>
    %48 = arith.mulf %43, %47 : vector<16x16xf32>
    %49 = arith.truncf %48 : vector<16x16xf32> to vector<16x16xbf16>
    %cst_16 = arith.constant dense<0.000000e+00> : vector<16x64xf32>
    %50 = tpu.matmul %49, %34, %cst_16 {dimension_numbers = #tpu.dot_dimension_numbers<[1], [0], [0], [1], [0, 0, 1, 1], [], []>} : vector<16x16xbf16>, vector<16x64xbf16>, vector<16x64xf32> -> vector<16x64xf32>
    %51 = tpu.concatenate %31, %50 in 1 : vector<16x64xf32>, vector<16x64xf32> -> vector<16x128xf32>
    %52 = arith.truncf %51 : vector<16x128xf32> to vector<16x128xbf16>
    %c0_17 = arith.constant 0 : index
    %c0_18 = arith.constant 0 : index
    %53 = vector.load %arg4[%c0_17, %c0_18] : memref<128x128xbf16, #tpu.memory_space<vmem>>, vector<128x128xbf16>
    %cst_19 = arith.constant dense<0.000000e+00> : vector<16x128xf32>
    %54 = tpu.matmul %52, %53, %cst_19 {dimension_numbers = #tpu.dot_dimension_numbers<[1], [0], [0], [1], [0, 0, 1, 1], [], []>} : vector<16x128xbf16>, vector<128x128xbf16>, vector<16x128xf32> -> vector<16x128xf32>
    %c0_20 = arith.constant 0 : index
    %c0_21 = arith.constant 0 : index
    %55 = vector.load %arg5[%c0_20, %c0_21] : memref<1x128xf32, #tpu.memory_space<vmem>>, vector<1x128xf32>
    %56 = vector.broadcast %55 : vector<1x128xf32> to vector<16x128xf32>
    %57 = arith.addf %54, %56 : vector<16x128xf32>
    %58 = arith.extf %0 : vector<16x128xbf16> to vector<16x128xf32>
    %59 = arith.addf %57, %58 : vector<16x128xf32>
    %cst_22 = arith.constant dense<0.000000e+00> : vector<16xf32>
    %60 = vector.multi_reduction <add>, %59, %cst_22 [1] : vector<16x128xf32> to vector<16xf32>
    %61 = vector.shape_cast %60 : vector<16xf32> to vector<16x1xf32>
    %cst_23 = arith.constant 1.280000e+02 : f32
    %62 = vector.broadcast %cst_23 : f32 to vector<16x1xf32>
    %63 = arith.divf %61, %62 : vector<16x1xf32>
    %64 = vector.broadcast %63 : vector<16x1xf32> to vector<16x128xf32>
    %65 = arith.subf %59, %64 : vector<16x128xf32>
    %66 = arith.mulf %65, %65 : vector<16x128xf32>
    %cst_24 = arith.constant dense<0.000000e+00> : vector<16xf32>
    %67 = vector.multi_reduction <add>, %66, %cst_24 [1] : vector<16x128xf32> to vector<16xf32>
    %68 = vector.shape_cast %67 : vector<16xf32> to vector<16x1xf32>
    %cst_25 = arith.constant 1.280000e+02 : f32
    %69 = vector.broadcast %cst_25 : f32 to vector<16x1xf32>
    %70 = arith.divf %68, %69 : vector<16x1xf32>
    %71 = vector.broadcast %63 : vector<16x1xf32> to vector<16x128xf32>
    %72 = arith.subf %59, %71 : vector<16x128xf32>
    %cst_26 = arith.constant 9.99999996E-13 : f32
    %73 = vector.broadcast %cst_26 : f32 to vector<16x1xf32>
    %74 = arith.addf %70, %73 : vector<16x1xf32>
    %75 = math.rsqrt %74 : vector<16x1xf32>
    %76 = vector.broadcast %75 : vector<16x1xf32> to vector<16x128xf32>
    %77 = arith.mulf %72, %76 : vector<16x128xf32>
    %c0_27 = arith.constant 0 : index
    %c0_28 = arith.constant 0 : index
    %78 = vector.load %arg6[%c0_27, %c0_28] : memref<1x128xf32, #tpu.memory_space<vmem>>, vector<1x128xf32>
    %79 = vector.broadcast %78 : vector<1x128xf32> to vector<16x128xf32>
    %80 = arith.mulf %77, %79 : vector<16x128xf32>
    %c0_29 = arith.constant 0 : index
    %c0_30 = arith.constant 0 : index
    %81 = vector.load %arg7[%c0_29, %c0_30] : memref<1x128xf32, #tpu.memory_space<vmem>>, vector<1x128xf32>
    %82 = vector.broadcast %81 : vector<1x128xf32> to vector<16x128xf32>
    %83 = arith.addf %80, %82 : vector<16x128xf32>
    %84 = arith.truncf %83 : vector<16x128xf32> to vector<16x128xbf16>
    %c0_31 = arith.constant 0 : index
    %c0_32 = arith.constant 0 : index
    %85 = vector.load %arg8[%c0_31, %c0_32] : memref<16x128xbf16, #tpu.memory_space<vmem>>, vector<16x128xbf16>
    tpu.vector_store %arg8[%c0_31, %c0_32], %84 {strides = array<i32>} : memref<16x128xbf16, #tpu.memory_space<vmem>>, vector<16x128xbf16>,
    return
  }
  func.func @transform_0(%arg0: i32) -> (i32, i32) {
    %c0_i32 = arith.constant 0 : i32
    %c0_i32_0 = arith.constant 0 : i32
    return %arg0, %c0_i32 : i32, i32
  }
  func.func @transform_1(%arg0: i32) -> (i32, i32) {
    %c0_i32 = arith.constant 0 : i32
    %c0_i32_0 = arith.constant 0 : i32
    %c0_i32_1 = arith.constant 0 : i32
    return %c0_i32, %c0_i32_0 : i32, i32
  }
  func.func @transform_2(%arg0: i32) -> (i32, i32) {
    %c0_i32 = arith.constant 0 : i32
    %c0_i32_0 = arith.constant 0 : i32
    %c0_i32_1 = arith.constant 0 : i32
    return %c0_i32, %c0_i32_0 : i32, i32
  }
  func.func @transform_3(%arg0: i32) -> (i32, i32) {
    %c0_i32 = arith.constant 0 : i32
    %c0_i32_0 = arith.constant 0 : i32
    %c0_i32_1 = arith.constant 0 : i32
    return %c0_i32, %c0_i32_0 : i32, i32
  }
  func.func @transform_4(%arg0: i32) -> (i32, i32) {
    %c0_i32 = arith.constant 0 : i32
    %c0_i32_0 = arith.constant 0 : i32
    %c0_i32_1 = arith.constant 0 : i32
    return %c0_i32, %c0_i32_0 : i32, i32
  }
  func.func @transform_5(%arg0: i32) -> (i32, i32) {
    %c0_i32 = arith.constant 0 : i32
    %c0_i32_0 = arith.constant 0 : i32
    %c0_i32_1 = arith.constant 0 : i32
    return %c0_i32, %c0_i32_0 : i32, i32
  }
  func.func @transform_6(%arg0: i32) -> (i32, i32) {
    %c0_i32 = arith.constant 0 : i32
    %c0_i32_0 = arith.constant 0 : i32
    %c0_i32_1 = arith.constant 0 : i32
    return %c0_i32, %c0_i32_0 : i32, i32
  }
  func.func @transform_7(%arg0: i32) -> (i32, i32) {
    %c0_i32 = arith.constant 0 : i32
    %c0_i32_0 = arith.constant 0 : i32
    return %arg0, %c0_i32 : i32, i32
  }
}

module attributes {stable_mosaic.version = 11 : i64} {
  func.func @_cls_stats_kernel(%arg0: i32, %arg1: i32, %arg2: memref<16x128xbf16, #tpu.memory_space<vmem>>, %arg3: memref<128x512xbf16, #tpu.memory_space<vmem>>, %arg4: memref<1x512xf32, #tpu.memory_space<vmem>>, %arg5: memref<16x1xi32, #tpu.memory_space<vmem>>, %arg6: memref<16x1xf32, #tpu.memory_space<vmem>>, %arg7: memref<3x16x1xf32, #tpu.memory_space<vmem>>) attributes {dimension_semantics = [#tpu.dimension_semantics<parallel>, #tpu.dimension_semantics<arbitrary>], iteration_bounds = array<i64: 2, 1>, scalar_prefetch = 0 : i64, scratch_operands = 1 : i64, tpu.core_type = #tpu.core_type<tc>, window_params = [{transform_indices = @transform_0, window_bounds = array<i64: 16, 128>}, {transform_indices = @transform_1, window_bounds = array<i64: 128, 512>}, {transform_indices = @transform_2, window_bounds = array<i64: 1, 512>}, {transform_indices = @transform_3, window_bounds = array<i64: 16, 1>}, {transform_indices = @transform_4, window_bounds = array<i64: 16, 1>}]} {
    %c0_i32 = arith.constant 0 : i32
    %0 = arith.cmpi eq, %arg1, %c0_i32 : i32
    %1 = arith.extui %0 : i1 to i32
    %c0_i32_0 = arith.constant 0 : i32
    %2 = arith.cmpi ne, %1, %c0_i32_0 : i32
    scf.if %2 {
      %cst_32 = arith.constant 0xFF800000 : f32
      %55 = vector.broadcast %cst_32 : f32 to vector<16x1xf32>
      %c0_33 = arith.constant 0 : index
      %c0_34 = arith.constant 0 : index
      %c0_35 = arith.constant 0 : index
      %56 = vector.load %arg7[%c0_33, %c0_34, %c0_35] : memref<3x16x1xf32, #tpu.memory_space<vmem>>, vector<1x16x1xf32>
      %57 = vector.shape_cast %56 : vector<1x16x1xf32> to vector<16x1xf32>
      %58 = vector.shape_cast %55 : vector<16x1xf32> to vector<1x16x1xf32>
      tpu.vector_store %arg7[%c0_33, %c0_34, %c0_35], %58 {strides = array<i32>} : memref<3x16x1xf32, #tpu.memory_space<vmem>>, vector<1x16x1xf32>,
      %cst_36 = arith.constant 0.000000e+00 : f32
      %59 = vector.broadcast %cst_36 : f32 to vector<16x1xf32>
      %c1_37 = arith.constant 1 : index
      %c0_38 = arith.constant 0 : index
      %c0_39 = arith.constant 0 : index
      %60 = vector.load %arg7[%c1_37, %c0_38, %c0_39] : memref<3x16x1xf32, #tpu.memory_space<vmem>>, vector<1x16x1xf32>
      %61 = vector.shape_cast %60 : vector<1x16x1xf32> to vector<16x1xf32>
      %62 = vector.shape_cast %59 : vector<16x1xf32> to vector<1x16x1xf32>
      tpu.vector_store %arg7[%c1_37, %c0_38, %c0_39], %62 {strides = array<i32>} : memref<3x16x1xf32, #tpu.memory_space<vmem>>, vector<1x16x1xf32>,
      %cst_40 = arith.constant 0.000000e+00 : f32
      %63 = vector.broadcast %cst_40 : f32 to vector<16x1xf32>
      %c2_41 = arith.constant 2 : index
      %c0_42 = arith.constant 0 : index
      %c0_43 = arith.constant 0 : index
      %64 = vector.load %arg7[%c2_41, %c0_42, %c0_43] : memref<3x16x1xf32, #tpu.memory_space<vmem>>, vector<1x16x1xf32>
      %65 = vector.shape_cast %64 : vector<1x16x1xf32> to vector<16x1xf32>
      %66 = vector.shape_cast %63 : vector<16x1xf32> to vector<1x16x1xf32>
      tpu.vector_store %arg7[%c2_41, %c0_42, %c0_43], %66 {strides = array<i32>} : memref<3x16x1xf32, #tpu.memory_space<vmem>>, vector<1x16x1xf32>,
    } else {
    }
    %c0 = arith.constant 0 : index
    %c0_1 = arith.constant 0 : index
    %3 = vector.load %arg2[%c0, %c0_1] : memref<16x128xbf16, #tpu.memory_space<vmem>>, vector<16x128xbf16>
    %c0_2 = arith.constant 0 : index
    %c0_3 = arith.constant 0 : index
    %4 = vector.load %arg3[%c0_2, %c0_3] : memref<128x512xbf16, #tpu.memory_space<vmem>>, vector<128x512xbf16>
    %cst = arith.constant dense<0.000000e+00> : vector<16x512xf32>
    %5 = tpu.matmul %3, %4, %cst {dimension_numbers = #tpu.dot_dimension_numbers<[1], [0], [0], [1], [0, 0, 1, 1], [], []>} : vector<16x128xbf16>, vector<128x512xbf16>, vector<16x512xf32> -> vector<16x512xf32>
    %c0_4 = arith.constant 0 : index
    %c0_5 = arith.constant 0 : index
    %6 = vector.load %arg4[%c0_4, %c0_5] : memref<1x512xf32, #tpu.memory_space<vmem>>, vector<1x512xf32>
    %7 = vector.broadcast %6 : vector<1x512xf32> to vector<16x512xf32>
    %8 = arith.addf %5, %7 : vector<16x512xf32>
    %c512_i32 = arith.constant 512 : i32
    %9 = arith.muli %arg1, %c512_i32 : i32
    %10 = tpu.iota {dimensions = array<i32: 1>} : vector<16x512xi32>
    %11 = vector.broadcast %9 : i32 to vector<16x512xi32>
    %12 = arith.addi %11, %10 : vector<16x512xi32>
    %c512_i32_6 = arith.constant 512 : i32
    %13 = vector.broadcast %c512_i32_6 : i32 to vector<16x512xi32>
    %14 = arith.cmpi slt, %12, %13 : vector<16x512xi32>
    %cst_7 = arith.constant -1.000000e+30 : f32
    %15 = vector.broadcast %cst_7 : f32 to vector<16x512xf32>
    %16 = arith.select %14, %8, %15 : vector<16x512xi1>, vector<16x512xf32>
    %c0_8 = arith.constant 0 : index
    %c0_9 = arith.constant 0 : index
    %c0_10 = arith.constant 0 : index
    %17 = vector.load %arg7[%c0_8, %c0_9, %c0_10] : memref<3x16x1xf32, #tpu.memory_space<vmem>>, vector<1x16x1xf32>
    %18 = vector.shape_cast %17 : vector<1x16x1xf32> to vector<16x1xf32>
    %cst_11 = arith.constant dense<0xFF800000> : vector<16xf32>
    %19 = vector.multi_reduction <maximumf>, %16, %cst_11 [1] : vector<16x512xf32> to vector<16xf32>
    %20 = vector.shape_cast %19 : vector<16xf32> to vector<16x1xf32>
    %21 = arith.maximumf %18, %20 : vector<16x1xf32>
    %c1 = arith.constant 1 : index
    %c0_12 = arith.constant 0 : index
    %c0_13 = arith.constant 0 : index
    %22 = vector.load %arg7[%c1, %c0_12, %c0_13] : memref<3x16x1xf32, #tpu.memory_space<vmem>>, vector<1x16x1xf32>
    %23 = vector.shape_cast %22 : vector<1x16x1xf32> to vector<16x1xf32>
    %24 = arith.subf %18, %21 : vector<16x1xf32>
    %25 = math.exp %24 : vector<16x1xf32>
    %26 = arith.mulf %23, %25 : vector<16x1xf32>
    %27 = vector.broadcast %21 : vector<16x1xf32> to vector<16x512xf32>
    %28 = arith.subf %16, %27 : vector<16x512xf32>
    %29 = math.exp %28 : vector<16x512xf32>
    %cst_14 = arith.constant dense<0.000000e+00> : vector<16xf32>
    %30 = vector.multi_reduction <add>, %29, %cst_14 [1] : vector<16x512xf32> to vector<16xf32>
    %31 = vector.shape_cast %30 : vector<16xf32> to vector<16x1xf32>
    %32 = arith.addf %26, %31 : vector<16x1xf32>
    %c1_15 = arith.constant 1 : index
    %c0_16 = arith.constant 0 : index
    %c0_17 = arith.constant 0 : index
    %33 = vector.load %arg7[%c1_15, %c0_16, %c0_17] : memref<3x16x1xf32, #tpu.memory_space<vmem>>, vector<1x16x1xf32>
    %34 = vector.shape_cast %33 : vector<1x16x1xf32> to vector<16x1xf32>
    %35 = vector.shape_cast %32 : vector<16x1xf32> to vector<1x16x1xf32>
    tpu.vector_store %arg7[%c1_15, %c0_16, %c0_17], %35 {strides = array<i32>} : memref<3x16x1xf32, #tpu.memory_space<vmem>>, vector<1x16x1xf32>,
    %c0_18 = arith.constant 0 : index
    %c0_19 = arith.constant 0 : index
    %c0_20 = arith.constant 0 : index
    %36 = vector.load %arg7[%c0_18, %c0_19, %c0_20] : memref<3x16x1xf32, #tpu.memory_space<vmem>>, vector<1x16x1xf32>
    %37 = vector.shape_cast %36 : vector<1x16x1xf32> to vector<16x1xf32>
    %38 = vector.shape_cast %21 : vector<16x1xf32> to vector<1x16x1xf32>
    tpu.vector_store %arg7[%c0_18, %c0_19, %c0_20], %38 {strides = array<i32>} : memref<3x16x1xf32, #tpu.memory_space<vmem>>, vector<1x16x1xf32>,
    %c2 = arith.constant 2 : index
    %c0_21 = arith.constant 0 : index
    %c0_22 = arith.constant 0 : index
    %39 = vector.load %arg7[%c2, %c0_21, %c0_22] : memref<3x16x1xf32, #tpu.memory_space<vmem>>, vector<1x16x1xf32>
    %40 = vector.shape_cast %39 : vector<1x16x1xf32> to vector<16x1xf32>
    %c0_23 = arith.constant 0 : index
    %c0_24 = arith.constant 0 : index
    %41 = vector.load %arg5[%c0_23, %c0_24] : memref<16x1xi32, #tpu.memory_space<vmem>>, vector<16x1xi32>
    %42 = vector.broadcast %41 : vector<16x1xi32> to vector<16x512xi32>
    %43 = arith.cmpi eq, %12, %42 : vector<16x512xi32>
    %cst_25 = arith.constant 0.000000e+00 : f32
    %44 = vector.broadcast %cst_25 : f32 to vector<16x512xf32>
    %45 = arith.select %43, %16, %44 : vector<16x512xi1>, vector<16x512xf32>
    %cst_26 = arith.constant dense<0.000000e+00> : vector<16xf32>
    %46 = vector.multi_reduction <add>, %45, %cst_26 [1] : vector<16x512xf32> to vector<16xf32>
    %47 = vector.shape_cast %46 : vector<16xf32> to vector<16x1xf32>
    %48 = arith.addf %40, %47 : vector<16x1xf32>
    %c2_27 = arith.constant 2 : index
    %c0_28 = arith.constant 0 : index
    %c0_29 = arith.constant 0 : index
    %49 = vector.load %arg7[%c2_27, %c0_28, %c0_29] : memref<3x16x1xf32, #tpu.memory_space<vmem>>, vector<1x16x1xf32>
    %50 = vector.shape_cast %49 : vector<1x16x1xf32> to vector<16x1xf32>
    %51 = vector.shape_cast %48 : vector<16x1xf32> to vector<1x16x1xf32>
    tpu.vector_store %arg7[%c2_27, %c0_28, %c0_29], %51 {strides = array<i32>} : memref<3x16x1xf32, #tpu.memory_space<vmem>>, vector<1x16x1xf32>,
    %c0_i32_30 = arith.constant 0 : i32
    %52 = arith.cmpi eq, %arg1, %c0_i32_30 : i32
    %53 = arith.extui %52 : i1 to i32
    %c0_i32_31 = arith.constant 0 : i32
    %54 = arith.cmpi ne, %53, %c0_i32_31 : i32
    scf.if %54 {
      %c0_32 = arith.constant 0 : index
      %c0_33 = arith.constant 0 : index
      %c0_34 = arith.constant 0 : index
      %55 = vector.load %arg7[%c0_32, %c0_33, %c0_34] : memref<3x16x1xf32, #tpu.memory_space<vmem>>, vector<1x16x1xf32>
      %56 = vector.shape_cast %55 : vector<1x16x1xf32> to vector<16x1xf32>
      %c1_35 = arith.constant 1 : index
      %c0_36 = arith.constant 0 : index
      %c0_37 = arith.constant 0 : index
      %57 = vector.load %arg7[%c1_35, %c0_36, %c0_37] : memref<3x16x1xf32, #tpu.memory_space<vmem>>, vector<1x16x1xf32>
      %58 = vector.shape_cast %57 : vector<1x16x1xf32> to vector<16x1xf32>
      %59 = math.log %58 : vector<16x1xf32>
      %60 = arith.addf %56, %59 : vector<16x1xf32>
      %c2_38 = arith.constant 2 : index
      %c0_39 = arith.constant 0 : index
      %c0_40 = arith.constant 0 : index
      %61 = vector.load %arg7[%c2_38, %c0_39, %c0_40] : memref<3x16x1xf32, #tpu.memory_space<vmem>>, vector<1x16x1xf32>
      %62 = vector.shape_cast %61 : vector<1x16x1xf32> to vector<16x1xf32>
      %63 = arith.subf %60, %62 : vector<16x1xf32>
      %c0_41 = arith.constant 0 : index
      %c0_42 = arith.constant 0 : index
      %64 = vector.load %arg6[%c0_41, %c0_42] : memref<16x1xf32, #tpu.memory_space<vmem>>, vector<16x1xf32>
      tpu.vector_store %arg6[%c0_41, %c0_42], %63 {strides = array<i32>} : memref<16x1xf32, #tpu.memory_space<vmem>>, vector<16x1xf32>,
    } else {
    }
    return
  }
  func.func @transform_0(%arg0: i32, %arg1: i32) -> (i32, i32) {
    %c0_i32 = arith.constant 0 : i32
    %c0_i32_0 = arith.constant 0 : i32
    return %arg0, %c0_i32 : i32, i32
  }
  func.func @transform_1(%arg0: i32, %arg1: i32) -> (i32, i32) {
    %c0_i32 = arith.constant 0 : i32
    %c0_i32_0 = arith.constant 0 : i32
    return %c0_i32, %arg1 : i32, i32
  }
  func.func @transform_2(%arg0: i32, %arg1: i32) -> (i32, i32) {
    %c0_i32 = arith.constant 0 : i32
    %c0_i32_0 = arith.constant 0 : i32
    return %c0_i32, %arg1 : i32, i32
  }
  func.func @transform_3(%arg0: i32, %arg1: i32) -> (i32, i32) {
    %c0_i32 = arith.constant 0 : i32
    %c0_i32_0 = arith.constant 0 : i32
    return %arg0, %c0_i32 : i32, i32
  }
  func.func @transform_4(%arg0: i32, %arg1: i32) -> (i32, i32) {
    %c0_i32 = arith.constant 0 : i32
    %c0_i32_0 = arith.constant 0 : i32
    return %arg0, %c0_i32 : i32, i32
  }
}

</mosaic_0001>

<llo_original>
// kernel: _lambda_.6
$region0: #{_lambda_.6}
  #allocation0 [shape = 'u32[]', space=smem, size = 0x4, offset = 0x4, fixed_abs, tag = 'smem constant byte address 0x4 - core index']
  #allocation1 [shape = 'u32[144,128]{1,0:T(1,128)}', space=vmem, size = 0x12000, scoped, tag = 'internal scratch']
  %s0 = inlined_call_operand.vmem [shape: f32[32,128], index: 0, kind: input, shape index: {}]
  %s1 = inlined_call_operand.vmem [shape: f32[1,128], index: 1, kind: input, shape index: {}]
  %s2 = inlined_call_operand.vmem [shape: f32[1,128], index: 2, kind: input, shape index: {}]
  %s3 = inlined_call_operand.vmem [shape: bf16[32,128], index: 3, kind: output, shape index: {}]
  %s4 = sld [smem:[#allocation0]]
  $region45: #{_lambda_.6} parent=0
    _
  %s6 = ssub.s32 1, %s4
  %s7 = scalar_select 0, %s6, %s4
  loop: start=0, step=1, limit=4
  $region2: #{_lambda_.6} parent=0 // loop_pre_header
    _
  $region3: #{_lambda_.6} parent=0 // loop_header
    %s9 = sphi 0, %s13
    %p10 = scmp.ge.s32.totalorder %s9, 4
    %s19 = sphi 0, %s21
    %s22 = sphi 0, %s19
    %s23 = sphi 0, %s22
    %s39 = sphi 0, %s23
    %s43 = sphi 0, %s43
    %s45 = sphi 0, %s43
    %s46 = sphi 0, %s45
    %s60 = sphi 0, %s46
    %s64 = sphi 0, %s64
    %s66 = sphi 0, %s64
    %s67 = sphi 0, %s66
    %s81 = sphi 0, %s67
    %s87 = sphi 0, %s89
    %s90 = sphi 0, %s87
    %s91 = sphi 0, %s90
    %s107 = sphi 0, %s91
  $region4: #{_lambda_.6} parent=0 // loop_header_branch
    %12 = sbr.rel (%p10) target = $region8
  $region5: #{_lambda_.6} parent=0 // loop_body
    %s14 = ssub.s32 %s9, 1
    %s15 = ssub.s32 %s9, 2
    %s16 = sadd.s32 %s9, 1
    %s17 = ssub.s32 %s9, %s16
    %p18 = scmp.eq.s32.totalorder %s17, 0
    %s20 = sadd.s32 %s19, 1
    %s21 = scalar_select %p18, %s19, %s20
    %p24 = pneg %p18
    %p25 = scmp.eq.s32.totalorder %s9, 1
    %p26 = por %p24, %p25
    %p27 = scmp.ne.s32.totalorder %s19, %s22
    %p28 = scmp.eq.s32.totalorder %s9, 0
    %p29 = por %p27, %p28
    %p30 = scmp.ne.s32.totalorder %s19, %s22
    %p31 = scmp.eq.s32.totalorder %s14, 1
    %p32 = por %p30, %p31
    %p33 = scmp.ne.s32.totalorder %s22, %s23
    %p34 = scmp.eq.s32.totalorder %s14, 0
    %p35 = por %p33, %p34
    %p36 = scmp.ne.s32.totalorder %s22, %s23
    %p37 = scmp.eq.s32.totalorder %s15, 1
    %p38 = por %p36, %p37
    %p40 = scmp.ne.s32.totalorder %s23, %s39
    %p41 = scmp.eq.s32.totalorder %s15, 0
    %p42 = por %p40, %p41
    %s44 = sadd.s32 %s43, 1
    %p47 = scmp.eq.s32.totalorder %s9, 1
    %p48 = scmp.ne.s32.totalorder %s43, %s45
    %p49 = scmp.eq.s32.totalorder %s9, 0
    %p50 = por %p48, %p49
    %p51 = scmp.ne.s32.totalorder %s43, %s45
    %p52 = scmp.eq.s32.totalorder %s14, 1
    %p53 = por %p51, %p52
    %p54 = scmp.ne.s32.totalorder %s45, %s46
    %p55 = scmp.eq.s32.totalorder %s14, 0
    %p56 = por %p54, %p55
    %p57 = scmp.ne.s32.totalorder %s45, %s46
    %p58 = scmp.eq.s32.totalorder %s15, 1
    %p59 = por %p57, %p58
    %p61 = scmp.ne.s32.totalorder %s46, %s60
    %p62 = scmp.eq.s32.totalorder %s15, 0
    %p63 = por %p61, %p62
    %s65 = sadd.s32 %s64, 1
    %p68 = scmp.eq.s32.totalorder %s9, 1
    %p69 = scmp.ne.s32.totalorder %s64, %s66
    %p70 = scmp.eq.s32.totalorder %s9, 0
    %p71 = por %p69, %p70
    %p72 = scmp.ne.s32.totalorder %s64, %s66
    %p73 = scmp.eq.s32.totalorder %s14, 1
    %p74 = por %p72, %p73
    %p75 = scmp.ne.s32.totalorder %s66, %s67
    %p76 = scmp.eq.s32.totalorder %s14, 0
    %p77 = por %p75, %p76
    %p78 = scmp.ne.s32.totalorder %s66, %s67
    %p79 = scmp.eq.s32.totalorder %s15, 1
    %p80 = por %p78, %p79
    %p82 = scmp.ne.s32.totalorder %s67, %s81
    %p83 = scmp.eq.s32.totalorder %s15, 0
    %p84 = por %p82, %p83
    %s85 = ssub.s32 %s9, %s16
    %p86 = scmp.eq.s32.totalorder %s85, 0
    %s88 = sadd.s32 %s87, 1
    %s89 = scalar_select %p86, %s87, %s88
    %p92 = pneg %p86
    %p93 = scmp.eq.s32.totalorder %s9, 1
    %p94 = por %p92, %p93
    %p95 = scmp.ne.s32.totalorder %s87, %s90
    %p96 = scmp.eq.s32.totalorder %s9, 0
    %p97 = por %p95, %p96
    %p98 = scmp.ne.s32.totalorder %s87, %s90
    %p99 = scmp.eq.s32.totalorder %s14, 1
    %p100 = por %p98, %p99
    %p101 = scmp.ne.s32.totalorder %s90, %s91
    %p102 = scmp.eq.s32.totalorder %s14, 0
    %p103 = por %p101, %p102
    %p104 = scmp.ne.s32.totalorder %s90, %s91
    %p105 = scmp.eq.s32.totalorder %s15, 1
    %p106 = por %p104, %p105
    %p108 = scmp.ne.s32.totalorder %s91, %s107
    %p109 = scmp.eq.s32.totalorder %s15, 0
    %p110 = por %p108, %p109
    %p111 = scmp.le.s32.totalorder 1, %s9
    %p112 = scmp.lt.s32.totalorder %s9, 3
    %p113 = pnand %p111, %p112
    %p114 = pneg %p113
    // Predicated region
    $region9: #{_lambda_.6} parent=5 // pred_check
      _
    $region10: #{_lambda_.6} parent=5 // pred_check_branch
      %116 = sbr.rel (%p113) target = $region12
    $region11: #{_lambda_.6} parent=5 // pred_region
      %s117 = ssub.s32 %s9, 1
      // Predicated region
      $region13: #{_lambda_.6} parent=11 // pred_check
        %p118 = pneg %p56
      $region14: #{_lambda_.6} parent=11 // pred_check_branch
        %120 = sbr.rel (%p118) target = $region16
      $region15: #{_lambda_.6} parent=11 // pred_region
        _
      $region16: #{_lambda_.6} parent=11 // pred_fallthru
        _
      // Predicated region
      $region17: #{_lambda_.6} parent=11 // pred_check
        %p121 = pneg %p77
      $region18: #{_lambda_.6} parent=11 // pred_check_branch
        %123 = sbr.rel (%p121) target = $region20
      $region19: #{_lambda_.6} parent=11 // pred_region
        _
      $region20: #{_lambda_.6} parent=11 // pred_fallthru
        _
    $region12: #{_lambda_.6} parent=5 // pred_fallthru
      _
    %p124 = scmp.lt.s32.totalorder %s9, 2
    // Predicated region
    $region21: #{_lambda_.6} parent=5 // pred_check
      %p125 = pneg %p124
    $region22: #{_lambda_.6} parent=5 // pred_check_branch
      %127 = sbr.rel (%p125) target = $region24
    $region23: #{_lambda_.6} parent=5 // pred_region
      // Predicated region
      $region25: #{_lambda_.6} parent=23 // pred_check
        %p128 = pneg %p29
      $region26: #{_lambda_.6} parent=23 // pred_check_branch
        %130 = sbr.rel (%p128) target = $region28
      $region27: #{_lambda_.6} parent=23 // pred_region
        %s131 = smul.u32 2, %s9
        %p132 = scmp.lt.s32.totalorder %s131, 3
        %s133 = scalar_select %p132, %s131, 3
        %s134 = smul.addr %s133, 8
        %s135 = scalar_lea.vmem %s0, %s134
        %s136 = smul.u32 2, %s9
      $region28: #{_lambda_.6} parent=23 // pred_fallthru
        _
    $region24: #{_lambda_.6} parent=5 // pred_fallthru
      _
    %p137 = scmp.le.s32.totalorder 1, %s9
    %p138 = scmp.lt.s32.totalorder %s9, 3
    %p139 = pnand %p137, %p138
    %p140 = pneg %p139
    // Predicated region
    $region29: #{_lambda_.6} parent=5 // pred_check
      _
    $region30: #{_lambda_.6} parent=5 // pred_check_branch
      %142 = sbr.rel (%p139) target = $region32
    $region31: #{_lambda_.6} parent=5 // pred_region
      %s143 = ssub.s32 %s9, 1
      %s144 = smul.u32 2, %s14
      %p145 = scmp.lt.s32.totalorder %s144, 3
      %s146 = scalar_select %p145, %s144, 3
      %s147 = smul.addr %s146, 8
      %s148 = scalar_lea.vmem %s0, %s147
      %p149 = pneg %p35
      %p150 = pneg %p32
      %p151 = pneg %p56
      %p152 = pneg %p53
      %p153 = pneg %p77
      %p154 = pneg %p74
      %p155 = pneg %p103
      %p156 = pneg %p100
      %s157 = smul.u32 2, %s14
      %p158 = scmp.lt.s32.totalorder %s157, 3
      %s159 = scalar_select %p158, %s157, 3
      %s160 = smul.addr %s159, 4
      %s161 = scalar_lea.vmem %s3, %s160
      %s162 = smul.u32 2, %s14
      %p163 = scmp.lt.s32.totalorder %s162, 3
      %s164 = scalar_select %p163, %s162, 3
      %s165 = smul.addr %s164, 8
      %s166 = scalar_lea.vmem %s0, %s165
      %s167 = smul.u32 2, %s14
      %s168 = smul.u32 2, %s14
      %p169 = scmp.lt.s32.totalorder %s168, 3
      %s170 = scalar_select %p169, %s168, 3
      %s171 = smul.addr %s170, 4
      %s172 = scalar_lea.vmem %s3, %s171
      %s173 = smul.u32 2, %s14
      %v174 = vld [vmem:[%s166] sm:$0xff]
      %v175 = vld [vmem:[%s166 + $0x8] sm:$0xff]
      %176 = vadd.xlane.f32.xlu0 %v174
      %v177 = vpop.xlane.xlu0 %176
      %178 = vadd.xlane.f32.xlu0 %v175
      %v179 = vpop.xlane.xlu0 %178
      %v180 = vrcp.pop 128.0
      %v181 = vmul.f32 %v177, %v180
      %v182 = vmul.f32 %v179, %v180
      %v183 = vsub.f32 %v174, %v181
      %v184 = vsub.f32 %v175, %v182
      %v185 = vmul.f32 %v183, %v183
      %v186 = vmul.f32 %v184, %v184
      %187 = vadd.xlane.f32.xlu0 %v185
      %v188 = vpop.xlane.xlu0 %187
      %189 = vadd.xlane.f32.xlu0 %v186
      %v190 = vpop.xlane.xlu0 %189
      %v191 = vmul.f32 %v188, %v180
      %v192 = vmul.f32 %v190, %v180
      %v193 = vadd.f32 %v191, 1e-12
      %v194 = vadd.f32 %v192, 1e-12
      %v195 = vrsqrt.pop %v193
      %v196 = vrsqrt.pop %v194
      %v197 = vmul.f32 %v183, %v195
      %v198 = vmul.f32 %v184, %v196
      %v199 = vld [vmem:[%s1] sm:$0x1]
      %v201 = vlaneseq
      %v202 = vshrl.u32 %v201, 7
      %v203 = vsub.s32 0, %v202
      %v204 = vrot.slane %v199, %v203
      %v206 = vmul.f32 %v197, %v204
      %v207 = vmul.f32 %v198, %v204
      %v208 = vld [vmem:[%s2] sm:$0x1]
      %v210 = vlaneseq
      %v211 = vshrl.u32 %v210, 7
      %v212 = vsub.s32 0, %v211
      %v213 = vrot.slane %v208, %v212
      %v215 = vadd.f32 %v206, %v213
      %v216 = vadd.f32 %v207, %v213
      %v217 = vpack.c.bf16 %v216, %v215
      %v219 = vunpack.c.l.b16 %v217
      %v220 = vunpack.c.h.b16 %v217
      %v221 = vpack.c.b16 %v219, %v219
      %v222 = vpack.c.b16 %v220, %v220
      %225 = vst [vmem:[%s172] sm:$0xf] %v221
      %226 = vst [vmem:[%s172 + $0x4] sm:$0xf] %v222
      %s227 = smul.u32 2, %s14
      %p228 = scmp.lt.s32.totalorder %s227, 3
      %s229 = scalar_select %p228, %s227, 3
      %s230 = smul.addr %s229, 4
      %s231 = scalar_lea.vmem %s3, %s230
      // Predicated region
      $region33: #{_lambda_.6} parent=31 // pred_check
        %p232 = pneg %p100
      $region34: #{_lambda_.6} parent=31 // pred_check_branch
        %234 = sbr.rel (%p232) target = $region36
      $region35: #{_lambda_.6} parent=31 // pred_region
        %s235 = smul.u32 2, %s14
      $region36: #{_lambda_.6} parent=31 // pred_fallthru
        _
    $region32: #{_lambda_.6} parent=5 // pred_fallthru
      _
    %p236 = scmp.le.s32.totalorder 2, %s9
    // Predicated region
    $region37: #{_lambda_.6} parent=5 // pred_check
      %p237 = pneg %p236
    $region38: #{_lambda_.6} parent=5 // pred_check_branch
      %239 = sbr.rel (%p237) target = $region40
    $region39: #{_lambda_.6} parent=5 // pred_region
      %s240 = ssub.s32 %s9, 2
      // Predicated region
      $region41: #{_lambda_.6} parent=39 // pred_check
        %p241 = pneg %p106
      $region42: #{_lambda_.6} parent=39 // pred_check_branch
        %243 = sbr.rel (%p241) target = $region44
      $region43: #{_lambda_.6} parent=39 // pred_region
        %s244 = smul.u32 2, %s15
        %p245 = scmp.lt.s32.totalorder %s244, 3
        %s246 = scalar_select %p245, %s244, 3
        %s247 = smul.addr %s246, 4
        %s248 = scalar_lea.vmem %s3, %s247
      $region44: #{_lambda_.6} parent=39 // pred_fallthru
        _
    $region40: #{_lambda_.6} parent=5 // pred_fallthru
      _
  $region6: #{_lambda_.6} parent=0 // loop_footer
    %s13 = sadd.s32 1, %s9
  $region7: #{_lambda_.6} parent=0 // loop_footer_branch
    %8 = sbr.rel target = $region3
  $region8: #{_lambda_.6} parent=0 // loop_exit
    _

// kernel: _lambda_.8
$region0: #{_lambda_.8}
  #allocation0 [shape = 'u32[]', space=smem, size = 0x4, offset = 0x4, fixed_abs, tag = 'smem constant byte address 0x4 - core index']
  #allocation1 [shape = 'u32[144,128]{1,0:T(1,128)}', space=vmem, size = 0x12000, scoped, tag = 'internal scratch']
  %s0 = inlined_call_operand.vmem [shape: bf16[32,128], index: 0, kind: input, shape index: {}]
  %s1 = inlined_call_operand.vmem [shape: bf16[128,256], index: 1, kind: input, shape index: {}]
  %s2 = inlined_call_operand.vmem [shape: f32[1,256], index: 2, kind: input, shape index: {}]
  %s3 = inlined_call_operand.vmem [shape: bf16[256,128], index: 3, kind: input, shape index: {}]
  %s4 = inlined_call_operand.vmem [shape: f32[1,128], index: 4, kind: input, shape index: {}]
  %s5 = inlined_call_operand.vmem [shape: f32[1,128], index: 5, kind: input, shape index: {}]
  %s6 = inlined_call_operand.vmem [shape: f32[1,128], index: 6, kind: input, shape index: {}]
  %s7 = inlined_call_operand.vmem [shape: bf16[32,128], index: 7, kind: output, shape index: {}]
  %s8 = sld [smem:[#allocation0]]
  $region61: #{_lambda_.8} parent=0
    _
  %s10 = ssub.s32 1, %s8
  %s11 = scalar_select 0, %s10, %s8
  loop: start=0, step=1, limit=4
  $region2: #{_lambda_.8} parent=0 // loop_pre_header
    _
  $region3: #{_lambda_.8} parent=0 // loop_header
    %s13 = sphi 0, %s17
    %p14 = scmp.ge.s32.totalorder %s13, 4
    %s23 = sphi 0, %s25
    %s26 = sphi 0, %s23
    %s27 = sphi 0, %s26
    %s43 = sphi 0, %s27
    %s47 = sphi 0, %s47
    %s49 = sphi 0, %s47
    %s50 = sphi 0, %s49
    %s64 = sphi 0, %s50
    %s68 = sphi 0, %s68
    %s70 = sphi 0, %s68
    %s71 = sphi 0, %s70
    %s85 = sphi 0, %s71
    %s89 = sphi 0, %s89
    %s91 = sphi 0, %s89
    %s92 = sphi 0, %s91
    %s106 = sphi 0, %s92
    %s110 = sphi 0, %s110
    %s112 = sphi 0, %s110
    %s113 = sphi 0, %s112
    %s127 = sphi 0, %s113
    %s131 = sphi 0, %s131
    %s133 = sphi 0, %s131
    %s134 = sphi 0, %s133
    %s148 = sphi 0, %s134
    %s152 = sphi 0, %s152
    %s154 = sphi 0, %s152
    %s155 = sphi 0, %s154
    %s169 = sphi 0, %s155
    %s175 = sphi 0, %s177
    %s178 = sphi 0, %s175
    %s179 = sphi 0, %s178
    %s195 = sphi 0, %s179
  $region4: #{_lambda_.8} parent=0 // loop_header_branch
    %16 = sbr.rel (%p14) target = $region8
  $region5: #{_lambda_.8} parent=0 // loop_body
    %s18 = ssub.s32 %s13, 1
    %s19 = ssub.s32 %s13, 2
    %s20 = sadd.s32 %s13, 1
    %s21 = ssub.s32 %s13, %s20
    %p22 = scmp.eq.s32.totalorder %s21, 0
    %s24 = sadd.s32 %s23, 1
    %s25 = scalar_select %p22, %s23, %s24
    %p28 = pneg %p22
    %p29 = scmp.eq.s32.totalorder %s13, 1
    %p30 = por %p28, %p29
    %p31 = scmp.ne.s32.totalorder %s23, %s26
    %p32 = scmp.eq.s32.totalorder %s13, 0
    %p33 = por %p31, %p32
    %p34 = scmp.ne.s32.totalorder %s23, %s26
    %p35 = scmp.eq.s32.totalorder %s18, 1
    %p36 = por %p34, %p35
    %p37 = scmp.ne.s32.totalorder %s26, %s27
    %p38 = scmp.eq.s32.totalorder %s18, 0
    %p39 = por %p37, %p38
    %p40 = scmp.ne.s32.totalorder %s26, %s27
    %p41 = scmp.eq.s32.totalorder %s19, 1
    %p42 = por %p40, %p41
    %p44 = scmp.ne.s32.totalorder %s27, %s43
    %p45 = scmp.eq.s32.totalorder %s19, 0
    %p46 = por %p44, %p45
    %s48 = sadd.s32 %s47, 1
    %p51 = scmp.eq.s32.totalorder %s13, 1
    %p52 = scmp.ne.s32.totalorder %s47, %s49
    %p53 = scmp.eq.s32.totalorder %s13, 0
    %p54 = por %p52, %p53
    %p55 = scmp.ne.s32.totalorder %s47, %s49
    %p56 = scmp.eq.s32.totalorder %s18, 1
    %p57 = por %p55, %p56
    %p58 = scmp.ne.s32.totalorder %s49, %s50
    %p59 = scmp.eq.s32.totalorder %s18, 0
    %p60 = por %p58, %p59
    %p61 = scmp.ne.s32.totalorder %s49, %s50
    %p62 = scmp.eq.s32.totalorder %s19, 1
    %p63 = por %p61, %p62
    %p65 = scmp.ne.s32.totalorder %s50, %s64
    %p66 = scmp.eq.s32.totalorder %s19, 0
    %p67 = por %p65, %p66
    %s69 = sadd.s32 %s68, 1
    %p72 = scmp.eq.s32.totalorder %s13, 1
    %p73 = scmp.ne.s32.totalorder %s68, %s70
    %p74 = scmp.eq.s32.totalorder %s13, 0
    %p75 = por %p73, %p74
    %p76 = scmp.ne.s32.totalorder %s68, %s70
    %p77 = scmp.eq.s32.totalorder %s18, 1
    %p78 = por %p76, %p77
    %p79 = scmp.ne.s32.totalorder %s70, %s71
    %p80 = scmp.eq.s32.totalorder %s18, 0
    %p81 = por %p79, %p80
    %p82 = scmp.ne.s32.totalorder %s70, %s71
    %p83 = scmp.eq.s32.totalorder %s19, 1
    %p84 = por %p82, %p83
    %p86 = scmp.ne.s32.totalorder %s71, %s85
    %p87 = scmp.eq.s32.totalorder %s19, 0
    %p88 = por %p86, %p87
    %s90 = sadd.s32 %s89, 1
    %p93 = scmp.eq.s32.totalorder %s13, 1
    %p94 = scmp.ne.s32.totalorder %s89, %s91
    %p95 = scmp.eq.s32.totalorder %s13, 0
    %p96 = por %p94, %p95
    %p97 = scmp.ne.s32.totalorder %s89, %s91
    %p98 = scmp.eq.s32.totalorder %s18, 1
    %p99 = por %p97, %p98
    %p100 = scmp.ne.s32.totalorder %s91, %s92
    %p101 = scmp.eq.s32.totalorder %s18, 0
    %p102 = por %p100, %p101
    %p103 = scmp.ne.s32.totalorder %s91, %s92
    %p104 = scmp.eq.s32.totalorder %s19, 1
    %p105 = por %p103, %p104
    %p107 = scmp.ne.s32.totalorder %s92, %s106
    %p108 = scmp.eq.s32.totalorder %s19, 0
    %p109 = por %p107, %p108
    %s111 = sadd.s32 %s110, 1
    %p114 = scmp.eq.s32.totalorder %s13, 1
    %p115 = scmp.ne.s32.totalorder %s110, %s112
    %p116 = scmp.eq.s32.totalorder %s13, 0
    %p117 = por %p115, %p116
    %p118 = scmp.ne.s32.totalorder %s110, %s112
    %p119 = scmp.eq.s32.totalorder %s18, 1
    %p120 = por %p118, %p119
    %p121 = scmp.ne.s32.totalorder %s112, %s113
    %p122 = scmp.eq.s32.totalorder %s18, 0
    %p123 = por %p121, %p122
    %p124 = scmp.ne.s32.totalorder %s112, %s113
    %p125 = scmp.eq.s32.totalorder %s19, 1
    %p126 = por %p124, %p125
    %p128 = scmp.ne.s32.totalorder %s113, %s127
    %p129 = scmp.eq.s32.totalorder %s19, 0
    %p130 = por %p128, %p129
    %s132 = sadd.s32 %s131, 1
    %p135 = scmp.eq.s32.totalorder %s13, 1
    %p136 = scmp.ne.s32.totalorder %s131, %s133
    %p137 = scmp.eq.s32.totalorder %s13, 0
    %p138 = por %p136, %p137
    %p139 = scmp.ne.s32.totalorder %s131, %s133
    %p140 = scmp.eq.s32.totalorder %s18, 1
    %p141 = por %p139, %p140
    %p142 = scmp.ne.s32.totalorder %s133, %s134
    %p143 = scmp.eq.s32.totalorder %s18, 0
    %p144 = por %p142, %p143
    %p145 = scmp.ne.s32.totalorder %s133, %s134
    %p146 = scmp.eq.s32.totalorder %s19, 1
    %p147 = por %p145, %p146
    %p149 = scmp.ne.s32.totalorder %s134, %s148
    %p150 = scmp.eq.s32.totalorder %s19, 0
    %p151 = por %p149, %p150
    %s153 = sadd.s32 %s152, 1
    %p156 = scmp.eq.s32.totalorder %s13, 1
    %p157 = scmp.ne.s32.totalorder %s152, %s154
    %p158 = scmp.eq.s32.totalorder %s13, 0
    %p159 = por %p157, %p158
    %p160 = scmp.ne.s32.totalorder %s152, %s154
    %p161 = scmp.eq.s32.totalorder %s18, 1
    %p162 = por %p160, %p161
    %p163 = scmp.ne.s32.totalorder %s154, %s155
    %p164 = scmp.eq.s32.totalorder %s18, 0
    %p165 = por %p163, %p164
    %p166 = scmp.ne.s32.totalorder %s154, %s155
    %p167 = scmp.eq.s32.totalorder %s19, 1
    %p168 = por %p166, %p167
    %p170 = scmp.ne.s32.totalorder %s155, %s169
    %p171 = scmp.eq.s32.totalorder %s19, 0
    %p172 = por %p170, %p171
    %s173 = ssub.s32 %s13, %s20
    %p174 = scmp.eq.s32.totalorder %s173, 0
    %s176 = sadd.s32 %s175, 1
    %s177 = scalar_select %p174, %s175, %s176
    %p180 = pneg %p174
    %p181 = scmp.eq.s32.totalorder %s13, 1
    %p182 = por %p180, %p181
    %p183 = scmp.ne.s32.totalorder %s175, %s178
    %p184 = scmp.eq.s32.totalorder %s13, 0
    %p185 = por %p183, %p184
    %p186 = scmp.ne.s32.totalorder %s175, %s178
    %p187 = scmp.eq.s32.totalorder %s18, 1
    %p188 = por %p186, %p187
    %p189 = scmp.ne.s32.totalorder %s178, %s179
    %p190 = scmp.eq.s32.totalorder %s18, 0
    %p191 = por %p189, %p190
    %p192 = scmp.ne.s32.totalorder %s178, %s179
    %p193 = scmp.eq.s32.totalorder %s19, 1
    %p194 = por %p192, %p193
    %p196 = scmp.ne.s32.totalorder %s179, %s195
    %p197 = scmp.eq.s32.totalorder %s19, 0
    %p198 = por %p196, %p197
    %p199 = scmp.le.s32.totalorder 1, %s13
    %p200 = scmp.lt.s32.totalorder %s13, 3
    %p201 = pnand %p199, %p200
    %p202 = pneg %p201
    // Predicated region
    $region9: #{_lambda_.8} parent=5 // pred_check
      _
    $region10: #{_lambda_.8} parent=5 // pred_check_branch
      %204 = sbr.rel (%p201) target = $region12
    $region11: #{_lambda_.8} parent=5 // pred_region
      %s205 = ssub.s32 %s13, 1
      // Predicated region
      $region13: #{_lambda_.8} parent=11 // pred_check
        %p206 = pneg %p60
      $region14: #{_lambda_.8} parent=11 // pred_check_branch
        %208 = sbr.rel (%p206) target = $region16
      $region15: #{_lambda_.8} parent=11 // pred_region
        _
      $region16: #{_lambda_.8} parent=11 // pred_fallthru
        _
      // Predicated region
      $region17: #{_lambda_.8} parent=11 // pred_check
        %p209 = pneg %p81
      $region18: #{_lambda_.8} parent=11 // pred_check_branch
        %211 = sbr.rel (%p209) target = $region20
      $region19: #{_lambda_.8} parent=11 // pred_region
        _
      $region20: #{_lambda_.8} parent=11 // pred_fallthru
        _
      // Predicated region
      $region21: #{_lambda_.8} parent=11 // pred_check
        %p212 = pneg %p102
      $region22: #{_lambda_.8} parent=11 // pred_check_branch
        %214 = sbr.rel (%p212) target = $region24
      $region23: #{_lambda_.8} parent=11 // pred_region
        _
      $region24: #{_lambda_.8} parent=11 // pred_fallthru
        _
      // Predicated region
      $region25: #{_lambda_.8} parent=11 // pred_check
        %p215 = pneg %p123
      $region26: #{_lambda_.8} parent=11 // pred_check_branch
        %217 = sbr.rel (%p215) target = $region28
      $region27: #{_lambda_.8} parent=11 // pred_region
        _
      $region28: #{_lambda_.8} parent=11 // pred_fallthru
        _
      // Predicated region
      $region29: #{_lambda_.8} parent=11 // pred_check
        %p218 = pneg %p144
      $region30: #{_lambda_.8} parent=11 // pred_check_branch
        %220 = sbr.rel (%p218) target = $region32
      $region31: #{_lambda_.8} parent=11 // pred_region
        _
      $region32: #{_lambda_.8} parent=11 // pred_fallthru
        _
      // Predicated region
      $region33: #{_lambda_.8} parent=11 // pred_check
        %p221 = pneg %p165
      $region34: #{_lambda_.8} parent=11 // pred_check_branch
        %223 = sbr.rel (%p221) target = $region36
      $region35: #{_lambda_.8} parent=11 // pred_region
        _
      $region36: #{_lambda_.8} parent=11 // pred_fallthru
        _
    $region12: #{_lambda_.8} parent=5 // pred_fallthru
      _
    %p224 = scmp.lt.s32.totalorder %s13, 2
    // Predicated region
    $region37: #{_lambda_.8} parent=5 // pred_check
      %p225 = pneg %p224
    $region38: #{_lambda_.8} parent=5 // pred_check_branch
      %227 = sbr.rel (%p225) target = $region40
    $region39: #{_lambda_.8} parent=5 // pred_region
      // Predicated region
      $region41: #{_lambda_.8} parent=39 // pred_check
        %p228 = pneg %p33
      $region42: #{_lambda_.8} parent=39 // pred_check_branch
        %230 = sbr.rel (%p228) target = $region44
      $region43: #{_lambda_.8} parent=39 // pred_region
        %s231 = smul.u32 2, %s13
        %p232 = scmp.lt.s32.totalorder %s231, 3
        %s233 = scalar_select %p232, %s231, 3
        %s234 = smul.addr %s233, 4
        %s235 = scalar_lea.vmem %s0, %s234
        %s236 = smul.u32 2, %s13
      $region44: #{_lambda_.8} parent=39 // pred_fallthru
        _
    $region40: #{_lambda_.8} parent=5 // pred_fallthru
      _
    %p237 = scmp.le.s32.totalorder 1, %s13
    %p238 = scmp.lt.s32.totalorder %s13, 3
    %p239 = pnand %p237, %p238
    %p240 = pneg %p239
    // Predicated region
    $region45: #{_lambda_.8} parent=5 // pred_check
      _
    $region46: #{_lambda_.8} parent=5 // pred_check_branch
      %242 = sbr.rel (%p239) target = $region48
    $region47: #{_lambda_.8} parent=5 // pred_region
      %s243 = ssub.s32 %s13, 1
      %s244 = smul.u32 2, %s18
      %p245 = scmp.lt.s32.totalorder %s244, 3
      %s246 = scalar_select %p245, %s244, 3
      %s247 = smul.addr %s246, 4
      %s248 = scalar_lea.vmem %s0, %s247
      %p249 = pneg %p39
      %p250 = pneg %p36
      %p251 = pneg %p60
      %p252 = pneg %p57
      %p253 = pneg %p81
      %p254 = pneg %p78
      %p255 = pneg %p102
      %p256 = pneg %p99
      %p257 = pneg %p123
      %p258 = pneg %p120
      %p259 = pneg %p144
      %p260 = pneg %p141
      %p261 = pneg %p165
      %p262 = pneg %p162
      %p263 = pneg %p191
      %p264 = pneg %p188
      %s265 = smul.u32 2, %s18
      %p266 = scmp.lt.s32.totalorder %s265, 3
      %s267 = scalar_select %p266, %s265, 3
      %s268 = smul.addr %s267, 4
      %s269 = scalar_lea.vmem %s7, %s268
      %s270 = smul.u32 2, %s18
      %p271 = scmp.lt.s32.totalorder %s270, 3
      %s272 = scalar_select %p271, %s270, 3
      %s273 = smul.addr %s272, 4
      %s274 = scalar_lea.vmem %s0, %s273
      %s275 = smul.u32 2, %s18
      %s276 = smul.u32 2, %s18
      %p277 = scmp.lt.s32.totalorder %s276, 3
      %s278 = scalar_select %p277, %s276, 3
      %s279 = smul.addr %s278, 4
      %s280 = scalar_lea.vmem %s7, %s279
      %s281 = smul.u32 2, %s18
      %v283 = vld [vmem:[%s274] sm:$0xf]
      %v284 = vld [vmem:[%s274 + $0x4] sm:$0xf]
      %v285 = vld [vmem:[%s1] sm:$0xff]
      %v286 = vld [vmem:[%s1 + $0x8] sm:$0xff]
      %v287 = vld [vmem:[%s1 + $0x10] sm:$0xff]
      %v288 = vld [vmem:[%s1 + $0x18] sm:$0xff]
      %v289 = vld [vmem:[%s1 + $0x20] sm:$0xff]
      %v290 = vld [vmem:[%s1 + $0x28] sm:$0xff]
      %v291 = vld [vmem:[%s1 + $0x30] sm:$0xff]
      %v292 = vld [vmem:[%s1 + $0x38] sm:$0xff]
      %v293 = vld [vmem:[%s1 + $0x40] sm:$0xff]
      %v294 = vld [vmem:[%s1 + $0x48] sm:$0xff]
      %v295 = vld [vmem:[%s1 + $0x50] sm:$0xff]
      %v296 = vld [vmem:[%s1 + $0x58] sm:$0xff]
      %v297 = vld [vmem:[%s1 + $0x60] sm:$0xff]
      %v298 = vld [vmem:[%s1 + $0x68] sm:$0xff]
      %v299 = vld [vmem:[%s1 + $0x70] sm:$0xff]
      %v300 = vld [vmem:[%s1 + $0x78] sm:$0xff]
      %v301 = vld [vmem:[%s2] sm:$0x3]
      %v303 = vlaneseq
      %v304 = vshrl.u32 %v303, 7
      %v305 = vsub.s32 0, %v304
      %v306 = vrot.slane %v301, %v305
      %v307 = vlaneseq
      %v308 = vshrl.u32 %v307, 7
      %v309 = vsub.s32 1, %v308
      %v310 = vrot.slane %v301, %v309
      %v315 = vunpack.c.l.b16 %v283
      %v316 = vunpack.c.l.b16 %v284
      %v317 = vpack.c.b16 %v316, %v315
      %v335 = vunpack.c.l.b16 %v285
      %v336 = vunpack.c.h.b16 %v285
      %v337 = vunpack.c.l.b16 %v286
      %v338 = vunpack.c.h.b16 %v286
      %v339 = vunpack.c.l.b16 %v287
      %v340 = vunpack.c.h.b16 %v287
      %v341 = vunpack.c.l.b16 %v288
      %v342 = vunpack.c.h.b16 %v288
      %v343 = vunpack.c.l.b16 %v289
      %v344 = vunpack.c.h.b16 %v289
      %v345 = vunpack.c.l.b16 %v290
      %v346 = vunpack.c.h.b16 %v290
      %v347 = vunpack.c.l.b16 %v291
      %v348 = vunpack.c.h.b16 %v291
      %v349 = vunpack.c.l.b16 %v292
      %v350 = vunpack.c.h.b16 %v292
      %v351 = vunpack.c.l.b16 %v293
      %v352 = vunpack.c.h.b16 %v293
      %v353 = vunpack.c.l.b16 %v294
      %v354 = vunpack.c.h.b16 %v294
      %v355 = vunpack.c.l.b16 %v295
      %v356 = vunpack.c.h.b16 %v295
      %v357 = vunpack.c.l.b16 %v296
      %v358 = vunpack.c.h.b16 %v296
      %v359 = vunpack.c.l.b16 %v297
      %v360 = vunpack.c.h.b16 %v297
      %v361 = vunpack.c.l.b16 %v298
      %v362 = vunpack.c.h.b16 %v298
      %v363 = vunpack.c.l.b16 %v299
      %v364 = vunpack.c.h.b16 %v299
      %v365 = vunpack.c.l.b16 %v300
      %v366 = vunpack.c.h.b16 %v300
      %v367 = vpack.c.b16 %v337, %v335
      %v368 = vpack.c.b16 %v338, %v336
      %v369 = vpack.c.b16 %v341, %v339
      %v370 = vpack.c.b16 %v342, %v340
      %v371 = vpack.c.b16 %v345, %v343
      %v372 = vpack.c.b16 %v346, %v344
      %v373 = vpack.c.b16 %v349, %v347
      %v374 = vpack.c.b16 %v350, %v348
      %v375 = vpack.c.b16 %v353, %v351
      %v376 = vpack.c.b16 %v354, %v352
      %v377 = vpack.c.b16 %v357, %v355
      %v378 = vpack.c.b16 %v358, %v356
      %v379 = vpack.c.b16 %v361, %v359
      %v380 = vpack.c.b16 %v362, %v360
      %v381 = vpack.c.b16 %v365, %v363
      %v382 = vpack.c.b16 %v366, %v364
      %399 = vmatprep.subr.bf16.mxu0 %v368
      %400 = vmatpush1.bf16.msra.mxu0 %v367
      %401 = vmatprep.subr.bf16.mxu0 %v370
      %402 = vmatpush1.bf16.msra.mxu0 %v369
      %403 = vmatprep.subr.bf16.mxu0 %v372
      %404 = vmatpush1.bf16.msra.mxu0 %v371
      %405 = vmatprep.subr.bf16.mxu0 %v374
      %406 = vmatpush1.bf16.msra.mxu0 %v373
      %407 = vmatprep.subr.bf16.mxu0 %v376
      %408 = vmatpush1.bf16.msra.mxu0 %v375
      %409 = vmatprep.subr.bf16.mxu0 %v378
      %410 = vmatpush1.bf16.msra.mxu0 %v377
      %411 = vmatprep.subr.bf16.mxu0 %v380
      %412 = vmatpush1.bf16.msra.mxu0 %v379
      %413 = vmatprep.subr.bf16.mxu0 %v382
      %414 = vmatpush1.bf16.msra.mxu0 %v381
      %415 = vmatprep.subr.bf16.mxu0 0
      %416 = vmatpush1.bf16.msra.mxu0 0
      %417 = vmatprep.subr.bf16.mxu0 0
      %418 = vmatpush1.bf16.msra.mxu0 0
      %419 = vmatprep.subr.bf16.mxu0 0
      %420 = vmatpush1.bf16.msra.mxu0 0
      %421 = vmatprep.subr.bf16.mxu0 0
      %422 = vmatpush1.bf16.msra.mxu0 0
      %423 = vmatprep.subr.bf16.mxu0 0
      %424 = vmatpush1.bf16.msra.mxu0 0
      %425 = vmatprep.subr.bf16.mxu0 0
      %426 = vmatpush1.bf16.msra.mxu0 0
      %427 = vmatprep.subr.bf16.mxu0 0
      %428 = vmatpush1.bf16.msra.mxu0 0
      %429 = vmatprep.subr.bf16.mxu0 0
      %430 = vmatpush1.bf16.msra.mxu0 0
      %431 = vmatprep.mubr.bf16.mxu0 0
      %432 = vmatmul.mubr.bf16.gmra.mrb[0].mxu0 %v317
      %v433 = vpop.f32.mrb[0].mxu0
      %v434 = vadd.f32 %v306, %v433
      %v435 = vpop.f32.mrb[0].mxu0
      %v436 = vadd.f32 %v310, %v435
      %v437 = vpop.f32.mrb[0].mxu0
      %v438 = vadd.f32 %v306, %v437
      %v439 = vpop.f32.mrb[0].mxu0
      %v440 = vadd.f32 %v310, %v439
      %441 = vdwg.mxu0
      %v442 = vmul.f32 %v434, %v434
      %v443 = vmul.f32 %v436, %v436
      %v444 = vmul.f32 %v438, %v438
      %v445 = vmul.f32 %v440, %v440
      %v446 = vmul.f32 %v434, %v442
      %v447 = vmul.f32 %v436, %v443
      %v448 = vmul.f32 %v438, %v444
      %v449 = vmul.f32 %v440, %v445
      %v450 = vmul.f32 %v446, 0.044715
      %v451 = vmul.f32 %v447, 0.044715
      %v452 = vmul.f32 %v448, 0.044715
      %v453 = vmul.f32 %v449, 0.044715
      %v454 = vadd.f32 %v434, %v450
      %v455 = vadd.f32 %v436, %v451
      %v456 = vadd.f32 %v438, %v452
      %v457 = vadd.f32 %v440, %v453
      %v458 = vmul.f32 %v454, 0.7978846
      %v459 = vmul.f32 %v455, 0.7978846
      %v460 = vmul.f32 %v456, 0.7978846
      %v461 = vmul.f32 %v457, 0.7978846
      %v462 = vtanh.pop %v458
      %v463 = vtanh.pop %v459
      %v464 = vtanh.pop %v460
      %v465 = vtanh.pop %v461
      %v466 = vadd.f32 %v462, 1.0
      %v467 = vadd.f32 %v463, 1.0
      %v468 = vadd.f32 %v464, 1.0
      %v469 = vadd.f32 %v465, 1.0
      %v470 = vmul.f32 %v466, 0.5
      %v471 = vmul.f32 %v467, 0.5
      %v472 = vmul.f32 %v468, 0.5
      %v473 = vmul.f32 %v469, 0.5
      %v474 = vmul.f32 %v434, %v470
      %v475 = vmul.f32 %v436, %v471
      %v476 = vmul.f32 %v438, %v472
      %v477 = vmul.f32 %v440, %v473
      %v478 = vpack.c.bf16 %v476, %v474
      %v479 = vpack.c.bf16 %v477, %v475
      %v480 = vld [vmem:[%s3] sm:$0xf]
      %v481 = vld [vmem:[%s3 + $0x4] sm:$0xf]
      %v482 = vld [vmem:[%s3 + $0x8] sm:$0xf]
      %v483 = vld [vmem:[%s3 + $0xc] sm:$0xf]
      %v484 = vld [vmem:[%s3 + $0x10] sm:$0xf]
      %v485 = vld [vmem:[%s3 + $0x14] sm:$0xf]
      %v486 = vld [vmem:[%s3 + $0x18] sm:$0xf]
      %v487 = vld [vmem:[%s3 + $0x1c] sm:$0xf]
      %v488 = vld [vmem:[%s3 + $0x20] sm:$0xf]
      %v489 = vld [vmem:[%s3 + $0x24] sm:$0xf]
      %v490 = vld [vmem:[%s3 + $0x28] sm:$0xf]
      %v491 = vld [vmem:[%s3 + $0x2c] sm:$0xf]
      %v492 = vld [vmem:[%s3 + $0x30] sm:$0xf]
      %v493 = vld [vmem:[%s3 + $0x34] sm:$0xf]
      %v494 = vld [vmem:[%s3 + $0x38] sm:$0xf]
      %v495 = vld [vmem:[%s3 + $0x3c] sm:$0xf]
      %v496 = vld [vmem:[%s3 + $0x40] sm:$0xf]
      %v497 = vld [vmem:[%s3 + $0x44] sm:$0xf]
      %v498 = vld [vmem:[%s3 + $0x48] sm:$0xf]
      %v499 = vld [vmem:[%s3 + $0x4c] sm:$0xf]
      %v500 = vld [vmem:[%s3 + $0x50] sm:$0xf]
      %v501 = vld [vmem:[%s3 + $0x54] sm:$0xf]
      %v502 = vld [vmem:[%s3 + $0x58] sm:$0xf]
      %v503 = vld [vmem:[%s3 + $0x5c] sm:$0xf]
      %v504 = vld [vmem:[%s3 + $0x60] sm:$0xf]
      %v505 = vld [vmem:[%s3 + $0x64] sm:$0xf]
      %v506 = vld [vmem:[%s3 + $0x68] sm:$0xf]
      %v507 = vld [vmem:[%s3 + $0x6c] sm:$0xf]
      %v508 = vld [vmem:[%s3 + $0x70] sm:$0xf]
      %v509 = vld [vmem:[%s3 + $0x74] sm:$0xf]
      %v510 = vld [vmem:[%s3 + $0x78] sm:$0xf]
      %v511 = vld [vmem:[%s3 + $0x7c] sm:$0xf]
      %v512 = vld [vmem:[%s4] sm:$0x1]
      %v514 = vlaneseq
      %v515 = vshrl.u32 %v514, 7
      %v516 = vsub.s32 0, %v515
      %v517 = vrot.slane %v512, %v516
      %v551 = vunpack.c.l.b16 %v480
      %v552 = vunpack.c.l.b16 %v481
      %v553 = vunpack.c.l.b16 %v482
      %v554 = vunpack.c.l.b16 %v483
      %v555 = vunpack.c.l.b16 %v484
      %v556 = vunpack.c.l.b16 %v485
      %v557 = vunpack.c.l.b16 %v486
      %v558 = vunpack.c.l.b16 %v487
      %v559 = vunpack.c.l.b16 %v488
      %v560 = vunpack.c.l.b16 %v489
      %v561 = vunpack.c.l.b16 %v490
      %v562 = vunpack.c.l.b16 %v491
      %v563 = vunpack.c.l.b16 %v492
      %v564 = vunpack.c.l.b16 %v493
      %v565 = vunpack.c.l.b16 %v494
      %v566 = vunpack.c.l.b16 %v495
      %v567 = vunpack.c.l.b16 %v496
      %v568 = vunpack.c.l.b16 %v497
      %v569 = vunpack.c.l.b16 %v498
      %v570 = vunpack.c.l.b16 %v499
      %v571 = vunpack.c.l.b16 %v500
      %v572 = vunpack.c.l.b16 %v501
      %v573 = vunpack.c.l.b16 %v502
      %v574 = vunpack.c.l.b16 %v503
      %v575 = vunpack.c.l.b16 %v504
      %v576 = vunpack.c.l.b16 %v505
      %v577 = vunpack.c.l.b16 %v506
      %v578 = vunpack.c.l.b16 %v507
      %v579 = vunpack.c.l.b16 %v508
      %v580 = vunpack.c.l.b16 %v509
      %v581 = vunpack.c.l.b16 %v510
      %v582 = vunpack.c.l.b16 %v511
      %v583 = vpack.c.b16 %v552, %v551
      %v584 = vpack.c.b16 %v554, %v553
      %v585 = vpack.c.b16 %v556, %v555
      %v586 = vpack.c.b16 %v558, %v557
      %v587 = vpack.c.b16 %v560, %v559
      %v588 = vpack.c.b16 %v562, %v561
      %v589 = vpack.c.b16 %v564, %v563
      %v590 = vpack.c.b16 %v566, %v565
      %v591 = vpack.c.b16 %v568, %v567
      %v592 = vpack.c.b16 %v570, %v569
      %v593 = vpack.c.b16 %v572, %v571
      %v594 = vpack.c.b16 %v574, %v573
      %v595 = vpack.c.b16 %v576, %v575
      %v596 = vpack.c.b16 %v578, %v577
      %v597 = vpack.c.b16 %v580, %v579
      %v598 = vpack.c.b16 %v582, %v581
      %615 = vmatprep.subr.bf16.mxu0 0
      %616 = vmatpush1.bf16.msra.mxu0 %v583
      %617 = vmatprep.subr.bf16.mxu0 0
      %618 = vmatpush1.bf16.msra.mxu0 %v584
      %619 = vmatprep.subr.bf16.mxu0 0
      %620 = vmatpush1.bf16.msra.mxu0 %v585
      %621 = vmatprep.subr.bf16.mxu0 0
      %622 = vmatpush1.bf16.msra.mxu0 %v586
      %623 = vmatprep.subr.bf16.mxu0 0
      %624 = vmatpush1.bf16.msra.mxu0 %v587
      %625 = vmatprep.subr.bf16.mxu0 0
      %626 = vmatpush1.bf16.msra.mxu0 %v588
      %627 = vmatprep.subr.bf16.mxu0 0
      %628 = vmatpush1.bf16.msra.mxu0 %v589
      %629 = vmatprep.subr.bf16.mxu0 0
      %630 = vmatpush1.bf16.msra.mxu0 %v590
      %631 = vmatprep.subr.bf16.mxu0 0
      %632 = vmatpush1.bf16.msra.mxu0 %v591
      %633 = vmatprep.subr.bf16.mxu0 0
      %634 = vmatpush1.bf16.msra.mxu0 %v592
      %635 = vmatprep.subr.bf16.mxu0 0
      %636 = vmatpush1.bf16.msra.mxu0 %v593
      %637 = vmatprep.subr.bf16.mxu0 0
      %638 = vmatpush1.bf16.msra.mxu0 %v594
      %639 = vmatprep.subr.bf16.mxu0 0
      %640 = vmatpush1.bf16.msra.mxu0 %v595
      %641 = vmatprep.subr.bf16.mxu0 0
      %642 = vmatpush1.bf16.msra.mxu0 %v596
      %643 = vmatprep.subr.bf16.mxu0 0
      %644 = vmatpush1.bf16.msra.mxu0 %v597
      %645 = vmatprep.subr.bf16.mxu0 0
      %646 = vmatpush1.bf16.msra.mxu0 %v598
      %647 = vmatprep.mubr.bf16.mxu0 %v479
      %648 = vmatmul.mubr.bf16.gmra.mrb[0].mxu0 %v478
      %v649 = vpop.f32.mrb[0].mxu0
      %v650 = vadd.f32 %v517, %v649
      %v651 = vpop.f32.mrb[0].mxu0
      %v652 = vpop.f32.mrb[0].mxu0
      %v653 = vadd.f32 %v517, %v652
      %v654 = vpop.f32.mrb[0].mxu0
      %655 = vdwg.mxu0
      %v656 = vunpack.c.l.bf16 %v283
      %v657 = vunpack.c.l.bf16 %v284
      %v658 = vadd.f32 %v650, %v656
      %v659 = vadd.f32 %v653, %v657
      %660 = vadd.xlane.f32.xlu0 %v658
      %v661 = vpop.xlane.xlu0 %660
      %662 = vadd.xlane.f32.xlu0 %v659
      %v663 = vpop.xlane.xlu0 %662
      %v664 = vrcp.pop 128.0
      %v665 = vmul.f32 %v661, %v664
      %v666 = vmul.f32 %v663, %v664
      %v667 = vsub.f32 %v658, %v665
      %v668 = vsub.f32 %v659, %v666
      %v669 = vmul.f32 %v667, %v667
      %v670 = vmul.f32 %v668, %v668
      %671 = vadd.xlane.f32.xlu0 %v669
      %v672 = vpop.xlane.xlu0 %671
      %673 = vadd.xlane.f32.xlu0 %v670
      %v674 = vpop.xlane.xlu0 %673
      %v675 = vmul.f32 %v672, %v664
      %v676 = vmul.f32 %v674, %v664
      %v677 = vadd.f32 %v675, 1e-12
      %v678 = vadd.f32 %v676, 1e-12
      %v679 = vrsqrt.pop %v677
      %v680 = vrsqrt.pop %v678
      %v681 = vmul.f32 %v667, %v679
      %v682 = vmul.f32 %v668, %v680
      %v683 = vld [vmem:[%s5] sm:$0x1]
      %v685 = vlaneseq
      %v686 = vshrl.u32 %v685, 7
      %v687 = vsub.s32 0, %v686
      %v688 = vrot.slane %v683, %v687
      %v690 = vmul.f32 %v681, %v688
      %v691 = vmul.f32 %v682, %v688
      %v692 = vld [vmem:[%s6] sm:$0x1]
      %v694 = vlaneseq
      %v695 = vshrl.u32 %v694, 7
      %v696 = vsub.s32 0, %v695
      %v697 = vrot.slane %v692, %v696
      %v699 = vadd.f32 %v690, %v697
      %v700 = vadd.f32 %v691, %v697
      %v701 = vpack.c.bf16 %v700, %v699
      %v703 = vunpack.c.l.b16 %v701
      %v704 = vunpack.c.h.b16 %v701
      %v705 = vpack.c.b16 %v703, %v703
      %v706 = vpack.c.b16 %v704, %v704
      %709 = vst [vmem:[%s280] sm:$0xf] %v705
      %710 = vst [vmem:[%s280 + $0x4] sm:$0xf] %v706
      %s711 = smul.u32 2, %s18
      %p712 = scmp.lt.s32.totalorder %s711, 3
      %s713 = scalar_select %p712, %s711, 3
      %s714 = smul.addr %s713, 4
      %s715 = scalar_lea.vmem %s7, %s714
      // Predicated region
      $region49: #{_lambda_.8} parent=47 // pred_check
        %p716 = pneg %p188
      $region50: #{_lambda_.8} parent=47 // pred_check_branch
        %718 = sbr.rel (%p716) target = $region52
      $region51: #{_lambda_.8} parent=47 // pred_region
        %s719 = smul.u32 2, %s18
      $region52: #{_lambda_.8} parent=47 // pred_fallthru
        _
    $region48: #{_lambda_.8} parent=5 // pred_fallthru
      _
    %p720 = scmp.le.s32.totalorder 2, %s13
    // Predicated region
    $region53: #{_lambda_.8} parent=5 // pred_check
      %p721 = pneg %p720
    $region54: #{_lambda_.8} parent=5 // pred_check_branch
      %723 = sbr.rel (%p721) target = $region56
    $region55: #{_lambda_.8} parent=5 // pred_region
      %s724 = ssub.s32 %s13, 2
      // Predicated region
      $region57: #{_lambda_.8} parent=55 // pred_check
        %p725 = pneg %p194
      $region58: #{_lambda_.8} parent=55 // pred_check_branch
        %727 = sbr.rel (%p725) target = $region60
      $region59: #{_lambda_.8} parent=55 // pred_region
        %s728 = smul.u32 2, %s19
        %p729 = scmp.lt.s32.totalorder %s728, 3
        %s730 = scalar_select %p729, %s728, 3
        %s731 = smul.addr %s730, 4
        %s732 = scalar_lea.vmem %s7, %s731
      $region60: #{_lambda_.8} parent=55 // pred_fallthru
        _
    $region56: #{_lambda_.8} parent=5 // pred_fallthru
      _
  $region6: #{_lambda_.8} parent=0 // loop_footer
    %s17 = sadd.s32 1, %s13
  $region7: #{_lambda_.8} parent=0 // loop_footer_branch
    %12 = sbr.rel target = $region3
  $region8: #{_lambda_.8} parent=0 // loop_exit
    _

// kernel: _lambda_.11
$region0: #{_lambda_.11}
  #allocation0 [shape = 'u32[]', space=smem, size = 0x4, offset = 0x4, fixed_abs, tag = 'smem constant byte address 0x4 - core index']
  #allocation1 [shape = 'u32[144,128]{1,0:T(1,128)}', space=vmem, size = 0x12000, scoped, tag = 'internal scratch']
  #allocation2 [shape = 'f32[3,16,1]{2,1,0:T(8,128)}', space=vmem, size = 0x6000, scoped, tag = 'scratch operand']
  %s0 = inlined_call_operand.vmem [shape: bf16[32,128], index: 0, kind: input, shape index: {}]
  %s1 = inlined_call_operand.vmem [shape: bf16[128,512], index: 1, kind: input, shape index: {}]
  %s2 = inlined_call_operand.vmem [shape: f32[1,512], index: 2, kind: input, shape index: {}]
  %s3 = inlined_call_operand.vmem [shape: s32[32,1], index: 3, kind: input, shape index: {}]
  %s4 = inlined_call_operand.vmem [shape: f32[32,1], index: 4, kind: output, shape index: {}]
  %s5 = sld [smem:[#allocation0]]
  $region57: #{_lambda_.11} parent=0
    _
  %s7 = ssub.s32 1, %s5
  %s8 = scalar_select 0, %s7, %s5
  loop: start=0, step=1, limit=4
  $region2: #{_lambda_.11} parent=0 // loop_pre_header
    _
  $region3: #{_lambda_.11} parent=0 // loop_header
    %s10 = sphi 0, %s14
    %p11 = scmp.ge.s32.totalorder %s10, 4
    %s17 = sphi 0, %s29
    %s18 = sphi 0, %s25
    %s19 = sphi 0, %s17
    %s20 = sphi 0, %s18
    %s21 = sphi 0, %s19
    %s22 = sphi 0, %s20
    %s32 = sphi 0, %s34
    %s35 = sphi 0, %s32
    %s36 = sphi 0, %s35
    %s52 = sphi 0, %s36
    %s58 = sphi 0, %s60
    %s61 = sphi 0, %s58
    %s62 = sphi 0, %s61
    %s78 = sphi 0, %s62
    %s84 = sphi 0, %s86
    %s87 = sphi 0, %s84
    %s88 = sphi 0, %s87
    %s104 = sphi 0, %s88
    %s110 = sphi 0, %s112
    %s113 = sphi 0, %s110
    %s114 = sphi 0, %s113
    %s130 = sphi 0, %s114
    %s136 = sphi 0, %s138
    %s139 = sphi 0, %s136
    %s140 = sphi 0, %s139
    %s156 = sphi 0, %s140
  $region4: #{_lambda_.11} parent=0 // loop_header_branch
    %13 = sbr.rel (%p11) target = $region8
  $region5: #{_lambda_.11} parent=0 // loop_body
    %s15 = ssub.s32 %s10, 1
    %s16 = ssub.s32 %s10, 2
    %s23 = sadd.s32 1, %s18
    %p24 = scmp.ge.s32.totalorder %s23, 1
    %s25 = scalar_select %p24, 0, %s23
    %s26 = sadd.s32 1, %s17
    %s27 = scalar_select %p24, %s26, %s17
    %p28 = scmp.ge.s32.totalorder %s27, 2
    %s29 = scalar_select %p28, 0, %s27
    %s30 = ssub.s32 %s17, %s29
    %p31 = scmp.eq.s32.totalorder %s30, 0
    %s33 = sadd.s32 %s32, 1
    %s34 = scalar_select %p31, %s32, %s33
    %p37 = pneg %p31
    %p38 = scmp.eq.s32.totalorder %s10, 1
    %p39 = por %p37, %p38
    %p40 = scmp.ne.s32.totalorder %s32, %s35
    %p41 = scmp.eq.s32.totalorder %s10, 0
    %p42 = por %p40, %p41
    %p43 = scmp.ne.s32.totalorder %s32, %s35
    %p44 = scmp.eq.s32.totalorder %s15, 1
    %p45 = por %p43, %p44
    %p46 = scmp.ne.s32.totalorder %s35, %s36
    %p47 = scmp.eq.s32.totalorder %s15, 0
    %p48 = por %p46, %p47
    %p49 = scmp.ne.s32.totalorder %s35, %s36
    %p50 = scmp.eq.s32.totalorder %s16, 1
    %p51 = por %p49, %p50
    %p53 = scmp.ne.s32.totalorder %s36, %s52
    %p54 = scmp.eq.s32.totalorder %s16, 0
    %p55 = por %p53, %p54
    %s56 = ssub.s32 %s18, %s25
    %p57 = scmp.eq.s32.totalorder %s56, 0
    %s59 = sadd.s32 %s58, 1
    %s60 = scalar_select %p57, %s58, %s59
    %p63 = pneg %p57
    %p64 = scmp.eq.s32.totalorder %s10, 1
    %p65 = por %p63, %p64
    %p66 = scmp.ne.s32.totalorder %s58, %s61
    %p67 = scmp.eq.s32.totalorder %s10, 0
    %p68 = por %p66, %p67
    %p69 = scmp.ne.s32.totalorder %s58, %s61
    %p70 = scmp.eq.s32.totalorder %s15, 1
    %p71 = por %p69, %p70
    %p72 = scmp.ne.s32.totalorder %s61, %s62
    %p73 = scmp.eq.s32.totalorder %s15, 0
    %p74 = por %p72, %p73
    %p75 = scmp.ne.s32.totalorder %s61, %s62
    %p76 = scmp.eq.s32.totalorder %s16, 1
    %p77 = por %p75, %p76
    %p79 = scmp.ne.s32.totalorder %s62, %s78
    %p80 = scmp.eq.s32.totalorder %s16, 0
    %p81 = por %p79, %p80
    %s82 = ssub.s32 %s18, %s25
    %p83 = scmp.eq.s32.totalorder %s82, 0
    %s85 = sadd.s32 %s84, 1
    %s86 = scalar_select %p83, %s84, %s85
    %p89 = pneg %p83
    %p90 = scmp.eq.s32.totalorder %s10, 1
    %p91 = por %p89, %p90
    %p92 = scmp.ne.s32.totalorder %s84, %s87
    %p93 = scmp.eq.s32.totalorder %s10, 0
    %p94 = por %p92, %p93
    %p95 = scmp.ne.s32.totalorder %s84, %s87
    %p96 = scmp.eq.s32.totalorder %s15, 1
    %p97 = por %p95, %p96
    %p98 = scmp.ne.s32.totalorder %s87, %s88
    %p99 = scmp.eq.s32.totalorder %s15, 0
    %p100 = por %p98, %p99
    %p101 = scmp.ne.s32.totalorder %s87, %s88
    %p102 = scmp.eq.s32.totalorder %s16, 1
    %p103 = por %p101, %p102
    %p105 = scmp.ne.s32.totalorder %s88, %s104
    %p106 = scmp.eq.s32.totalorder %s16, 0
    %p107 = por %p105, %p106
    %s108 = ssub.s32 %s17, %s29
    %p109 = scmp.eq.s32.totalorder %s108, 0
    %s111 = sadd.s32 %s110, 1
    %s112 = scalar_select %p109, %s110, %s111
    %p115 = pneg %p109
    %p116 = scmp.eq.s32.totalorder %s10, 1
    %p117 = por %p115, %p116
    %p118 = scmp.ne.s32.totalorder %s110, %s113
    %p119 = scmp.eq.s32.totalorder %s10, 0
    %p120 = por %p118, %p119
    %p121 = scmp.ne.s32.totalorder %s110, %s113
    %p122 = scmp.eq.s32.totalorder %s15, 1
    %p123 = por %p121, %p122
    %p124 = scmp.ne.s32.totalorder %s113, %s114
    %p125 = scmp.eq.s32.totalorder %s15, 0
    %p126 = por %p124, %p125
    %p127 = scmp.ne.s32.totalorder %s113, %s114
    %p128 = scmp.eq.s32.totalorder %s16, 1
    %p129 = por %p127, %p128
    %p131 = scmp.ne.s32.totalorder %s114, %s130
    %p132 = scmp.eq.s32.totalorder %s16, 0
    %p133 = por %p131, %p132
    %s134 = ssub.s32 %s17, %s29
    %p135 = scmp.eq.s32.totalorder %s134, 0
    %s137 = sadd.s32 %s136, 1
    %s138 = scalar_select %p135, %s136, %s137
    %p141 = pneg %p135
    %p142 = scmp.eq.s32.totalorder %s10, 1
    %p143 = por %p141, %p142
    %p144 = scmp.ne.s32.totalorder %s136, %s139
    %p145 = scmp.eq.s32.totalorder %s10, 0
    %p146 = por %p144, %p145
    %p147 = scmp.ne.s32.totalorder %s136, %s139
    %p148 = scmp.eq.s32.totalorder %s15, 1
    %p149 = por %p147, %p148
    %p150 = scmp.ne.s32.totalorder %s139, %s140
    %p151 = scmp.eq.s32.totalorder %s15, 0
    %p152 = por %p150, %p151
    %p153 = scmp.ne.s32.totalorder %s139, %s140
    %p154 = scmp.eq.s32.totalorder %s16, 1
    %p155 = por %p153, %p154
    %p157 = scmp.ne.s32.totalorder %s140, %s156
    %p158 = scmp.eq.s32.totalorder %s16, 0
    %p159 = por %p157, %p158
    %p160 = scmp.le.s32.totalorder 1, %s10
    %p161 = scmp.lt.s32.totalorder %s10, 3
    %p162 = pnand %p160, %p161
    %p163 = pneg %p162
    // Predicated region
    $region9: #{_lambda_.11} parent=5 // pred_check
      _
    $region10: #{_lambda_.11} parent=5 // pred_check_branch
      %165 = sbr.rel (%p162) target = $region12
    $region11: #{_lambda_.11} parent=5 // pred_region
      %s166 = ssub.s32 %s10, 1
      // Predicated region
      $region13: #{_lambda_.11} parent=11 // pred_check
        %p167 = pneg %p74
      $region14: #{_lambda_.11} parent=11 // pred_check_branch
        %169 = sbr.rel (%p167) target = $region16
      $region15: #{_lambda_.11} parent=11 // pred_region
        %s170 = smul.u32 4, %s20
        %p171 = scmp.lt.s32.totalorder %s170, 3
        %s172 = scalar_select %p171, %s170, 3
        %s173 = smul.addr %s172, 4
        %s174 = scalar_lea.vmem %s1, %s173
        %s175 = smul.u32 4, %s20
      $region16: #{_lambda_.11} parent=11 // pred_fallthru
        _
      // Predicated region
      $region17: #{_lambda_.11} parent=11 // pred_check
        %p176 = pneg %p100
      $region18: #{_lambda_.11} parent=11 // pred_check_branch
        %178 = sbr.rel (%p176) target = $region20
      $region19: #{_lambda_.11} parent=11 // pred_region
        %s179 = smul.u32 4, %s20
        %p180 = scmp.lt.s32.totalorder %s179, 3
        %s181 = scalar_select %p180, %s179, 3
        %s182 = scalar_lea.vmem %s2, %s181
        %s183 = smul.u32 4, %s20
      $region20: #{_lambda_.11} parent=11 // pred_fallthru
        _
    $region12: #{_lambda_.11} parent=5 // pred_fallthru
      _
    %p184 = scmp.lt.s32.totalorder %s10, 2
    // Predicated region
    $region21: #{_lambda_.11} parent=5 // pred_check
      %p185 = pneg %p184
    $region22: #{_lambda_.11} parent=5 // pred_check_branch
      %187 = sbr.rel (%p185) target = $region24
    $region23: #{_lambda_.11} parent=5 // pred_region
      // Predicated region
      $region25: #{_lambda_.11} parent=23 // pred_check
        %p188 = pneg %p42
      $region26: #{_lambda_.11} parent=23 // pred_check_branch
        %190 = sbr.rel (%p188) target = $region28
      $region27: #{_lambda_.11} parent=23 // pred_region
        %s191 = smul.u32 2, %s17
        %p192 = scmp.lt.s32.totalorder %s191, 3
        %s193 = scalar_select %p192, %s191, 3
        %s194 = smul.addr %s193, 4
        %s195 = scalar_lea.vmem %s0, %s194
        %s196 = smul.u32 2, %s17
      $region28: #{_lambda_.11} parent=23 // pred_fallthru
        _
      // Predicated region
      $region29: #{_lambda_.11} parent=23 // pred_check
        %p197 = pneg %p120
      $region30: #{_lambda_.11} parent=23 // pred_check_branch
        %199 = sbr.rel (%p197) target = $region32
      $region31: #{_lambda_.11} parent=23 // pred_region
        %s200 = smul.u32 2, %s17
        %p201 = scmp.lt.s32.totalorder %s200, 3
        %s202 = scalar_select %p201, %s200, 3
        %s203 = smul.addr %s202, 8
        %s204 = scalar_lea.vmem %s3, %s203
        %s205 = smul.u32 2, %s17
      $region32: #{_lambda_.11} parent=23 // pred_fallthru
        _
    $region24: #{_lambda_.11} parent=5 // pred_fallthru
      _
    %p206 = scmp.le.s32.totalorder 1, %s10
    %p207 = scmp.lt.s32.totalorder %s10, 3
    %p208 = pnand %p206, %p207
    %p209 = pneg %p208
    // Predicated region
    $region33: #{_lambda_.11} parent=5 // pred_check
      _
    $region34: #{_lambda_.11} parent=5 // pred_check_branch
      %211 = sbr.rel (%p208) target = $region36
    $region35: #{_lambda_.11} parent=5 // pred_region
      %s212 = ssub.s32 %s10, 1
      %s213 = smul.u32 2, %s19
      %p214 = scmp.lt.s32.totalorder %s213, 3
      %s215 = scalar_select %p214, %s213, 3
      %s216 = smul.addr %s215, 4
      %s217 = scalar_lea.vmem %s0, %s216
      %p218 = pneg %p48
      %p219 = pneg %p45
      %s220 = smul.u32 4, %s20
      %p221 = scmp.lt.s32.totalorder %s220, 3
      %s222 = scalar_select %p221, %s220, 3
      %s223 = smul.addr %s222, 4
      %s224 = scalar_lea.vmem %s1, %s223
      %p225 = pneg %p74
      %p226 = pneg %p71
      %s227 = smul.u32 4, %s20
      %p228 = scmp.lt.s32.totalorder %s227, 3
      %s229 = scalar_select %p228, %s227, 3
      %s230 = scalar_lea.vmem %s2, %s229
      %p231 = pneg %p100
      %p232 = pneg %p97
      %s233 = smul.u32 2, %s19
      %p234 = scmp.lt.s32.totalorder %s233, 3
      %s235 = scalar_select %p234, %s233, 3
      %s236 = smul.addr %s235, 8
      %s237 = scalar_lea.vmem %s3, %s236
      %p238 = pneg %p126
      %p239 = pneg %p123
      %p240 = pneg %p152
      %p241 = pneg %p149
      %s242 = smul.u32 2, %s19
      %p243 = scmp.lt.s32.totalorder %s242, 3
      %s244 = scalar_select %p243, %s242, 3
      %s245 = smul.addr %s244, 8
      %s246 = scalar_lea.vmem %s4, %s245
      %s247 = smul.u32 2, %s19
      %p248 = scmp.lt.s32.totalorder %s247, 3
      %s249 = scalar_select %p248, %s247, 3
      %s250 = smul.addr %s249, 4
      %s251 = scalar_lea.vmem %s0, %s250
      %s252 = smul.u32 2, %s19
      %s253 = smul.u32 4, %s20
      %p254 = scmp.lt.s32.totalorder %s253, 3
      %s255 = scalar_select %p254, %s253, 3
      %s256 = smul.addr %s255, 4
      %s257 = scalar_lea.vmem %s1, %s256
      %s258 = smul.u32 4, %s20
      %s259 = smul.u32 4, %s20
      %p260 = scmp.lt.s32.totalorder %s259, 3
      %s261 = scalar_select %p260, %s259, 3
      %s262 = scalar_lea.vmem %s2, %s261
      %s263 = smul.u32 4, %s20
      %s264 = smul.u32 2, %s19
      %p265 = scmp.lt.s32.totalorder %s264, 3
      %s266 = scalar_select %p265, %s264, 3
      %s267 = smul.addr %s266, 8
      %s268 = scalar_lea.vmem %s3, %s267
      %s269 = smul.u32 2, %s19
      %s270 = smul.u32 2, %s19
      %p271 = scmp.lt.s32.totalorder %s270, 3
      %s272 = scalar_select %p271, %s270, 3
      %s273 = smul.addr %s272, 8
      %s274 = scalar_lea.vmem %s4, %s273
      %s275 = smul.u32 2, %s19
      %p277 = scmp.eq.s32.totalorder %s20, 0
      // Predicated region
      $region37: #{_lambda_.11} parent=35 // pred_check
        %p278 = pneg %p277
      $region38: #{_lambda_.11} parent=35 // pred_check_branch
        %280 = sbr.rel (%p278) target = $region40
      $region39: #{_lambda_.11} parent=35 // pred_region
        %vm281 = vcmask 7168
        %282 = vst.msk [vmem:[#allocation2] sm:$0xff] %vm281, -inf
        %283 = vst.msk [vmem:[#allocation2 + $0x8] sm:$0xff] %vm281, -inf
        %s284 = scalar_lea.vmem [#allocation2], 16
        %285 = vst.msk [vmem:[%s284] sm:$0xff] %vm281, 0.0
        %286 = vst.msk [vmem:[%s284 + $0x8] sm:$0xff] %vm281, 0.0
        %s287 = scalar_lea.vmem [#allocation2], 32
        %288 = vst.msk [vmem:[%s287] sm:$0xff] %vm281, 0.0
        %289 = vst.msk [vmem:[%s287 + $0x8] sm:$0xff] %vm281, 0.0
      $region40: #{_lambda_.11} parent=35 // pred_fallthru
        _
      %v290 = vld [vmem:[%s251] sm:$0xf]
      %v291 = vld [vmem:[%s251 + $0x4] sm:$0xf]
      %v292 = vld [vmem:[%s257] sm:$0xff]
      %v293 = vld [vmem:[%s257 + $0x8] sm:$0xff]
      %v294 = vld [vmem:[%s257 + $0x10] sm:$0xff]
      %v295 = vld [vmem:[%s257 + $0x18] sm:$0xff]
      %v296 = vld [vmem:[%s257 + $0x20] sm:$0xff]
      %v297 = vld [vmem:[%s257 + $0x28] sm:$0xff]
      %v298 = vld [vmem:[%s257 + $0x30] sm:$0xff]
      %v299 = vld [vmem:[%s257 + $0x38] sm:$0xff]
      %v300 = vld [vmem:[%s257 + $0x40] sm:$0xff]
      %v301 = vld [vmem:[%s257 + $0x48] sm:$0xff]
      %v302 = vld [vmem:[%s257 + $0x50] sm:$0xff]
      %v303 = vld [vmem:[%s257 + $0x58] sm:$0xff]
      %v304 = vld [vmem:[%s257 + $0x60] sm:$0xff]
      %v305 = vld [vmem:[%s257 + $0x68] sm:$0xff]
      %v306 = vld [vmem:[%s257 + $0x70] sm:$0xff]
      %v307 = vld [vmem:[%s257 + $0x78] sm:$0xff]
      %v308 = vld [vmem:[%s257 + $0x80] sm:$0xff]
      %v309 = vld [vmem:[%s257 + $0x88] sm:$0xff]
      %v310 = vld [vmem:[%s257 + $0x90] sm:$0xff]
      %v311 = vld [vmem:[%s257 + $0x98] sm:$0xff]
      %v312 = vld [vmem:[%s257 + $0xa0] sm:$0xff]
      %v313 = vld [vmem:[%s257 + $0xa8] sm:$0xff]
      %v314 = vld [vmem:[%s257 + $0xb0] sm:$0xff]
      %v315 = vld [vmem:[%s257 + $0xb8] sm:$0xff]
      %v316 = vld [vmem:[%s257 + $0xc0] sm:$0xff]
      %v317 = vld [vmem:[%s257 + $0xc8] sm:$0xff]
      %v318 = vld [vmem:[%s257 + $0xd0] sm:$0xff]
      %v319 = vld [vmem:[%s257 + $0xd8] sm:$0xff]
      %v320 = vld [vmem:[%s257 + $0xe0] sm:$0xff]
      %v321 = vld [vmem:[%s257 + $0xe8] sm:$0xff]
      %v322 = vld [vmem:[%s257 + $0xf0] sm:$0xff]
      %v323 = vld [vmem:[%s257 + $0xf8] sm:$0xff]
      %v324 = vld [vmem:[%s262] sm:$0xf]
      %v326 = vlaneseq
      %v327 = vshrl.u32 %v326, 7
      %v328 = vsub.s32 0, %v327
      %v329 = vrot.slane %v324, %v328
      %v330 = vlaneseq
      %v331 = vshrl.u32 %v330, 7
      %v332 = vsub.s32 1, %v331
      %v333 = vrot.slane %v324, %v332
      %v334 = vlaneseq
      %v335 = vshrl.u32 %v334, 7
      %v336 = vsub.s32 2, %v335
      %v337 = vrot.slane %v324, %v336
      %v338 = vlaneseq
      %v339 = vshrl.u32 %v338, 7
      %v340 = vsub.s32 3, %v339
      %v341 = vrot.slane %v324, %v340
      %v348 = vunpack.c.l.b16 %v290
      %v349 = vunpack.c.l.b16 %v291
      %v350 = vpack.c.b16 %v349, %v348
      %v384 = vunpack.c.l.b16 %v292
      %v385 = vunpack.c.h.b16 %v292
      %v386 = vunpack.c.l.b16 %v293
      %v387 = vunpack.c.h.b16 %v293
      %v388 = vunpack.c.l.b16 %v294
      %v389 = vunpack.c.h.b16 %v294
      %v390 = vunpack.c.l.b16 %v295
      %v391 = vunpack.c.h.b16 %v295
      %v392 = vunpack.c.l.b16 %v296
      %v393 = vunpack.c.h.b16 %v296
      %v394 = vunpack.c.l.b16 %v297
      %v395 = vunpack.c.h.b16 %v297
      %v396 = vunpack.c.l.b16 %v298
      %v397 = vunpack.c.h.b16 %v298
      %v398 = vunpack.c.l.b16 %v299
      %v399 = vunpack.c.h.b16 %v299
      %v400 = vunpack.c.l.b16 %v300
      %v401 = vunpack.c.h.b16 %v300
      %v402 = vunpack.c.l.b16 %v301
      %v403 = vunpack.c.h.b16 %v301
      %v404 = vunpack.c.l.b16 %v302
      %v405 = vunpack.c.h.b16 %v302
      %v406 = vunpack.c.l.b16 %v303
      %v407 = vunpack.c.h.b16 %v303
      %v408 = vunpack.c.l.b16 %v304
      %v409 = vunpack.c.h.b16 %v304
      %v410 = vunpack.c.l.b16 %v305
      %v411 = vunpack.c.h.b16 %v305
      %v412 = vunpack.c.l.b16 %v306
      %v413 = vunpack.c.h.b16 %v306
      %v414 = vunpack.c.l.b16 %v307
      %v415 = vunpack.c.h.b16 %v307
      %v416 = vunpack.c.l.b16 %v308
      %v417 = vunpack.c.h.b16 %v308
      %v418 = vunpack.c.l.b16 %v309
      %v419 = vunpack.c.h.b16 %v309
      %v420 = vunpack.c.l.b16 %v310
      %v421 = vunpack.c.h.b16 %v310
      %v422 = vunpack.c.l.b16 %v311
      %v423 = vunpack.c.h.b16 %v311
      %v424 = vunpack.c.l.b16 %v312
      %v425 = vunpack.c.h.b16 %v312
      %v426 = vunpack.c.l.b16 %v313
      %v427 = vunpack.c.h.b16 %v313
      %v428 = vunpack.c.l.b16 %v314
      %v429 = vunpack.c.h.b16 %v314
      %v430 = vunpack.c.l.b16 %v315
      %v431 = vunpack.c.h.b16 %v315
      %v432 = vunpack.c.l.b16 %v316
      %v433 = vunpack.c.h.b16 %v316
      %v434 = vunpack.c.l.b16 %v317
      %v435 = vunpack.c.h.b16 %v317
      %v436 = vunpack.c.l.b16 %v318
      %v437 = vunpack.c.h.b16 %v318
      %v438 = vunpack.c.l.b16 %v319
      %v439 = vunpack.c.h.b16 %v319
      %v440 = vunpack.c.l.b16 %v320
      %v441 = vunpack.c.h.b16 %v320
      %v442 = vunpack.c.l.b16 %v321
      %v443 = vunpack.c.h.b16 %v321
      %v444 = vunpack.c.l.b16 %v322
      %v445 = vunpack.c.h.b16 %v322
      %v446 = vunpack.c.l.b16 %v323
      %v447 = vunpack.c.h.b16 %v323
      %v448 = vpack.c.b16 %v388, %v384
      %v449 = vpack.c.b16 %v389, %v385
      %v450 = vpack.c.b16 %v390, %v386
      %v451 = vpack.c.b16 %v391, %v387
      %v452 = vpack.c.b16 %v396, %v392
      %v453 = vpack.c.b16 %v397, %v393
      %v454 = vpack.c.b16 %v398, %v394
      %v455 = vpack.c.b16 %v399, %v395
      %v456 = vpack.c.b16 %v404, %v400
      %v457 = vpack.c.b16 %v405, %v401
      %v458 = vpack.c.b16 %v406, %v402
      %v459 = vpack.c.b16 %v407, %v403
      %v460 = vpack.c.b16 %v412, %v408
      %v461 = vpack.c.b16 %v413, %v409
      %v462 = vpack.c.b16 %v414, %v410
      %v463 = vpack.c.b16 %v415, %v411
      %v464 = vpack.c.b16 %v420, %v416
      %v465 = vpack.c.b16 %v421, %v417
      %v466 = vpack.c.b16 %v422, %v418
      %v467 = vpack.c.b16 %v423, %v419
      %v468 = vpack.c.b16 %v428, %v424
      %v469 = vpack.c.b16 %v429, %v425
      %v470 = vpack.c.b16 %v430, %v426
      %v471 = vpack.c.b16 %v431, %v427
      %v472 = vpack.c.b16 %v436, %v432
      %v473 = vpack.c.b16 %v437, %v433
      %v474 = vpack.c.b16 %v438, %v434
      %v475 = vpack.c.b16 %v439, %v435
      %v476 = vpack.c.b16 %v444, %v440
      %v477 = vpack.c.b16 %v445, %v441
      %v478 = vpack.c.b16 %v446, %v442
      %v479 = vpack.c.b16 %v447, %v443
      %512 = vmatprep.subr.bf16.mxu0 %v449
      %513 = vmatpush1.bf16.msra.mxu0 %v448
      %514 = vmatprep.subr.bf16.mxu0 %v453
      %515 = vmatpush1.bf16.msra.mxu0 %v452
      %516 = vmatprep.subr.bf16.mxu0 %v457
      %517 = vmatpush1.bf16.msra.mxu0 %v456
      %518 = vmatprep.subr.bf16.mxu0 %v461
      %519 = vmatpush1.bf16.msra.mxu0 %v460
      %520 = vmatprep.subr.bf16.mxu0 %v465
      %521 = vmatpush1.bf16.msra.mxu0 %v464
      %522 = vmatprep.subr.bf16.mxu0 %v469
      %523 = vmatpush1.bf16.msra.mxu0 %v468
      %524 = vmatprep.subr.bf16.mxu0 %v473
      %525 = vmatpush1.bf16.msra.mxu0 %v472
      %526 = vmatprep.subr.bf16.mxu0 %v477
      %527 = vmatpush1.bf16.msra.mxu0 %v476
      %528 = vmatprep.subr.bf16.mxu0 0
      %529 = vmatpush1.bf16.msra.mxu0 0
      %530 = vmatprep.subr.bf16.mxu0 0
      %531 = vmatpush1.bf16.msra.mxu0 0
      %532 = vmatprep.subr.bf16.mxu0 0
      %533 = vmatpush1.bf16.msra.mxu0 0
      %534 = vmatprep.subr.bf16.mxu0 0
      %535 = vmatpush1.bf16.msra.mxu0 0
      %536 = vmatprep.subr.bf16.mxu0 0
      %537 = vmatpush1.bf16.msra.mxu0 0
      %538 = vmatprep.subr.bf16.mxu0 0
      %539 = vmatpush1.bf16.msra.mxu0 0
      %540 = vmatprep.subr.bf16.mxu0 0
      %541 = vmatpush1.bf16.msra.mxu0 0
      %542 = vmatprep.subr.bf16.mxu0 0
      %543 = vmatpush1.bf16.msra.mxu0 0
      %544 = vmatprep.mubr.bf16.mxu0 0
      %545 = vmatmul.mubr.bf16.gmra.mrb[0].mxu0 %v350
      %v546 = vpop.f32.mrb[0].mxu0
      %v547 = vadd.f32 %v329, %v546
      %v548 = vpop.f32.mrb[0].mxu0
      %v549 = vadd.f32 %v333, %v548
      %v550 = vpop.f32.mrb[0].mxu0
      %v551 = vadd.f32 %v329, %v550
      %v552 = vpop.f32.mrb[0].mxu0
      %v553 = vadd.f32 %v333, %v552
      %554 = vdwg.mxu0
      %555 = vmatprep.subr.bf16.mxu0 %v451
      %556 = vmatpush1.bf16.msra.mxu0 %v450
      %557 = vmatprep.subr.bf16.mxu0 %v455
      %558 = vmatpush1.bf16.msra.mxu0 %v454
      %559 = vmatprep.subr.bf16.mxu0 %v459
      %560 = vmatpush1.bf16.msra.mxu0 %v458
      %561 = vmatprep.subr.bf16.mxu0 %v463
      %562 = vmatpush1.bf16.msra.mxu0 %v462
      %563 = vmatprep.subr.bf16.mxu0 %v467
      %564 = vmatpush1.bf16.msra.mxu0 %v466
      %565 = vmatprep.subr.bf16.mxu0 %v471
      %566 = vmatpush1.bf16.msra.mxu0 %v470
      %567 = vmatprep.subr.bf16.mxu0 %v475
      %568 = vmatpush1.bf16.msra.mxu0 %v474
      %569 = vmatprep.subr.bf16.mxu0 %v479
      %570 = vmatpush1.bf16.msra.mxu0 %v478
      %571 = vmatprep.subr.bf16.mxu0 0
      %572 = vmatpush1.bf16.msra.mxu0 0
      %573 = vmatprep.subr.bf16.mxu0 0
      %574 = vmatpush1.bf16.msra.mxu0 0
      %575 = vmatprep.subr.bf16.mxu0 0
      %576 = vmatpush1.bf16.msra.mxu0 0
      %577 = vmatprep.subr.bf16.mxu0 0
      %578 = vmatpush1.bf16.msra.mxu0 0
      %579 = vmatprep.subr.bf16.mxu0 0
      %580 = vmatpush1.bf16.msra.mxu0 0
      %581 = vmatprep.subr.bf16.mxu0 0
      %582 = vmatpush1.bf16.msra.mxu0 0
      %583 = vmatprep.subr.bf16.mxu0 0
      %584 = vmatpush1.bf16.msra.mxu0 0
      %585 = vmatprep.subr.bf16.mxu0 0
      %586 = vmatpush1.bf16.msra.mxu0 0
      %587 = vmatprep.mubr.bf16.mxu0 0
      %588 = vmatmul.mubr.bf16.gmra.mrb[0].mxu0 %v350
      %v589 = vpop.f32.mrb[0].mxu0
      %v590 = vadd.f32 %v337, %v589
      %v591 = vpop.f32.mrb[0].mxu0
      %v592 = vadd.f32 %v341, %v591
      %v593 = vpop.f32.mrb[0].mxu0
      %v594 = vadd.f32 %v337, %v593
      %v595 = vpop.f32.mrb[0].mxu0
      %v596 = vadd.f32 %v341, %v595
      %597 = vdwg.mxu0
      %s598 = smul.u32 %s20, 512
      %v599 = vlaneseq
      %v600 = vand.u32 %v599, 127
      %v601 = vadd.s32 %v600, 128
      %v602 = vadd.s32 %v600, 256
      %v603 = vadd.s32 %v600, 384
      %v604 = vstv %s598
      %v605 = vadd.s32 %v604, %v600
      %v606 = vadd.s32 %v604, %v601
      %v607 = vadd.s32 %v604, %v602
      %v608 = vadd.s32 %v604, %v603
      %vm609 = vcmp.lt.s32.totalorder %v605, 512
      %vm610 = vcmp.lt.s32.totalorder %v606, 512
      %vm611 = vcmp.lt.s32.totalorder %v607, 512
      %vm612 = vcmp.lt.s32.totalorder %v608, 512
      %v613 = vsel %vm609, %v547, -1e+30
      %v614 = vsel %vm610, %v549, -1e+30
      %v615 = vsel %vm611, %v590, -1e+30
      %v616 = vsel %vm612, %v592, -1e+30
      %v617 = vsel %vm609, %v551, -1e+30
      %v618 = vsel %vm610, %v553, -1e+30
      %v619 = vsel %vm611, %v594, -1e+30
      %v620 = vsel %vm612, %v596, -1e+30
      %v621 = vld [vmem:[#allocation2] sm:$0xff]
      %v622 = vld [vmem:[#allocation2 + $0x8] sm:$0xff]
      %v623 = vmax.f32 %v613, %v615
      %v624 = vmax.f32 %v614, %v616
      %v625 = vmax.f32 %v623, %v624
      %626 = vmax.xlane.f32.xlu0 %v625
      %v627 = vpop.xlane.xlu0 %626
      %v628 = vmax.f32 %v617, %v619
      %v629 = vmax.f32 %v618, %v620
      %v630 = vmax.f32 %v628, %v629
      %631 = vmax.xlane.f32.xlu0 %v630
      %v632 = vpop.xlane.xlu0 %631
      %v633 = vmax.f32 %v621, %v627
      %v634 = vmax.f32 %v622, %v632
      %s635 = scalar_lea.vmem [#allocation2], 16
      %v636 = vld [vmem:[%s635] sm:$0xff]
      %v637 = vld [vmem:[%s635 + $0x8] sm:$0xff]
      %v638 = vsub.f32 %v621, %v633
      %v639 = vsub.f32 %v622, %v634
      %v640 = vmul.f32 %v638, 1.442695
      %v641 = vpow.pop %v640
      %v642 = vmul.f32 %v639, 1.442695
      %v643 = vpow.pop %v642
      %v644 = vmul.f32 %v636, %v641
      %v645 = vmul.f32 %v637, %v643
      %647 = vset.pattern.permute.xlu0 0
      %648 = vperm.xlu0 %647, %v633
      %v649 = vpop.permute.xlu0 %648
      %652 = vset.pattern.permute.xlu0 0
      %653 = vperm.xlu0 %652, %v634
      %v654 = vpop.permute.xlu0 %653
      %v656 = vsub.f32 %v613, %v649
      %v657 = vsub.f32 %v614, %v649
      %v658 = vsub.f32 %v615, %v649
      %v659 = vsub.f32 %v616, %v649
      %v660 = vsub.f32 %v617, %v654
      %v661 = vsub.f32 %v618, %v654
      %v662 = vsub.f32 %v619, %v654
      %v663 = vsub.f32 %v620, %v654
      %v664 = vmul.f32 %v656, 1.442695
      %v665 = vpow.pop %v664
      %v666 = vmul.f32 %v657, 1.442695
      %v667 = vpow.pop %v666
      %v668 = vmul.f32 %v658, 1.442695
      %v669 = vpow.pop %v668
      %v670 = vmul.f32 %v659, 1.442695
      %v671 = vpow.pop %v670
      %v672 = vmul.f32 %v660, 1.442695
      %v673 = vpow.pop %v672
      %v674 = vmul.f32 %v661, 1.442695
      %v675 = vpow.pop %v674
      %v676 = vmul.f32 %v662, 1.442695
      %v677 = vpow.pop %v676
      %v678 = vmul.f32 %v663, 1.442695
      %v679 = vpow.pop %v678
      %v680 = vadd.f32 %v665, %v667
      %v681 = vadd.f32 %v680, %v669
      %v682 = vadd.f32 %v681, %v671
      %683 = vadd.xlane.f32.xlu0 %v682
      %v684 = vpop.xlane.xlu0 %683
      %v685 = vadd.f32 %v673, %v675
      %v686 = vadd.f32 %v685, %v677
      %v687 = vadd.f32 %v686, %v679
      %688 = vadd.xlane.f32.xlu0 %v687
      %v689 = vpop.xlane.xlu0 %688
      %v690 = vadd.f32 %v644, %v684
      %v691 = vadd.f32 %v645, %v689
      %vm692 = vcmask 7168
      %693 = vst.msk [vmem:[%s635] sm:$0xff] %vm692, %v690
      %694 = vst.msk [vmem:[%s635 + $0x8] sm:$0xff] %vm692, %v691
      %695 = vst.msk [vmem:[#allocation2] sm:$0xff] %vm692, %v633
      %696 = vst.msk [vmem:[#allocation2 + $0x8] sm:$0xff] %vm692, %v634
      %s697 = scalar_lea.vmem [#allocation2], 32
      %v698 = vld [vmem:[%s697] sm:$0xff]
      %v699 = vld [vmem:[%s697 + $0x8] sm:$0xff]
      %v700 = vld [vmem:[%s268] sm:$0xff]
      %v701 = vld [vmem:[%s268 + $0x8] sm:$0xff]
      %702 = vset.pattern.permute.xlu0 0
      %703 = vperm.xlu0 %702, %v700
      %v704 = vpop.permute.xlu0 %703
      %705 = vset.pattern.permute.xlu0 0
      %706 = vperm.xlu0 %705, %v701
      %v707 = vpop.permute.xlu0 %706
      %vm708 = vcmp.eq.s32.totalorder %v605, %v704
      %vm709 = vcmp.eq.s32.totalorder %v606, %v704
      %vm710 = vcmp.eq.s32.totalorder %v607, %v704
      %vm711 = vcmp.eq.s32.totalorder %v608, %v704
      %vm712 = vcmp.eq.s32.totalorder %v605, %v707
      %vm713 = vcmp.eq.s32.totalorder %v606, %v707
      %vm714 = vcmp.eq.s32.totalorder %v607, %v707
      %vm715 = vcmp.eq.s32.totalorder %v608, %v707
      %v716 = vsel %vm708, %v613, 0.0
      %v717 = vsel %vm709, %v614, 0.0
      %v718 = vsel %vm710, %v615, 0.0
      %v719 = vsel %vm711, %v616, 0.0
      %v720 = vsel %vm712, %v617, 0.0
      %v721 = vsel %vm713, %v618, 0.0
      %v722 = vsel %vm714, %v619, 0.0
      %v723 = vsel %vm715, %v620, 0.0
      %v724 = vadd.f32 %v716, %v717
      %v725 = vadd.f32 %v724, %v718
      %v726 = vadd.f32 %v725, %v719
      %727 = vadd.xlane.f32.xlu0 %v726
      %v728 = vpop.xlane.xlu0 %727
      %v729 = vadd.f32 %v720, %v721
      %v730 = vadd.f32 %v729, %v722
      %v731 = vadd.f32 %v730, %v723
      %732 = vadd.xlane.f32.xlu0 %v731
      %v733 = vpop.xlane.xlu0 %732
      %v734 = vadd.f32 %v698, %v728
      %v735 = vadd.f32 %v699, %v733
      %736 = vst.msk [vmem:[%s697] sm:$0xff] %vm692, %v734
      %737 = vst.msk [vmem:[%s697 + $0x8] sm:$0xff] %vm692, %v735
      // Predicated region
      $region41: #{_lambda_.11} parent=35 // pred_check
        %p738 = pneg %p277
      $region42: #{_lambda_.11} parent=35 // pred_check_branch
        %740 = sbr.rel (%p738) target = $region44
      $region43: #{_lambda_.11} parent=35 // pred_region
        %v741 = vld [vmem:[#allocation2] sm:$0xff]
        %v742 = vld [vmem:[#allocation2 + $0x8] sm:$0xff]
        %v743 = vld [vmem:[%s635] sm:$0xff]
        %v744 = vld [vmem:[%s635 + $0x8] sm:$0xff]
        %v745 = vlog2.pop %v743
        %v746 = vmul.f32 %v745, 0.6931472
        %v747 = vlog2.pop %v744
        %v748 = vmul.f32 %v747, 0.6931472
        %v749 = vadd.f32 %v741, %v746
        %v750 = vadd.f32 %v742, %v748
        %v751 = vld [vmem:[%s697] sm:$0xff]
        %v752 = vld [vmem:[%s697 + $0x8] sm:$0xff]
        %v753 = vsub.f32 %v749, %v751
        %v754 = vsub.f32 %v750, %v752
        %755 = vst.msk [vmem:[%s274] sm:$0xff] %vm692, %v753
        %756 = vst.msk [vmem:[%s274 + $0x8] sm:$0xff] %vm692, %v754
      $region44: #{_lambda_.11} parent=35 // pred_fallthru
        _
      %s757 = smul.u32 2, %s19
      %p758 = scmp.lt.s32.totalorder %s757, 3
      %s759 = scalar_select %p758, %s757, 3
      %s760 = smul.addr %s759, 8
      %s761 = scalar_lea.vmem %s4, %s760
      // Predicated region
      $region45: #{_lambda_.11} parent=35 // pred_check
        %p762 = pneg %p149
      $region46: #{_lambda_.11} parent=35 // pred_check_branch
        %764 = sbr.rel (%p762) target = $region48
      $region47: #{_lambda_.11} parent=35 // pred_region
        %s765 = smul.u32 2, %s19
      $region48: #{_lambda_.11} parent=35 // pred_fallthru
        _
    $region36: #{_lambda_.11} parent=5 // pred_fallthru
      _
    %p766 = scmp.le.s32.totalorder 2, %s10
    // Predicated region
    $region49: #{_lambda_.11} parent=5 // pred_check
      %p767 = pneg %p766
    $region50: #{_lambda_.11} parent=5 // pred_check_branch
      %769 = sbr.rel (%p767) target = $region52
    $region51: #{_lambda_.11} parent=5 // pred_region
      %s770 = ssub.s32 %s10, 2
      // Predicated region
      $region53: #{_lambda_.11} parent=51 // pred_check
        %p771 = pneg %p155
      $region54: #{_lambda_.11} parent=51 // pred_check_branch
        %773 = sbr.rel (%p771) target = $region56
      $region55: #{_lambda_.11} parent=51 // pred_region
        %s774 = smul.u32 2, %s21
        %p775 = scmp.lt.s32.totalorder %s774, 3
        %s776 = scalar_select %p775, %s774, 3
        %s777 = smul.addr %s776, 8
        %s778 = scalar_lea.vmem %s4, %s777
      $region56: #{_lambda_.11} parent=51 // pred_fallthru
        _
    $region52: #{_lambda_.11} parent=5 // pred_fallthru
      _
  $region6: #{_lambda_.11} parent=0 // loop_footer
    %s14 = sadd.s32 1, %s10
  $region7: #{_lambda_.11} parent=0 // loop_footer_branch
    %9 = sbr.rel target = $region3
  $region8: #{_lambda_.11} parent=0 // loop_exit
    _

// kernel: _lambda_.7
$region0: #{_lambda_.7}
  #allocation0 [shape = 'u32[]', space=smem, size = 0x4, offset = 0x4, fixed_abs, tag = 'smem constant byte address 0x4 - core index']
  #allocation1 [shape = 'u32[144,128]{1,0:T(1,128)}', space=vmem, size = 0x12000, scoped, tag = 'internal scratch']
  %s0 = inlined_call_operand.vmem [shape: bf16[32,128], index: 0, kind: input, shape index: {}]
  %s1 = inlined_call_operand.vmem [shape: bf16[128,384], index: 1, kind: input, shape index: {}]
  %s2 = inlined_call_operand.vmem [shape: f32[1,384], index: 2, kind: input, shape index: {}]
  %s3 = inlined_call_operand.vmem [shape: bf16[128,128], index: 3, kind: input, shape index: {}]
  %s4 = inlined_call_operand.vmem [shape: f32[1,128], index: 4, kind: input, shape index: {}]
  %s5 = inlined_call_operand.vmem [shape: f32[1,128], index: 5, kind: input, shape index: {}]
  %s6 = inlined_call_operand.vmem [shape: f32[1,128], index: 6, kind: input, shape index: {}]
  %s7 = inlined_call_operand.vmem [shape: bf16[32,128], index: 7, kind: output, shape index: {}]
  %s8 = sld [smem:[#allocation0]]
  $region61: #{_lambda_.7} parent=0
    _
  %s10 = ssub.s32 1, %s8
  %s11 = scalar_select 0, %s10, %s8
  loop: start=0, step=1, limit=4
  $region2: #{_lambda_.7} parent=0 // loop_pre_header
    _
  $region3: #{_lambda_.7} parent=0 // loop_header
    %s13 = sphi 0, %s17
    %p14 = scmp.ge.s32.totalorder %s13, 4
    %s23 = sphi 0, %s25
    %s26 = sphi 0, %s23
    %s27 = sphi 0, %s26
    %s43 = sphi 0, %s27
    %s47 = sphi 0, %s47
    %s49 = sphi 0, %s47
    %s50 = sphi 0, %s49
    %s64 = sphi 0, %s50
    %s68 = sphi 0, %s68
    %s70 = sphi 0, %s68
    %s71 = sphi 0, %s70
    %s85 = sphi 0, %s71
    %s89 = sphi 0, %s89
    %s91 = sphi 0, %s89
    %s92 = sphi 0, %s91
    %s106 = sphi 0, %s92
    %s110 = sphi 0, %s110
    %s112 = sphi 0, %s110
    %s113 = sphi 0, %s112
    %s127 = sphi 0, %s113
    %s131 = sphi 0, %s131
    %s133 = sphi 0, %s131
    %s134 = sphi 0, %s133
    %s148 = sphi 0, %s134
    %s152 = sphi 0, %s152
    %s154 = sphi 0, %s152
    %s155 = sphi 0, %s154
    %s169 = sphi 0, %s155
    %s175 = sphi 0, %s177
    %s178 = sphi 0, %s175
    %s179 = sphi 0, %s178
    %s195 = sphi 0, %s179
  $region4: #{_lambda_.7} parent=0 // loop_header_branch
    %16 = sbr.rel (%p14) target = $region8
  $region5: #{_lambda_.7} parent=0 // loop_body
    %s18 = ssub.s32 %s13, 1
    %s19 = ssub.s32 %s13, 2
    %s20 = sadd.s32 %s13, 1
    %s21 = ssub.s32 %s13, %s20
    %p22 = scmp.eq.s32.totalorder %s21, 0
    %s24 = sadd.s32 %s23, 1
    %s25 = scalar_select %p22, %s23, %s24
    %p28 = pneg %p22
    %p29 = scmp.eq.s32.totalorder %s13, 1
    %p30 = por %p28, %p29
    %p31 = scmp.ne.s32.totalorder %s23, %s26
    %p32 = scmp.eq.s32.totalorder %s13, 0
    %p33 = por %p31, %p32
    %p34 = scmp.ne.s32.totalorder %s23, %s26
    %p35 = scmp.eq.s32.totalorder %s18, 1
    %p36 = por %p34, %p35
    %p37 = scmp.ne.s32.totalorder %s26, %s27
    %p38 = scmp.eq.s32.totalorder %s18, 0
    %p39 = por %p37, %p38
    %p40 = scmp.ne.s32.totalorder %s26, %s27
    %p41 = scmp.eq.s32.totalorder %s19, 1
    %p42 = por %p40, %p41
    %p44 = scmp.ne.s32.totalorder %s27, %s43
    %p45 = scmp.eq.s32.totalorder %s19, 0
    %p46 = por %p44, %p45
    %s48 = sadd.s32 %s47, 1
    %p51 = scmp.eq.s32.totalorder %s13, 1
    %p52 = scmp.ne.s32.totalorder %s47, %s49
    %p53 = scmp.eq.s32.totalorder %s13, 0
    %p54 = por %p52, %p53
    %p55 = scmp.ne.s32.totalorder %s47, %s49
    %p56 = scmp.eq.s32.totalorder %s18, 1
    %p57 = por %p55, %p56
    %p58 = scmp.ne.s32.totalorder %s49, %s50
    %p59 = scmp.eq.s32.totalorder %s18, 0
    %p60 = por %p58, %p59
    %p61 = scmp.ne.s32.totalorder %s49, %s50
    %p62 = scmp.eq.s32.totalorder %s19, 1
    %p63 = por %p61, %p62
    %p65 = scmp.ne.s32.totalorder %s50, %s64
    %p66 = scmp.eq.s32.totalorder %s19, 0
    %p67 = por %p65, %p66
    %s69 = sadd.s32 %s68, 1
    %p72 = scmp.eq.s32.totalorder %s13, 1
    %p73 = scmp.ne.s32.totalorder %s68, %s70
    %p74 = scmp.eq.s32.totalorder %s13, 0
    %p75 = por %p73, %p74
    %p76 = scmp.ne.s32.totalorder %s68, %s70
    %p77 = scmp.eq.s32.totalorder %s18, 1
    %p78 = por %p76, %p77
    %p79 = scmp.ne.s32.totalorder %s70, %s71
    %p80 = scmp.eq.s32.totalorder %s18, 0
    %p81 = por %p79, %p80
    %p82 = scmp.ne.s32.totalorder %s70, %s71
    %p83 = scmp.eq.s32.totalorder %s19, 1
    %p84 = por %p82, %p83
    %p86 = scmp.ne.s32.totalorder %s71, %s85
    %p87 = scmp.eq.s32.totalorder %s19, 0
    %p88 = por %p86, %p87
    %s90 = sadd.s32 %s89, 1
    %p93 = scmp.eq.s32.totalorder %s13, 1
    %p94 = scmp.ne.s32.totalorder %s89, %s91
    %p95 = scmp.eq.s32.totalorder %s13, 0
    %p96 = por %p94, %p95
    %p97 = scmp.ne.s32.totalorder %s89, %s91
    %p98 = scmp.eq.s32.totalorder %s18, 1
    %p99 = por %p97, %p98
    %p100 = scmp.ne.s32.totalorder %s91, %s92
    %p101 = scmp.eq.s32.totalorder %s18, 0
    %p102 = por %p100, %p101
    %p103 = scmp.ne.s32.totalorder %s91, %s92
    %p104 = scmp.eq.s32.totalorder %s19, 1
    %p105 = por %p103, %p104
    %p107 = scmp.ne.s32.totalorder %s92, %s106
    %p108 = scmp.eq.s32.totalorder %s19, 0
    %p109 = por %p107, %p108
    %s111 = sadd.s32 %s110, 1
    %p114 = scmp.eq.s32.totalorder %s13, 1
    %p115 = scmp.ne.s32.totalorder %s110, %s112
    %p116 = scmp.eq.s32.totalorder %s13, 0
    %p117 = por %p115, %p116
    %p118 = scmp.ne.s32.totalorder %s110, %s112
    %p119 = scmp.eq.s32.totalorder %s18, 1
    %p120 = por %p118, %p119
    %p121 = scmp.ne.s32.totalorder %s112, %s113
    %p122 = scmp.eq.s32.totalorder %s18, 0
    %p123 = por %p121, %p122
    %p124 = scmp.ne.s32.totalorder %s112, %s113
    %p125 = scmp.eq.s32.totalorder %s19, 1
    %p126 = por %p124, %p125
    %p128 = scmp.ne.s32.totalorder %s113, %s127
    %p129 = scmp.eq.s32.totalorder %s19, 0
    %p130 = por %p128, %p129
    %s132 = sadd.s32 %s131, 1
    %p135 = scmp.eq.s32.totalorder %s13, 1
    %p136 = scmp.ne.s32.totalorder %s131, %s133
    %p137 = scmp.eq.s32.totalorder %s13, 0
    %p138 = por %p136, %p137
    %p139 = scmp.ne.s32.totalorder %s131, %s133
    %p140 = scmp.eq.s32.totalorder %s18, 1
    %p141 = por %p139, %p140
    %p142 = scmp.ne.s32.totalorder %s133, %s134
    %p143 = scmp.eq.s32.totalorder %s18, 0
    %p144 = por %p142, %p143
    %p145 = scmp.ne.s32.totalorder %s133, %s134
    %p146 = scmp.eq.s32.totalorder %s19, 1
    %p147 = por %p145, %p146
    %p149 = scmp.ne.s32.totalorder %s134, %s148
    %p150 = scmp.eq.s32.totalorder %s19, 0
    %p151 = por %p149, %p150
    %s153 = sadd.s32 %s152, 1
    %p156 = scmp.eq.s32.totalorder %s13, 1
    %p157 = scmp.ne.s32.totalorder %s152, %s154
    %p158 = scmp.eq.s32.totalorder %s13, 0
    %p159 = por %p157, %p158
    %p160 = scmp.ne.s32.totalorder %s152, %s154
    %p161 = scmp.eq.s32.totalorder %s18, 1
    %p162 = por %p160, %p161
    %p163 = scmp.ne.s32.totalorder %s154, %s155
    %p164 = scmp.eq.s32.totalorder %s18, 0
    %p165 = por %p163, %p164
    %p166 = scmp.ne.s32.totalorder %s154, %s155
    %p167 = scmp.eq.s32.totalorder %s19, 1
    %p168 = por %p166, %p167
    %p170 = scmp.ne.s32.totalorder %s155, %s169
    %p171 = scmp.eq.s32.totalorder %s19, 0
    %p172 = por %p170, %p171
    %s173 = ssub.s32 %s13, %s20
    %p174 = scmp.eq.s32.totalorder %s173, 0
    %s176 = sadd.s32 %s175, 1
    %s177 = scalar_select %p174, %s175, %s176
    %p180 = pneg %p174
    %p181 = scmp.eq.s32.totalorder %s13, 1
    %p182 = por %p180, %p181
    %p183 = scmp.ne.s32.totalorder %s175, %s178
    %p184 = scmp.eq.s32.totalorder %s13, 0
    %p185 = por %p183, %p184
    %p186 = scmp.ne.s32.totalorder %s175, %s178
    %p187 = scmp.eq.s32.totalorder %s18, 1
    %p188 = por %p186, %p187
    %p189 = scmp.ne.s32.totalorder %s178, %s179
    %p190 = scmp.eq.s32.totalorder %s18, 0
    %p191 = por %p189, %p190
    %p192 = scmp.ne.s32.totalorder %s178, %s179
    %p193 = scmp.eq.s32.totalorder %s19, 1
    %p194 = por %p192, %p193
    %p196 = scmp.ne.s32.totalorder %s179, %s195
    %p197 = scmp.eq.s32.totalorder %s19, 0
    %p198 = por %p196, %p197
    %p199 = scmp.le.s32.totalorder 1, %s13
    %p200 = scmp.lt.s32.totalorder %s13, 3
    %p201 = pnand %p199, %p200
    %p202 = pneg %p201
    // Predicated region
    $region9: #{_lambda_.7} parent=5 // pred_check
      _
    $region10: #{_lambda_.7} parent=5 // pred_check_branch
      %204 = sbr.rel (%p201) target = $region12
    $region11: #{_lambda_.7} parent=5 // pred_region
      %s205 = ssub.s32 %s13, 1
      // Predicated region
      $region13: #{_lambda_.7} parent=11 // pred_check
        %p206 = pneg %p60
      $region14: #{_lambda_.7} parent=11 // pred_check_branch
        %208 = sbr.rel (%p206) target = $region16
      $region15: #{_lambda_.7} parent=11 // pred_region
        _
      $region16: #{_lambda_.7} parent=11 // pred_fallthru
        _
      // Predicated region
      $region17: #{_lambda_.7} parent=11 // pred_check
        %p209 = pneg %p81
      $region18: #{_lambda_.7} parent=11 // pred_check_branch
        %211 = sbr.rel (%p209) target = $region20
      $region19: #{_lambda_.7} parent=11 // pred_region
        _
      $region20: #{_lambda_.7} parent=11 // pred_fallthru
        _
      // Predicated region
      $region21: #{_lambda_.7} parent=11 // pred_check
        %p212 = pneg %p102
      $region22: #{_lambda_.7} parent=11 // pred_check_branch
        %214 = sbr.rel (%p212) target = $region24
      $region23: #{_lambda_.7} parent=11 // pred_region
        _
      $region24: #{_lambda_.7} parent=11 // pred_fallthru
        _
      // Predicated region
      $region25: #{_lambda_.7} parent=11 // pred_check
        %p215 = pneg %p123
      $region26: #{_lambda_.7} parent=11 // pred_check_branch
        %217 = sbr.rel (%p215) target = $region28
      $region27: #{_lambda_.7} parent=11 // pred_region
        _
      $region28: #{_lambda_.7} parent=11 // pred_fallthru
        _
      // Predicated region
      $region29: #{_lambda_.7} parent=11 // pred_check
        %p218 = pneg %p144
      $region30: #{_lambda_.7} parent=11 // pred_check_branch
        %220 = sbr.rel (%p218) target = $region32
      $region31: #{_lambda_.7} parent=11 // pred_region
        _
      $region32: #{_lambda_.7} parent=11 // pred_fallthru
        _
      // Predicated region
      $region33: #{_lambda_.7} parent=11 // pred_check
        %p221 = pneg %p165
      $region34: #{_lambda_.7} parent=11 // pred_check_branch
        %223 = sbr.rel (%p221) target = $region36
      $region35: #{_lambda_.7} parent=11 // pred_region
        _
      $region36: #{_lambda_.7} parent=11 // pred_fallthru
        _
    $region12: #{_lambda_.7} parent=5 // pred_fallthru
      _
    %p224 = scmp.lt.s32.totalorder %s13, 2
    // Predicated region
    $region37: #{_lambda_.7} parent=5 // pred_check
      %p225 = pneg %p224
    $region38: #{_lambda_.7} parent=5 // pred_check_branch
      %227 = sbr.rel (%p225) target = $region40
    $region39: #{_lambda_.7} parent=5 // pred_region
      // Predicated region
      $region41: #{_lambda_.7} parent=39 // pred_check
        %p228 = pneg %p33
      $region42: #{_lambda_.7} parent=39 // pred_check_branch
        %230 = sbr.rel (%p228) target = $region44
      $region43: #{_lambda_.7} parent=39 // pred_region
        %s231 = smul.u32 2, %s13
        %p232 = scmp.lt.s32.totalorder %s231, 3
        %s233 = scalar_select %p232, %s231, 3
        %s234 = smul.addr %s233, 4
        %s235 = scalar_lea.vmem %s0, %s234
        %s236 = smul.u32 2, %s13
      $region44: #{_lambda_.7} parent=39 // pred_fallthru
        _
    $region40: #{_lambda_.7} parent=5 // pred_fallthru
      _
    %p237 = scmp.le.s32.totalorder 1, %s13
    %p238 = scmp.lt.s32.totalorder %s13, 3
    %p239 = pnand %p237, %p238
    %p240 = pneg %p239
    // Predicated region
    $region45: #{_lambda_.7} parent=5 // pred_check
      _
    $region46: #{_lambda_.7} parent=5 // pred_check_branch
      %242 = sbr.rel (%p239) target = $region48
    $region47: #{_lambda_.7} parent=5 // pred_region
      %s243 = ssub.s32 %s13, 1
      %s244 = smul.u32 2, %s18
      %p245 = scmp.lt.s32.totalorder %s244, 3
      %s246 = scalar_select %p245, %s244, 3
      %s247 = smul.addr %s246, 4
      %s248 = scalar_lea.vmem %s0, %s247
      %p249 = pneg %p39
      %p250 = pneg %p36
      %p251 = pneg %p60
      %p252 = pneg %p57
      %p253 = pneg %p81
      %p254 = pneg %p78
      %p255 = pneg %p102
      %p256 = pneg %p99
      %p257 = pneg %p123
      %p258 = pneg %p120
      %p259 = pneg %p144
      %p260 = pneg %p141
      %p261 = pneg %p165
      %p262 = pneg %p162
      %p263 = pneg %p191
      %p264 = pneg %p188
      %s265 = smul.u32 2, %s18
      %p266 = scmp.lt.s32.totalorder %s265, 3
      %s267 = scalar_select %p266, %s265, 3
      %s268 = smul.addr %s267, 4
      %s269 = scalar_lea.vmem %s7, %s268
      %s270 = smul.u32 2, %s18
      %p271 = scmp.lt.s32.totalorder %s270, 3
      %s272 = scalar_select %p271, %s270, 3
      %s273 = smul.addr %s272, 4
      %s274 = scalar_lea.vmem %s0, %s273
      %s275 = smul.u32 2, %s18
      %s276 = smul.u32 2, %s18
      %p277 = scmp.lt.s32.totalorder %s276, 3
      %s278 = scalar_select %p277, %s276, 3
      %s279 = smul.addr %s278, 4
      %s280 = scalar_lea.vmem %s7, %s279
      %s281 = smul.u32 2, %s18
      %v283 = vld [vmem:[%s274] sm:$0xf]
      %v284 = vld [vmem:[%s274 + $0x4] sm:$0xf]
      %v285 = vld [vmem:[%s1] sm:$0xff]
      %v286 = vld [vmem:[%s1 + $0x8] sm:$0xf]
      %v287 = vld [vmem:[%s1 + $0xc] sm:$0xff]
      %v288 = vld [vmem:[%s1 + $0x14] sm:$0xf]
      %v289 = vld [vmem:[%s1 + $0x18] sm:$0xff]
      %v290 = vld [vmem:[%s1 + $0x20] sm:$0xf]
      %v291 = vld [vmem:[%s1 + $0x24] sm:$0xff]
      %v292 = vld [vmem:[%s1 + $0x2c] sm:$0xf]
      %v293 = vld [vmem:[%s1 + $0x30] sm:$0xff]
      %v294 = vld [vmem:[%s1 + $0x38] sm:$0xf]
      %v295 = vld [vmem:[%s1 + $0x3c] sm:$0xff]
      %v296 = vld [vmem:[%s1 + $0x44] sm:$0xf]
      %v297 = vld [vmem:[%s1 + $0x48] sm:$0xff]
      %v298 = vld [vmem:[%s1 + $0x50] sm:$0xf]
      %v299 = vld [vmem:[%s1 + $0x54] sm:$0xff]
      %v300 = vld [vmem:[%s1 + $0x5c] sm:$0xf]
      %v301 = vld [vmem:[%s1 + $0x60] sm:$0xff]
      %v302 = vld [vmem:[%s1 + $0x68] sm:$0xf]
      %v303 = vld [vmem:[%s1 + $0x6c] sm:$0xff]
      %v304 = vld [vmem:[%s1 + $0x74] sm:$0xf]
      %v305 = vld [vmem:[%s1 + $0x78] sm:$0xff]
      %v306 = vld [vmem:[%s1 + $0x80] sm:$0xf]
      %v307 = vld [vmem:[%s1 + $0x84] sm:$0xff]
      %v308 = vld [vmem:[%s1 + $0x8c] sm:$0xf]
      %v309 = vld [vmem:[%s1 + $0x90] sm:$0xff]
      %v310 = vld [vmem:[%s1 + $0x98] sm:$0xf]
      %v311 = vld [vmem:[%s1 + $0x9c] sm:$0xff]
      %v312 = vld [vmem:[%s1 + $0xa4] sm:$0xf]
      %v313 = vld [vmem:[%s1 + $0xa8] sm:$0xff]
      %v314 = vld [vmem:[%s1 + $0xb0] sm:$0xf]
      %v315 = vld [vmem:[%s1 + $0xb4] sm:$0xff]
      %v316 = vld [vmem:[%s1 + $0xbc] sm:$0xf]
      %v317 = vld [vmem:[%s2] sm:$0x7]
      %v319 = vlaneseq
      %v320 = vshrl.u32 %v319, 7
      %v321 = vsub.s32 0, %v320
      %v322 = vrot.slane %v317, %v321
      %v323 = vlaneseq
      %v324 = vshrl.u32 %v323, 7
      %v325 = vsub.s32 1, %v324
      %v326 = vrot.slane %v317, %v325
      %v327 = vlaneseq
      %v328 = vshrl.u32 %v327, 7
      %v329 = vsub.s32 2, %v328
      %v330 = vrot.slane %v317, %v329
      %v336 = vunpack.c.l.b16 %v283
      %v337 = vunpack.c.l.b16 %v284
      %v338 = vpack.c.b16 %v337, %v336
      %v372 = vunpack.c.l.b16 %v285
      %v373 = vunpack.c.h.b16 %v285
      %v374 = vunpack.c.l.b16 %v286
      %v375 = vunpack.c.l.b16 %v287
      %v376 = vunpack.c.h.b16 %v287
      %v377 = vunpack.c.l.b16 %v288
      %v378 = vunpack.c.l.b16 %v289
      %v379 = vunpack.c.h.b16 %v289
      %v380 = vunpack.c.l.b16 %v290
      %v381 = vunpack.c.l.b16 %v291
      %v382 = vunpack.c.h.b16 %v291
      %v383 = vunpack.c.l.b16 %v292
      %v384 = vunpack.c.l.b16 %v293
      %v385 = vunpack.c.h.b16 %v293
      %v386 = vunpack.c.l.b16 %v294
      %v387 = vunpack.c.l.b16 %v295
      %v388 = vunpack.c.h.b16 %v295
      %v389 = vunpack.c.l.b16 %v296
      %v390 = vunpack.c.l.b16 %v297
      %v391 = vunpack.c.h.b16 %v297
      %v392 = vunpack.c.l.b16 %v298
      %v393 = vunpack.c.l.b16 %v299
      %v394 = vunpack.c.h.b16 %v299
      %v395 = vunpack.c.l.b16 %v300
      %v396 = vunpack.c.l.b16 %v301
      %v397 = vunpack.c.h.b16 %v301
      %v398 = vunpack.c.l.b16 %v302
      %v399 = vunpack.c.l.b16 %v303
      %v400 = vunpack.c.h.b16 %v303
      %v401 = vunpack.c.l.b16 %v304
      %v402 = vunpack.c.l.b16 %v305
      %v403 = vunpack.c.h.b16 %v305
      %v404 = vunpack.c.l.b16 %v306
      %v405 = vunpack.c.l.b16 %v307
      %v406 = vunpack.c.h.b16 %v307
      %v407 = vunpack.c.l.b16 %v308
      %v408 = vunpack.c.l.b16 %v309
      %v409 = vunpack.c.h.b16 %v309
      %v410 = vunpack.c.l.b16 %v310
      %v411 = vunpack.c.l.b16 %v311
      %v412 = vunpack.c.h.b16 %v311
      %v413 = vunpack.c.l.b16 %v312
      %v414 = vunpack.c.l.b16 %v313
      %v415 = vunpack.c.h.b16 %v313
      %v416 = vunpack.c.l.b16 %v314
      %v417 = vunpack.c.l.b16 %v315
      %v418 = vunpack.c.h.b16 %v315
      %v419 = vunpack.c.l.b16 %v316
      %v420 = vpack.c.b16 %v375, %v372
      %v421 = vpack.c.b16 %v376, %v373
      %v422 = vpack.c.b16 %v377, %v374
      %v423 = vpack.c.b16 %v381, %v378
      %v424 = vpack.c.b16 %v382, %v379
      %v425 = vpack.c.b16 %v383, %v380
      %v426 = vpack.c.b16 %v387, %v384
      %v427 = vpack.c.b16 %v388, %v385
      %v428 = vpack.c.b16 %v389, %v386
      %v429 = vpack.c.b16 %v393, %v390
      %v430 = vpack.c.b16 %v394, %v391
      %v431 = vpack.c.b16 %v395, %v392
      %v432 = vpack.c.b16 %v399, %v396
      %v433 = vpack.c.b16 %v400, %v397
      %v434 = vpack.c.b16 %v401, %v398
      %v435 = vpack.c.b16 %v405, %v402
      %v436 = vpack.c.b16 %v406, %v403
      %v437 = vpack.c.b16 %v407, %v404
      %v438 = vpack.c.b16 %v411, %v408
      %v439 = vpack.c.b16 %v412, %v409
      %v440 = vpack.c.b16 %v413, %v410
      %v441 = vpack.c.b16 %v417, %v414
      %v442 = vpack.c.b16 %v418, %v415
      %v443 = vpack.c.b16 %v419, %v416
      %468 = vmatprep.subr.bf16.mxu0 %v421
      %469 = vmatpush1.bf16.msra.mxu0 %v420
      %470 = vmatprep.subr.bf16.mxu0 %v424
      %471 = vmatpush1.bf16.msra.mxu0 %v423
      %472 = vmatprep.subr.bf16.mxu0 %v427
      %473 = vmatpush1.bf16.msra.mxu0 %v426
      %474 = vmatprep.subr.bf16.mxu0 %v430
      %475 = vmatpush1.bf16.msra.mxu0 %v429
      %476 = vmatprep.subr.bf16.mxu0 %v433
      %477 = vmatpush1.bf16.msra.mxu0 %v432
      %478 = vmatprep.subr.bf16.mxu0 %v436
      %479 = vmatpush1.bf16.msra.mxu0 %v435
      %480 = vmatprep.subr.bf16.mxu0 %v439
      %481 = vmatpush1.bf16.msra.mxu0 %v438
      %482 = vmatprep.subr.bf16.mxu0 %v442
      %483 = vmatpush1.bf16.msra.mxu0 %v441
      %484 = vmatprep.subr.bf16.mxu0 0
      %485 = vmatpush1.bf16.msra.mxu0 0
      %486 = vmatprep.subr.bf16.mxu0 0
      %487 = vmatpush1.bf16.msra.mxu0 0
      %488 = vmatprep.subr.bf16.mxu0 0
      %489 = vmatpush1.bf16.msra.mxu0 0
      %490 = vmatprep.subr.bf16.mxu0 0
      %491 = vmatpush1.bf16.msra.mxu0 0
      %492 = vmatprep.subr.bf16.mxu0 0
      %493 = vmatpush1.bf16.msra.mxu0 0
      %494 = vmatprep.subr.bf16.mxu0 0
      %495 = vmatpush1.bf16.msra.mxu0 0
      %496 = vmatprep.subr.bf16.mxu0 0
      %497 = vmatpush1.bf16.msra.mxu0 0
      %498 = vmatprep.subr.bf16.mxu0 0
      %499 = vmatpush1.bf16.msra.mxu0 0
      %500 = vmatprep.mubr.bf16.mxu0 0
      %501 = vmatmul.mubr.bf16.gmra.mrb[0].mxu0 %v338
      %v502 = vpop.f32.mrb[0].mxu0
      %v503 = vadd.f32 %v322, %v502
      %v504 = vpop.f32.mrb[0].mxu0
      %v505 = vadd.f32 %v326, %v504
      %v506 = vpop.f32.mrb[0].mxu0
      %v507 = vadd.f32 %v322, %v506
      %v508 = vpop.f32.mrb[0].mxu0
      %v509 = vadd.f32 %v326, %v508
      %510 = vdwg.mxu0
      %511 = vmatprep.subr.bf16.mxu0 0
      %512 = vmatpush1.bf16.msra.mxu0 %v422
      %513 = vmatprep.subr.bf16.mxu0 0
      %514 = vmatpush1.bf16.msra.mxu0 %v425
      %515 = vmatprep.subr.bf16.mxu0 0
      %516 = vmatpush1.bf16.msra.mxu0 %v428
      %517 = vmatprep.subr.bf16.mxu0 0
      %518 = vmatpush1.bf16.msra.mxu0 %v431
      %519 = vmatprep.subr.bf16.mxu0 0
      %520 = vmatpush1.bf16.msra.mxu0 %v434
      %521 = vmatprep.subr.bf16.mxu0 0
      %522 = vmatpush1.bf16.msra.mxu0 %v437
      %523 = vmatprep.subr.bf16.mxu0 0
      %524 = vmatpush1.bf16.msra.mxu0 %v440
      %525 = vmatprep.subr.bf16.mxu0 0
      %526 = vmatpush1.bf16.msra.mxu0 %v443
      %527 = vmatprep.subr.bf16.mxu0 0
      %528 = vmatpush1.bf16.msra.mxu0 0
      %529 = vmatprep.subr.bf16.mxu0 0
      %530 = vmatpush1.bf16.msra.mxu0 0
      %531 = vmatprep.subr.bf16.mxu0 0
      %532 = vmatpush1.bf16.msra.mxu0 0
      %533 = vmatprep.subr.bf16.mxu0 0
      %534 = vmatpush1.bf16.msra.mxu0 0
      %535 = vmatprep.subr.bf16.mxu0 0
      %536 = vmatpush1.bf16.msra.mxu0 0
      %537 = vmatprep.subr.bf16.mxu0 0
      %538 = vmatpush1.bf16.msra.mxu0 0
      %539 = vmatprep.subr.bf16.mxu0 0
      %540 = vmatpush1.bf16.msra.mxu0 0
      %541 = vmatprep.subr.bf16.mxu0 0
      %542 = vmatpush1.bf16.msra.mxu0 0
      %543 = vmatprep.mubr.bf16.mxu0 0
      %544 = vmatmul.mubr.bf16.gmra.mrb[0].mxu0 %v338
      %v545 = vpop.f32.mrb[0].mxu0
      %v546 = vadd.f32 %v330, %v545
      %v547 = vpop.f32.mrb[0].mxu0
      %v548 = vpop.f32.mrb[0].mxu0
      %v549 = vadd.f32 %v330, %v548
      %v550 = vpop.f32.mrb[0].mxu0
      %551 = vdwg.mxu0
      %v552 = vpack.c.bf16 %v507, %v503
      %v553 = vpack.c.bf16 %v509, %v505
      %v554 = vpack.c.bf16 %v549, %v546
      %v555 = vlaneseq
      %v556 = vshrl.u32 %v555, 7
      %v557 = vadd.s32 %v556, 8
      %v558 = vlaneseq
      %v559 = vand.u32 %v558, 127
      %vm560 = vcmp.le.s32.totalorder %v559, %v556
      %vm561 = vcmp.le.s32.totalorder %v559, %v557
      %v562 = vsel %vm560, 0.0, -10000.0
      %v563 = vsel %vm561, 0.0, -10000.0
      %vm564 = vcmask 523264
      %v566 = vsel %vm564, %v552, 0
      %v569 = vsel %vm564, %v553, 0
      %571 = vmatprep.subr.bf16.mxu0 0
      %572 = vmatpush1.bf16.xpose.msra.mxu0 %v569
      %573 = vmatprep.subr.bf16.mxu0 0
      %574 = vmatpush1.bf16.xpose.msra.mxu0 0
      %575 = vmatprep.subr.bf16.mxu0 0
      %576 = vmatpush1.bf16.xpose.msra.mxu0 0
      %577 = vmatprep.subr.bf16.mxu0 0
      %578 = vmatpush1.bf16.xpose.msra.mxu0 0
      %579 = vmatprep.subr.bf16.mxu0 0
      %580 = vmatpush1.bf16.xpose.msra.mxu0 0
      %581 = vmatprep.subr.bf16.mxu0 0
      %582 = vmatpush1.bf16.xpose.msra.mxu0 0
      %583 = vmatprep.subr.bf16.mxu0 0
      %584 = vmatpush1.bf16.xpose.msra.mxu0 0
      %585 = vmatprep.subr.bf16.mxu0 0
      %586 = vmatpush1.bf16.xpose.msra.mxu0 0
      %587 = vmatprep.subr.bf16.mxu0 0
      %588 = vmatpush1.bf16.xpose.msra.mxu0 0
      %589 = vmatprep.subr.bf16.mxu0 0
      %590 = vmatpush1.bf16.xpose.msra.mxu0 0
      %591 = vmatprep.subr.bf16.mxu0 0
      %592 = vmatpush1.bf16.xpose.msra.mxu0 0
      %593 = vmatprep.subr.bf16.mxu0 0
      %594 = vmatpush1.bf16.xpose.msra.mxu0 0
      %595 = vmatprep.subr.bf16.mxu0 0
      %596 = vmatpush1.bf16.xpose.msra.mxu0 0
      %597 = vmatprep.subr.bf16.mxu0 0
      %598 = vmatpush1.bf16.xpose.msra.mxu0 0
      %599 = vmatprep.subr.bf16.mxu0 0
      %600 = vmatpush1.bf16.xpose.msra.mxu0 0
      %601 = vmatprep.subr.bf16.mxu0 0
      %602 = vmatpush1.bf16.xpose.msra.mxu0 0
      %603 = vmatprep.mubr.bf16.mxu0 0
      %604 = vmatmul.mubr.bf16.gmra.mrb[0].mxu0 %v566
      %v605 = vpop.f32.mrb[0].mxu0
      %v606 = vadd.f32 0.0, %v605
      %v607 = vpop.f32.mrb[0].mxu0
      %v608 = vpop.f32.mrb[0].mxu0
      %v609 = vadd.f32 0.0, %v608
      %v610 = vpop.f32.mrb[0].mxu0
      %611 = vdwg.mxu0
      %v612 = vmul.f32 %v606, 0.125
      %v613 = vmul.f32 %v609, 0.125
      %v614 = vadd.f32 %v612, %v562
      %v615 = vadd.f32 %v613, %v563
      %vm616 = vcmask 130048
      %v617 = vsel %vm616, %v614, -inf
      %618 = vmax.xlane.f32.xlu0 %v617
      %v619 = vpop.xlane.xlu0 %618
      %v620 = vsel %vm616, %v615, -inf
      %621 = vmax.xlane.f32.xlu0 %v620
      %v622 = vpop.xlane.xlu0 %621
      %v623 = vsub.f32 %v614, %v619
      %v624 = vsub.f32 %v615, %v622
      %v625 = vmul.f32 %v623, 1.442695
      %v626 = vpow.pop %v625
      %v627 = vmul.f32 %v624, 1.442695
      %v628 = vpow.pop %v627
      %v629 = vsel %vm616, %v626, 0.0
      %630 = vadd.xlane.f32.xlu0 %v629
      %v631 = vpop.xlane.xlu0 %630
      %v632 = vsel %vm616, %v628, 0.0
      %633 = vadd.xlane.f32.xlu0 %v632
      %v634 = vpop.xlane.xlu0 %633
      %v635 = vrcp.pop %v631
      %v636 = vrcp.pop %v634
      %v637 = vmul.f32 %v626, %v635
      %v638 = vmul.f32 %v628, %v636
      %v639 = vpack.c.bf16 %v638, %v637
      %v641 = vsel %vm616, %v639, 0
      %643 = vmatprep.subr.bf16.mxu0 0
      %644 = vmatpush1.bf16.msra.mxu0 %v554
      %645 = vmatprep.subr.bf16.mxu0 0
      %646 = vmatpush1.bf16.msra.mxu0 0
      %647 = vmatprep.subr.bf16.mxu0 0
      %648 = vmatpush1.bf16.msra.mxu0 0
      %649 = vmatprep.subr.bf16.mxu0 0
      %650 = vmatpush1.bf16.msra.mxu0 0
      %651 = vmatprep.subr.bf16.mxu0 0
      %652 = vmatpush1.bf16.msra.mxu0 0
      %653 = vmatprep.subr.bf16.mxu0 0
      %654 = vmatpush1.bf16.msra.mxu0 0
      %655 = vmatprep.subr.bf16.mxu0 0
      %656 = vmatpush1.bf16.msra.mxu0 0
      %657 = vmatprep.subr.bf16.mxu0 0
      %658 = vmatpush1.bf16.msra.mxu0 0
      %659 = vmatprep.subr.bf16.mxu0 0
      %660 = vmatpush1.bf16.msra.mxu0 0
      %661 = vmatprep.subr.bf16.mxu0 0
      %662 = vmatpush1.bf16.msra.mxu0 0
      %663 = vmatprep.subr.bf16.mxu0 0
      %664 = vmatpush1.bf16.msra.mxu0 0
      %665 = vmatprep.subr.bf16.mxu0 0
      %666 = vmatpush1.bf16.msra.mxu0 0
      %667 = vmatprep.subr.bf16.mxu0 0
      %668 = vmatpush1.bf16.msra.mxu0 0
      %669 = vmatprep.subr.bf16.mxu0 0
      %670 = vmatpush1.bf16.msra.mxu0 0
      %671 = vmatprep.subr.bf16.mxu0 0
      %672 = vmatpush1.bf16.msra.mxu0 0
      %673 = vmatprep.subr.bf16.mxu0 0
      %674 = vmatpush1.bf16.msra.mxu0 0
      %675 = vmatprep.mubr.bf16.mxu0 0
      %676 = vmatmul.mubr.bf16.gmra.mrb[0].mxu0 %v641
      %v677 = vpop.f32.mrb[0].mxu0
      %v678 = vadd.f32 0.0, %v677
      %v679 = vpop.f32.mrb[0].mxu0
      %v680 = vpop.f32.mrb[0].mxu0
      %v681 = vadd.f32 0.0, %v680
      %v682 = vpop.f32.mrb[0].mxu0
      %683 = vdwg.mxu0
      %685 = vrot.lane.b32.xlu0 %v552, 64
      %v686 = vpop.permute.xlu0 %685
      %688 = vrot.lane.b32.xlu0 %v553, 64
      %v689 = vpop.permute.xlu0 %688
      %v691 = vsel %vm564, %v686, 0
      %v694 = vsel %vm564, %v689, 0
      %696 = vmatprep.subr.bf16.mxu0 0
      %697 = vmatpush1.bf16.xpose.msra.mxu0 %v694
      %698 = vmatprep.subr.bf16.mxu0 0
      %699 = vmatpush1.bf16.xpose.msra.mxu0 0
      %700 = vmatprep.subr.bf16.mxu0 0
      %701 = vmatpush1.bf16.xpose.msra.mxu0 0
      %702 = vmatprep.subr.bf16.mxu0 0
      %703 = vmatpush1.bf16.xpose.msra.mxu0 0
      %704 = vmatprep.subr.bf16.mxu0 0
      %705 = vmatpush1.bf16.xpose.msra.mxu0 0
      %706 = vmatprep.subr.bf16.mxu0 0
      %707 = vmatpush1.bf16.xpose.msra.mxu0 0
      %708 = vmatprep.subr.bf16.mxu0 0
      %709 = vmatpush1.bf16.xpose.msra.mxu0 0
      %710 = vmatprep.subr.bf16.mxu0 0
      %711 = vmatpush1.bf16.xpose.msra.mxu0 0
      %712 = vmatprep.subr.bf16.mxu0 0
      %713 = vmatpush1.bf16.xpose.msra.mxu0 0
      %714 = vmatprep.subr.bf16.mxu0 0
      %715 = vmatpush1.bf16.xpose.msra.mxu0 0
      %716 = vmatprep.subr.bf16.mxu0 0
      %717 = vmatpush1.bf16.xpose.msra.mxu0 0
      %718 = vmatprep.subr.bf16.mxu0 0
      %719 = vmatpush1.bf16.xpose.msra.mxu0 0
      %720 = vmatprep.subr.bf16.mxu0 0
      %721 = vmatpush1.bf16.xpose.msra.mxu0 0
      %722 = vmatprep.subr.bf16.mxu0 0
      %723 = vmatpush1.bf16.xpose.msra.mxu0 0
      %724 = vmatprep.subr.bf16.mxu0 0
      %725 = vmatpush1.bf16.xpose.msra.mxu0 0
      %726 = vmatprep.subr.bf16.mxu0 0
      %727 = vmatpush1.bf16.xpose.msra.mxu0 0
      %728 = vmatprep.mubr.bf16.mxu0 0
      %729 = vmatmul.mubr.bf16.gmra.mrb[0].mxu0 %v691
      %v730 = vpop.f32.mrb[0].mxu0
      %v731 = vadd.f32 0.0, %v730
      %v732 = vpop.f32.mrb[0].mxu0
      %v733 = vpop.f32.mrb[0].mxu0
      %v734 = vadd.f32 0.0, %v733
      %v735 = vpop.f32.mrb[0].mxu0
      %736 = vdwg.mxu0
      %v737 = vmul.f32 %v731, 0.125
      %v738 = vmul.f32 %v734, 0.125
      %v739 = vadd.f32 %v737, %v562
      %v740 = vadd.f32 %v738, %v563
      %v741 = vsel %vm616, %v739, -inf
      %742 = vmax.xlane.f32.xlu0 %v741
      %v743 = vpop.xlane.xlu0 %742
      %v744 = vsel %vm616, %v740, -inf
      %745 = vmax.xlane.f32.xlu0 %v744
      %v746 = vpop.xlane.xlu0 %745
      %v747 = vsub.f32 %v739, %v743
      %v748 = vsub.f32 %v740, %v746
      %v749 = vmul.f32 %v747, 1.442695
      %v750 = vpow.pop %v749
      %v751 = vmul.f32 %v748, 1.442695
      %v752 = vpow.pop %v751
      %v753 = vsel %vm616, %v750, 0.0
      %754 = vadd.xlane.f32.xlu0 %v753
      %v755 = vpop.xlane.xlu0 %754
      %v756 = vsel %vm616, %v752, 0.0
      %757 = vadd.xlane.f32.xlu0 %v756
      %v758 = vpop.xlane.xlu0 %757
      %v759 = vrcp.pop %v755
      %v760 = vrcp.pop %v758
      %v761 = vmul.f32 %v750, %v759
      %v762 = vmul.f32 %v752, %v760
      %v763 = vpack.c.bf16 %v762, %v761
      %765 = vrot.lane.b32.xlu0 %v554, 64
      %v766 = vpop.permute.xlu0 %765
      %v769 = vsel %vm616, %v763, 0
      %771 = vmatprep.subr.bf16.mxu0 0
      %772 = vmatpush1.bf16.msra.mxu0 %v766
      %773 = vmatprep.subr.bf16.mxu0 0
      %774 = vmatpush1.bf16.msra.mxu0 0
      %775 = vmatprep.subr.bf16.mxu0 0
      %776 = vmatpush1.bf16.msra.mxu0 0
      %777 = vmatprep.subr.bf16.mxu0 0
      %778 = vmatpush1.bf16.msra.mxu0 0
      %779 = vmatprep.subr.bf16.mxu0 0
      %780 = vmatpush1.bf16.msra.mxu0 0
      %781 = vmatprep.subr.bf16.mxu0 0
      %782 = vmatpush1.bf16.msra.mxu0 0
      %783 = vmatprep.subr.bf16.mxu0 0
      %784 = vmatpush1.bf16.msra.mxu0 0
      %785 = vmatprep.subr.bf16.mxu0 0
      %786 = vmatpush1.bf16.msra.mxu0 0
      %787 = vmatprep.subr.bf16.mxu0 0
      %788 = vmatpush1.bf16.msra.mxu0 0
      %789 = vmatprep.subr.bf16.mxu0 0
      %790 = vmatpush1.bf16.msra.mxu0 0
      %791 = vmatprep.subr.bf16.mxu0 0
      %792 = vmatpush1.bf16.msra.mxu0 0
      %793 = vmatprep.subr.bf16.mxu0 0
      %794 = vmatpush1.bf16.msra.mxu0 0
      %795 = vmatprep.subr.bf16.mxu0 0
      %796 = vmatpush1.bf16.msra.mxu0 0
      %797 = vmatprep.subr.bf16.mxu0 0
      %798 = vmatpush1.bf16.msra.mxu0 0
      %799 = vmatprep.subr.bf16.mxu0 0
      %800 = vmatpush1.bf16.msra.mxu0 0
      %801 = vmatprep.subr.bf16.mxu0 0
      %802 = vmatpush1.bf16.msra.mxu0 0
      %803 = vmatprep.mubr.bf16.mxu0 0
      %804 = vmatmul.mubr.bf16.gmra.mrb[0].mxu0 %v769
      %v805 = vpop.f32.mrb[0].mxu0
      %v806 = vadd.f32 0.0, %v805
      %v807 = vpop.f32.mrb[0].mxu0
      %v808 = vpop.f32.mrb[0].mxu0
      %v809 = vadd.f32 0.0, %v808
      %v810 = vpop.f32.mrb[0].mxu0
      %811 = vdwg.mxu0
      %814 = vrot.lane.b32.xlu0 %v806, 64
      %v815 = vpop.permute.xlu0 %814
      %816 = vrot.lane.b32.xlu0 %v809, 64
      %v817 = vpop.permute.xlu0 %816
      %v820 = vsel %vm564, %v678, %v815
      %v821 = vsel %vm564, %v681, %v817
      %v822 = vpack.c.bf16 %v821, %v820
      %v823 = vld [vmem:[%s3] sm:$0xf]
      %v824 = vld [vmem:[%s3 + $0x4] sm:$0xf]
      %v825 = vld [vmem:[%s3 + $0x8] sm:$0xf]
      %v826 = vld [vmem:[%s3 + $0xc] sm:$0xf]
      %v827 = vld [vmem:[%s3 + $0x10] sm:$0xf]
      %v828 = vld [vmem:[%s3 + $0x14] sm:$0xf]
      %v829 = vld [vmem:[%s3 + $0x18] sm:$0xf]
      %v830 = vld [vmem:[%s3 + $0x1c] sm:$0xf]
      %v831 = vld [vmem:[%s3 + $0x20] sm:$0xf]
      %v832 = vld [vmem:[%s3 + $0x24] sm:$0xf]
      %v833 = vld [vmem:[%s3 + $0x28] sm:$0xf]
      %v834 = vld [vmem:[%s3 + $0x2c] sm:$0xf]
      %v835 = vld [vmem:[%s3 + $0x30] sm:$0xf]
      %v836 = vld [vmem:[%s3 + $0x34] sm:$0xf]
      %v837 = vld [vmem:[%s3 + $0x38] sm:$0xf]
      %v838 = vld [vmem:[%s3 + $0x3c] sm:$0xf]
      %v839 = vld [vmem:[%s4] sm:$0x1]
      %v841 = vlaneseq
      %v842 = vshrl.u32 %v841, 7
      %v843 = vsub.s32 0, %v842
      %v844 = vrot.slane %v839, %v843
      %v862 = vunpack.c.l.b16 %v823
      %v863 = vunpack.c.l.b16 %v824
      %v864 = vunpack.c.l.b16 %v825
      %v865 = vunpack.c.l.b16 %v826
      %v866 = vunpack.c.l.b16 %v827
      %v867 = vunpack.c.l.b16 %v828
      %v868 = vunpack.c.l.b16 %v829
      %v869 = vunpack.c.l.b16 %v830
      %v870 = vunpack.c.l.b16 %v831
      %v871 = vunpack.c.l.b16 %v832
      %v872 = vunpack.c.l.b16 %v833
      %v873 = vunpack.c.l.b16 %v834
      %v874 = vunpack.c.l.b16 %v835
      %v875 = vunpack.c.l.b16 %v836
      %v876 = vunpack.c.l.b16 %v837
      %v877 = vunpack.c.l.b16 %v838
      %v878 = vpack.c.b16 %v863, %v862
      %v879 = vpack.c.b16 %v865, %v864
      %v880 = vpack.c.b16 %v867, %v866
      %v881 = vpack.c.b16 %v869, %v868
      %v882 = vpack.c.b16 %v871, %v870
      %v883 = vpack.c.b16 %v873, %v872
      %v884 = vpack.c.b16 %v875, %v874
      %v885 = vpack.c.b16 %v877, %v876
      %894 = vmatprep.subr.bf16.mxu0 0
      %895 = vmatpush1.bf16.msra.mxu0 %v878
      %896 = vmatprep.subr.bf16.mxu0 0
      %897 = vmatpush1.bf16.msra.mxu0 %v879
      %898 = vmatprep.subr.bf16.mxu0 0
      %899 = vmatpush1.bf16.msra.mxu0 %v880
      %900 = vmatprep.subr.bf16.mxu0 0
      %901 = vmatpush1.bf16.msra.mxu0 %v881
      %902 = vmatprep.subr.bf16.mxu0 0
      %903 = vmatpush1.bf16.msra.mxu0 %v882
      %904 = vmatprep.subr.bf16.mxu0 0
      %905 = vmatpush1.bf16.msra.mxu0 %v883
      %906 = vmatprep.subr.bf16.mxu0 0
      %907 = vmatpush1.bf16.msra.mxu0 %v884
      %908 = vmatprep.subr.bf16.mxu0 0
      %909 = vmatpush1.bf16.msra.mxu0 %v885
      %910 = vmatprep.subr.bf16.mxu0 0
      %911 = vmatpush1.bf16.msra.mxu0 0
      %912 = vmatprep.subr.bf16.mxu0 0
      %913 = vmatpush1.bf16.msra.mxu0 0
      %914 = vmatprep.subr.bf16.mxu0 0
      %915 = vmatpush1.bf16.msra.mxu0 0
      %916 = vmatprep.subr.bf16.mxu0 0
      %917 = vmatpush1.bf16.msra.mxu0 0
      %918 = vmatprep.subr.bf16.mxu0 0
      %919 = vmatpush1.bf16.msra.mxu0 0
      %920 = vmatprep.subr.bf16.mxu0 0
      %921 = vmatpush1.bf16.msra.mxu0 0
      %922 = vmatprep.subr.bf16.mxu0 0
      %923 = vmatpush1.bf16.msra.mxu0 0
      %924 = vmatprep.subr.bf16.mxu0 0
      %925 = vmatpush1.bf16.msra.mxu0 0
      %926 = vmatprep.mubr.bf16.mxu0 0
      %927 = vmatmul.mubr.bf16.gmra.mrb[0].mxu0 %v822
      %v928 = vpop.f32.mrb[0].mxu0
      %v929 = vadd.f32 %v844, %v928
      %v930 = vpop.f32.mrb[0].mxu0
      %v931 = vpop.f32.mrb[0].mxu0
      %v932 = vadd.f32 %v844, %v931
      %v933 = vpop.f32.mrb[0].mxu0
      %934 = vdwg.mxu0
      %v935 = vunpack.c.l.bf16 %v283
      %v936 = vunpack.c.l.bf16 %v284
      %v937 = vadd.f32 %v929, %v935
      %v938 = vadd.f32 %v932, %v936
      %939 = vadd.xlane.f32.xlu0 %v937
      %v940 = vpop.xlane.xlu0 %939
      %941 = vadd.xlane.f32.xlu0 %v938
      %v942 = vpop.xlane.xlu0 %941
      %v943 = vrcp.pop 128.0
      %v944 = vmul.f32 %v940, %v943
      %v945 = vmul.f32 %v942, %v943
      %v946 = vsub.f32 %v937, %v944
      %v947 = vsub.f32 %v938, %v945
      %v948 = vmul.f32 %v946, %v946
      %v949 = vmul.f32 %v947, %v947
      %950 = vadd.xlane.f32.xlu0 %v948
      %v951 = vpop.xlane.xlu0 %950
      %952 = vadd.xlane.f32.xlu0 %v949
      %v953 = vpop.xlane.xlu0 %952
      %v954 = vmul.f32 %v951, %v943
      %v955 = vmul.f32 %v953, %v943
      %v956 = vadd.f32 %v954, 1e-12
      %v957 = vadd.f32 %v955, 1e-12
      %v958 = vrsqrt.pop %v956
      %v959 = vrsqrt.pop %v957
      %v960 = vmul.f32 %v946, %v958
      %v961 = vmul.f32 %v947, %v959
      %v962 = vld [vmem:[%s5] sm:$0x1]
      %v964 = vlaneseq
      %v965 = vshrl.u32 %v964, 7
      %v966 = vsub.s32 0, %v965
      %v967 = vrot.slane %v962, %v966
      %v969 = vmul.f32 %v960, %v967
      %v970 = vmul.f32 %v961, %v967
      %v971 = vld [vmem:[%s6] sm:$0x1]
      %v973 = vlaneseq
      %v974 = vshrl.u32 %v973, 7
      %v975 = vsub.s32 0, %v974
      %v976 = vrot.slane %v971, %v975
      %v978 = vadd.f32 %v969, %v976
      %v979 = vadd.f32 %v970, %v976
      %v980 = vpack.c.bf16 %v979, %v978
      %v982 = vunpack.c.l.b16 %v980
      %v983 = vunpack.c.h.b16 %v980
      %v984 = vpack.c.b16 %v982, %v982
      %v985 = vpack.c.b16 %v983, %v983
      %988 = vst [vmem:[%s280] sm:$0xf] %v984
      %989 = vst [vmem:[%s280 + $0x4] sm:$0xf] %v985
      %s990 = smul.u32 2, %s18
      %p991 = scmp.lt.s32.totalorder %s990, 3
      %s992 = scalar_select %p991, %s990, 3
      %s993 = smul.addr %s992, 4
      %s994 = scalar_lea.vmem %s7, %s993
      // Predicated region
      $region49: #{_lambda_.7} parent=47 // pred_check
        %p995 = pneg %p188
      $region50: #{_lambda_.7} parent=47 // pred_check_branch
        %997 = sbr.rel (%p995) target = $region52
      $region51: #{_lambda_.7} parent=47 // pred_region
        %s998 = smul.u32 2, %s18
      $region52: #{_lambda_.7} parent=47 // pred_fallthru
        _
    $region48: #{_lambda_.7} parent=5 // pred_fallthru
      _
    %p999 = scmp.le.s32.totalorder 2, %s13
    // Predicated region
    $region53: #{_lambda_.7} parent=5 // pred_check
      %p1000 = pneg %p999
    $region54: #{_lambda_.7} parent=5 // pred_check_branch
      %1002 = sbr.rel (%p1000) target = $region56
    $region55: #{_lambda_.7} parent=5 // pred_region
      %s1003 = ssub.s32 %s13, 2
      // Predicated region
      $region57: #{_lambda_.7} parent=55 // pred_check
        %p1004 = pneg %p194
      $region58: #{_lambda_.7} parent=55 // pred_check_branch
        %1006 = sbr.rel (%p1004) target = $region60
      $region59: #{_lambda_.7} parent=55 // pred_region
        %s1007 = smul.u32 2, %s19
        %p1008 = scmp.lt.s32.totalorder %s1007, 3
        %s1009 = scalar_select %p1008, %s1007, 3
        %s1010 = smul.addr %s1009, 4
        %s1011 = scalar_lea.vmem %s7, %s1010
      $region60: #{_lambda_.7} parent=55 // pred_fallthru
        _
    $region56: #{_lambda_.7} parent=5 // pred_fallthru
      _
  $region6: #{_lambda_.7} parent=0 // loop_footer
    %s17 = sadd.s32 1, %s13
  $region7: #{_lambda_.7} parent=0 // loop_footer_branch
    %12 = sbr.rel target = $region3
  $region8: #{_lambda_.7} parent=0 // loop_exit
    _

</llo_original>
